<compile_context>
chip_gen: v5e
topology: v5e:2x2
jax: 0.10.0
libtpu: 0.0.40
codegen_flags: <defaults>
</compile_context>

<pallas_src>
import jax
import jax.numpy as jnp
from jax.experimental import pallas as pl
from jax.experimental.pallas import tpu as pltpu  # noqa: F401  (TPU backend import)

# ----- small config consistent with the module's forward -----
IMAGE_SIZE = 32
PATCH_SIZE = 8
DIM = 128
DEPTH = 2
HEADS = 4
MLP_DIM = 256
CHANNELS = 3
BATCH = 2

SEQ_LEN = (IMAGE_SIZE // PATCH_SIZE) ** 2          # 16
PATCH_DIM = CHANNELS * PATCH_SIZE * PATCH_SIZE     # 192
HEAD_DIM = DIM // HEADS                            # 32
BN = BATCH * SEQ_LEN                               # 32 rows for all dense matmuls
LN_EPS = 1e-5
SCALE = 1.0 / (HEAD_DIM ** 0.5)
OUT_PAD = 128                                      # lane-dense padded head output width


def _layernorm(x, g, b):
    mu = jnp.mean(x, axis=-1, keepdims=True)
    var = jnp.mean((x - mu) ** 2, axis=-1, keepdims=True)
    return (x - mu) * jax.lax.rsqrt(var + LN_EPS) * g + b


# ---------------- fused forward kernel: patch embed -> DEPTH encoder layers -> head ----------------
def fused_forward_kernel(
    patches_ref, pos_ref, pw_ref, pb_ref,
    wqkv_ref, bqkv_ref, wo_ref, bo_ref,
    ln1g_ref, ln1b_ref, w1_ref, b1_ref, w2_ref, b2_ref, ln2g_ref, ln2b_ref,
    hg_ref, hb_ref, hw_ref, hbias_ref,
    out_ref,
):
    # ---- patch embedding + positional embedding (B*N rows folded into matmul M) ----
    p_bf = patches_ref[...].astype(jnp.bfloat16)                      # (BN, PATCH_DIM)
    x = (jnp.dot(p_bf, pw_ref[...], preferred_element_type=jnp.float32)
         + pb_ref[...] + pos_ref[...])                                # (BN, DIM) f32
    # dropout is identity (eval mode)

    # ---- DEPTH post-norm encoder layers, fully unrolled, weights resident in VMEM ----
    for l in range(DEPTH):
        x_bf = x.astype(jnp.bfloat16)                                 # single cast per layer

        # fused QKV projection: one wide matmul, 128-lane-aligned q/k/v slices.
        # Q columns of wqkv / bqkv are pre-scaled by 1/sqrt(HEAD_DIM) at pack time.
        qkv = (jnp.dot(x_bf, wqkv_ref[l], preferred_element_type=jnp.float32)
               + bqkv_ref[l])                                         # (BN, 3*DIM) f32
        qkv_bf = qkv.astype(jnp.bfloat16)
        q = qkv_bf[:, 0 * DIM:1 * DIM].reshape(BATCH, SEQ_LEN, DIM)   # (B, N, DIM)
        k = qkv_bf[:, 1 * DIM:2 * DIM].reshape(BATCH, SEQ_LEN, DIM)
        v = qkv_bf[:, 2 * DIM:3 * DIM].reshape(BATCH, SEQ_LEN, DIM)

        # per-head attention: only the two score/context matmuls + softmax remain in the loop
        ctx_heads = []
        for h in range(HEADS):
            sl = slice(h * HEAD_DIM, (h + 1) * HEAD_DIM)
            s = jnp.einsum('bqd,bkd->bqk', q[..., sl], k[..., sl],
                           preferred_element_type=jnp.float32)        # (B, N, N) f32
            s = s - jnp.max(s, axis=-1, keepdims=True)
            p = jnp.exp(s)
            p = p * pl.reciprocal(jnp.sum(p, axis=-1, keepdims=True), approx=True)
            ctx_heads.append(
                jnp.einsum('bqk,bkd->bqd', p.astype(jnp.bfloat16), v[..., sl],
                           preferred_element_type=jnp.float32))       # (B, N, HEAD_DIM)

        # single K=128 out-projection: concat heads once, one (32,128)@(128,128) matmul
        ctx = jnp.concatenate(ctx_heads, axis=-1).reshape(BN, DIM).astype(jnp.bfloat16)
        attn = jnp.dot(ctx, wo_ref[l], preferred_element_type=jnp.float32) + bo_ref[l]

        # residual + LayerNorm 1 (post-norm)
        h1 = _layernorm(x + attn, ln1g_ref[l], ln1b_ref[l])

        # feed-forward (relu)
        f = jnp.dot(h1.astype(jnp.bfloat16), w1_ref[l],
                    preferred_element_type=jnp.float32) + b1_ref[l]
        f = jnp.maximum(f, 0.0)
        f = jnp.dot(f.astype(jnp.bfloat16), w2_ref[l],
                    preferred_element_type=jnp.float32) + b2_ref[l]

        # residual + LayerNorm 2
        x = _layernorm(h1 + f, ln2g_ref[l], ln2b_ref[l])

    # ---- head: mean over sequence -> LayerNorm -> Linear(DIM, 4 padded to 128), lane-dense store ----
    pooled = jnp.mean(x.reshape(BATCH, SEQ_LEN, DIM), axis=1)          # (B, DIM)
    normed = _layernorm(pooled, hg_ref[...], hb_ref[...])
    out_ref[...] = (jnp.dot(normed, hw_ref[...], preferred_element_type=jnp.float32)
                    + hbias_ref[...])                                  # (B, 128); cols 4.. are zero


# ---------------- glue: patch extraction (matches torch.unfold semantics exactly) ----------------
def extract_patches(x, p):
    B, C, H, W = x.shape
    x = x.reshape(B, C, H // p, p, W // p, p)
    x = x.transpose(0, 1, 2, 4, 3, 5)         # (B, C, H/p, W/p, p, p)
    x = x.reshape(B, C, -1, p, p)             # (B, C, N, p, p)
    x = x.transpose(0, 2, 1, 3, 4)            # (B, N, C, p, p)
    return x.reshape(B, -1, C * p * p)        # (B, N, C*p*p)


# ---------------- deterministic parameter construction (PyTorch-like layout) ----------------
def init_params(key):
    n_keys = 4 + DEPTH * 4
    keys = jax.random.split(key, n_keys)
    ki = iter(range(n_keys))
    nrm = lambda shape, scale: jax.random.normal(keys[next(ki)], shape, jnp.float32) * scale

    params = {
        "patch_w": nrm((PATCH_DIM, DIM), 1.0 / (PATCH_DIM ** 0.5)),
        "patch_b": nrm((1, DIM), 0.02),
        "pos": nrm((SEQ_LEN, DIM), 0.02),
        "head_g": jnp.ones((1, DIM), jnp.float32),
        "head_beta": jnp.zeros((1, DIM), jnp.float32),
        "head_w": nrm((DIM, 4), 1.0 / (DIM ** 0.5)),
        "head_b": jnp.zeros((1, 4), jnp.float32),
        "layers": [],
    }
    for _ in range(DEPTH):
        layer = {
            "w_in": nrm((DIM, 3 * DIM), 1.0 / (DIM ** 0.5)),   # columns ordered [q | k | v]
            "b_in": jnp.zeros((1, 3 * DIM), jnp.float32),
            "w_o": nrm((DIM, DIM), 1.0 / (DIM ** 0.5)),        # rows grouped by head
            "b_o": jnp.zeros((1, DIM), jnp.float32),
            "ln1_g": jnp.ones((1, DIM), jnp.float32),
            "ln1_b": jnp.zeros((1, DIM), jnp.float32),
            "w1": nrm((DIM, MLP_DIM), 1.0 / (DIM ** 0.5)),
            "b1": jnp.zeros((1, MLP_DIM), jnp.float32),
            "w2": nrm((MLP_DIM, DIM), 1.0 / (MLP_DIM ** 0.5)),
            "b2": jnp.zeros((1, DIM), jnp.float32),
            "ln2_g": jnp.ones((1, DIM), jnp.float32),
            "ln2_b": jnp.zeros((1, DIM), jnp.float32),
        }
        params["layers"].append(layer)
    return params


# ---------------- pack params into the fused-kernel layout (stacked layers, fused QKV) ------------
def pack_params(params):
    bf16 = jnp.bfloat16
    L = params["layers"]

    # fold the attention scale into the Q columns of the fused [q|k|v] projection (weight + bias)
    def scaled_qkv_w(w_in):
        return w_in.at[:, :DIM].multiply(SCALE)

    def scaled_qkv_b(b_in):
        return b_in.at[:, :DIM].multiply(SCALE)

    wqkv = jnp.stack([scaled_qkv_w(l["w_in"]) for l in L], 0).astype(bf16)   # (DEPTH, DIM, 3*DIM)
    bqkv = jnp.stack([scaled_qkv_b(l["b_in"]) for l in L], 0)                # (DEPTH, 1, 3*DIM)
    wo = jnp.stack([l["w_o"] for l in L], 0).astype(bf16)                    # (DEPTH, DIM, DIM)

    stack = lambda k: jnp.stack([l[k] for l in L], 0)

    # lane-dense head: pad (DIM,4)->(DIM,128) and (1,4)->(1,128) with zeros
    head_w_pad = jnp.pad(params["head_w"], ((0, 0), (0, OUT_PAD - 4)))
    head_b_pad = jnp.pad(params["head_b"], ((0, 0), (0, OUT_PAD - 4)))

    return dict(
        patch_w=params["patch_w"].astype(bf16),
        patch_b=params["patch_b"],
        pos=jnp.tile(params["pos"], (BATCH, 1)),                 # (B*N, DIM), batch-major rows
        wqkv=wqkv, bqkv=bqkv, wo=wo,
        bo=stack("b_o"),
        ln1_g=stack("ln1_g"), ln1_b=stack("ln1_b"),
        w1=stack("w1").astype(bf16), b1=stack("b1"),
        w2=stack("w2").astype(bf16), b2=stack("b2"),
        ln2_g=stack("ln2_g"), ln2_b=stack("ln2_b"),
        head_g=params["head_g"], head_b=params["head_beta"],
        head_w=head_w_pad, head_bias=head_b_pad,
    )


# ---------------- forward: one fused pallas_call, everything VMEM-resident ----------------
@jax.jit
def transformer_encoder_forward(x, pk):
    patches = extract_patches(x, PATCH_SIZE).reshape(BN, PATCH_DIM)   # (B*N, patch_dim)
    out_pad = pl.pallas_call(
        fused_forward_kernel,
        out_shape=jax.ShapeDtypeStruct((BATCH, OUT_PAD), jnp.float32),
    )(patches, pk["pos"], pk["patch_w"], pk["patch_b"],
      pk["wqkv"], pk["bqkv"], pk["wo"], pk["bo"],
      pk["ln1_g"], pk["ln1_b"], pk["w1"], pk["b1"], pk["w2"], pk["b2"],
      pk["ln2_g"], pk["ln2_b"],
      pk["head_g"], pk["head_b"], pk["head_w"], pk["head_bias"])
    return out_pad[:, :4]


if __name__ == "__main__":
    key = jax.random.PRNGKey(0)
    k_x, k_p = jax.random.split(key)
    x = jax.random.normal(k_x, (BATCH, CHANNELS, IMAGE_SIZE, IMAGE_SIZE), jnp.float32)
    params = init_params(k_p)
    packed = pack_params(params)

    out = transformer_encoder_forward(x, packed)
    jax.block_until_ready(out)
    assert out.shape == (BATCH, 4), out.shape
    print("KERNEL_OK")
</pallas_src>

<mosaic_0001>
module attributes {stable_mosaic.version = 11 : i64} {
  func.func @fused_forward_kernel(%arg0: memref<32x192xf32, #tpu.memory_space<vmem>>, %arg1: memref<32x128xf32, #tpu.memory_space<vmem>>, %arg2: memref<192x128xbf16, #tpu.memory_space<vmem>>, %arg3: memref<1x128xf32, #tpu.memory_space<vmem>>, %arg4: memref<2x128x384xbf16, #tpu.memory_space<vmem>>, %arg5: memref<2x1x384xf32, #tpu.memory_space<vmem>>, %arg6: memref<2x128x128xbf16, #tpu.memory_space<vmem>>, %arg7: memref<2x1x128xf32, #tpu.memory_space<vmem>>, %arg8: memref<2x1x128xf32, #tpu.memory_space<vmem>>, %arg9: memref<2x1x128xf32, #tpu.memory_space<vmem>>, %arg10: memref<2x128x256xbf16, #tpu.memory_space<vmem>>, %arg11: memref<2x1x256xf32, #tpu.memory_space<vmem>>, %arg12: memref<2x256x128xbf16, #tpu.memory_space<vmem>>, %arg13: memref<2x1x128xf32, #tpu.memory_space<vmem>>, %arg14: memref<2x1x128xf32, #tpu.memory_space<vmem>>, %arg15: memref<2x1x128xf32, #tpu.memory_space<vmem>>, %arg16: memref<1x128xf32, #tpu.memory_space<vmem>>, %arg17: memref<1x128xf32, #tpu.memory_space<vmem>>, %arg18: memref<128x128xf32, #tpu.memory_space<vmem>>, %arg19: memref<1x128xf32, #tpu.memory_space<vmem>>, %arg20: memref<2x128xf32, #tpu.memory_space<vmem>>) attributes {dimension_semantics = [], scalar_prefetch = 0 : i64, scratch_operands = 0 : i64, tpu.core_type = #tpu.core_type<tc>} {
    %c0 = arith.constant 0 : index
    %c0_0 = arith.constant 0 : index
    %0 = vector.load %arg0[%c0, %c0_0] : memref<32x192xf32, #tpu.memory_space<vmem>>, vector<32x192xf32>
    %1 = arith.truncf %0 : vector<32x192xf32> to vector<32x192xbf16>
    %c0_1 = arith.constant 0 : index
    %c0_2 = arith.constant 0 : index
    %2 = vector.load %arg2[%c0_1, %c0_2] : memref<192x128xbf16, #tpu.memory_space<vmem>>, vector<192x128xbf16>
    %cst = arith.constant dense<0.000000e+00> : vector<32x128xf32>
    %3 = tpu.matmul %1, %2, %cst {dimension_numbers = #tpu.dot_dimension_numbers<[1], [0], [0], [1], [0, 0, 1, 1], [], []>} : vector<32x192xbf16>, vector<192x128xbf16>, vector<32x128xf32> -> vector<32x128xf32>
    %c0_3 = arith.constant 0 : index
    %c0_4 = arith.constant 0 : index
    %4 = vector.load %arg3[%c0_3, %c0_4] : memref<1x128xf32, #tpu.memory_space<vmem>>, vector<1x128xf32>
    %5 = vector.broadcast %4 : vector<1x128xf32> to vector<32x128xf32>
    %6 = arith.addf %3, %5 : vector<32x128xf32>
    %c0_5 = arith.constant 0 : index
    %c0_6 = arith.constant 0 : index
    %7 = vector.load %arg1[%c0_5, %c0_6] : memref<32x128xf32, #tpu.memory_space<vmem>>, vector<32x128xf32>
    %8 = arith.addf %6, %7 : vector<32x128xf32>
    %9 = arith.truncf %8 : vector<32x128xf32> to vector<32x128xbf16>
    %c0_7 = arith.constant 0 : index
    %c0_8 = arith.constant 0 : index
    %c0_9 = arith.constant 0 : index
    %10 = vector.load %arg4[%c0_7, %c0_8, %c0_9] : memref<2x128x384xbf16, #tpu.memory_space<vmem>>, vector<1x128x384xbf16>
    %11 = vector.shape_cast %10 : vector<1x128x384xbf16> to vector<128x384xbf16>
    %cst_10 = arith.constant dense<0.000000e+00> : vector<32x384xf32>
    %12 = tpu.matmul %9, %11, %cst_10 {dimension_numbers = #tpu.dot_dimension_numbers<[1], [0], [0], [1], [0, 0, 1, 1], [], []>} : vector<32x128xbf16>, vector<128x384xbf16>, vector<32x384xf32> -> vector<32x384xf32>
    %c0_11 = arith.constant 0 : index
    %c0_12 = arith.constant 0 : index
    %c0_13 = arith.constant 0 : index
    %13 = vector.load %arg5[%c0_11, %c0_12, %c0_13] : memref<2x1x384xf32, #tpu.memory_space<vmem>>, vector<1x1x384xf32>
    %14 = vector.shape_cast %13 : vector<1x1x384xf32> to vector<1x384xf32>
    %15 = vector.broadcast %14 : vector<1x384xf32> to vector<32x384xf32>
    %16 = arith.addf %12, %15 : vector<32x384xf32>
    %17 = arith.truncf %16 : vector<32x384xf32> to vector<32x384xbf16>
    %18 = vector.extract_strided_slice %17 {offsets = [0, 0], sizes = [32, 128], strides = [1, 1]} : vector<32x384xbf16> to vector<32x128xbf16>
    %19 = vector.shape_cast %18 : vector<32x128xbf16> to vector<2x16x128xbf16>
    %20 = vector.extract_strided_slice %17 {offsets = [0, 128], sizes = [32, 128], strides = [1, 1]} : vector<32x384xbf16> to vector<32x128xbf16>
    %21 = vector.shape_cast %20 : vector<32x128xbf16> to vector<2x16x128xbf16>
    %22 = vector.extract_strided_slice %17 {offsets = [0, 256], sizes = [32, 128], strides = [1, 1]} : vector<32x384xbf16> to vector<32x128xbf16>
    %23 = vector.shape_cast %22 : vector<32x128xbf16> to vector<2x16x128xbf16>
    %24 = vector.extract_strided_slice %19 {offsets = [0, 0, 0], sizes = [2, 16, 32], strides = [1, 1, 1]} : vector<2x16x128xbf16> to vector<2x16x32xbf16>
    %25 = vector.extract_strided_slice %21 {offsets = [0, 0, 0], sizes = [2, 16, 32], strides = [1, 1, 1]} : vector<2x16x128xbf16> to vector<2x16x32xbf16>
    "tpu.trace_start"() <{level = 10 : i32, message = "bqd,bkd->bqk"}> : () -> ()
    %cst_14 = arith.constant dense<0.000000e+00> : vector<2x16x16xf32>
    %26 = tpu.matmul %24, %25, %cst_14 {dimension_numbers = #tpu.dot_dimension_numbers<[2], [2], [1], [1], [0, 0, 0, 1, 1, 1], [0], [0]>} : vector<2x16x32xbf16>, vector<2x16x32xbf16>, vector<2x16x16xf32> -> vector<2x16x16xf32>
    "tpu.trace_stop"() : () -> ()
    %cst_15 = arith.constant dense<0xFF800000> : vector<2x16xf32>
    %27 = vector.multi_reduction <maximumf>, %26, %cst_15 [2] : vector<2x16x16xf32> to vector<2x16xf32>
    %28 = vector.shape_cast %27 : vector<2x16xf32> to vector<2x16x1xf32>
    %29 = vector.broadcast %28 : vector<2x16x1xf32> to vector<2x16x16xf32>
    %30 = arith.subf %26, %29 : vector<2x16x16xf32>
    %31 = math.exp %30 : vector<2x16x16xf32>
    %cst_16 = arith.constant dense<0.000000e+00> : vector<2x16xf32>
    %32 = vector.multi_reduction <add>, %31, %cst_16 [2] : vector<2x16x16xf32> to vector<2x16xf32>
    %33 = vector.shape_cast %32 : vector<2x16xf32> to vector<2x16x1xf32>
    %34 = tpu.reciprocal %33 {approx = true} : vector<2x16x1xf32> -> vector<2x16x1xf32>
    %35 = vector.broadcast %34 : vector<2x16x1xf32> to vector<2x16x16xf32>
    %36 = arith.mulf %31, %35 : vector<2x16x16xf32>
    %37 = arith.truncf %36 : vector<2x16x16xf32> to vector<2x16x16xbf16>
    %38 = vector.extract_strided_slice %23 {offsets = [0, 0, 0], sizes = [2, 16, 32], strides = [1, 1, 1]} : vector<2x16x128xbf16> to vector<2x16x32xbf16>
    "tpu.trace_start"() <{level = 10 : i32, message = "bqk,bkd->bqd"}> : () -> ()
    %cst_17 = arith.constant dense<0.000000e+00> : vector<2x16x32xf32>
    %39 = tpu.matmul %37, %38, %cst_17 {dimension_numbers = #tpu.dot_dimension_numbers<[2], [1], [1], [2], [0, 0, 0, 1, 1, 2], [0], [0]>} : vector<2x16x16xbf16>, vector<2x16x32xbf16>, vector<2x16x32xf32> -> vector<2x16x32xf32>
    "tpu.trace_stop"() : () -> ()
    %40 = vector.extract_strided_slice %19 {offsets = [0, 0, 32], sizes = [2, 16, 32], strides = [1, 1, 1]} : vector<2x16x128xbf16> to vector<2x16x32xbf16>
    %41 = vector.extract_strided_slice %21 {offsets = [0, 0, 32], sizes = [2, 16, 32], strides = [1, 1, 1]} : vector<2x16x128xbf16> to vector<2x16x32xbf16>
    "tpu.trace_start"() <{level = 10 : i32, message = "bqd,bkd->bqk"}> : () -> ()
    %cst_18 = arith.constant dense<0.000000e+00> : vector<2x16x16xf32>
    %42 = tpu.matmul %40, %41, %cst_18 {dimension_numbers = #tpu.dot_dimension_numbers<[2], [2], [1], [1], [0, 0, 0, 1, 1, 1], [0], [0]>} : vector<2x16x32xbf16>, vector<2x16x32xbf16>, vector<2x16x16xf32> -> vector<2x16x16xf32>
    "tpu.trace_stop"() : () -> ()
    %cst_19 = arith.constant dense<0xFF800000> : vector<2x16xf32>
    %43 = vector.multi_reduction <maximumf>, %42, %cst_19 [2] : vector<2x16x16xf32> to vector<2x16xf32>
    %44 = vector.shape_cast %43 : vector<2x16xf32> to vector<2x16x1xf32>
    %45 = vector.broadcast %44 : vector<2x16x1xf32> to vector<2x16x16xf32>
    %46 = arith.subf %42, %45 : vector<2x16x16xf32>
    %47 = math.exp %46 : vector<2x16x16xf32>
    %cst_20 = arith.constant dense<0.000000e+00> : vector<2x16xf32>
    %48 = vector.multi_reduction <add>, %47, %cst_20 [2] : vector<2x16x16xf32> to vector<2x16xf32>
    %49 = vector.shape_cast %48 : vector<2x16xf32> to vector<2x16x1xf32>
    %50 = tpu.reciprocal %49 {approx = true} : vector<2x16x1xf32> -> vector<2x16x1xf32>
    %51 = vector.broadcast %50 : vector<2x16x1xf32> to vector<2x16x16xf32>
    %52 = arith.mulf %47, %51 : vector<2x16x16xf32>
    %53 = arith.truncf %52 : vector<2x16x16xf32> to vector<2x16x16xbf16>
    %54 = vector.extract_strided_slice %23 {offsets = [0, 0, 32], sizes = [2, 16, 32], strides = [1, 1, 1]} : vector<2x16x128xbf16> to vector<2x16x32xbf16>
    "tpu.trace_start"() <{level = 10 : i32, message = "bqk,bkd->bqd"}> : () -> ()
    %cst_21 = arith.constant dense<0.000000e+00> : vector<2x16x32xf32>
    %55 = tpu.matmul %53, %54, %cst_21 {dimension_numbers = #tpu.dot_dimension_numbers<[2], [1], [1], [2], [0, 0, 0, 1, 1, 2], [0], [0]>} : vector<2x16x16xbf16>, vector<2x16x32xbf16>, vector<2x16x32xf32> -> vector<2x16x32xf32>
    "tpu.trace_stop"() : () -> ()
    %56 = vector.extract_strided_slice %19 {offsets = [0, 0, 64], sizes = [2, 16, 32], strides = [1, 1, 1]} : vector<2x16x128xbf16> to vector<2x16x32xbf16>
    %57 = vector.extract_strided_slice %21 {offsets = [0, 0, 64], sizes = [2, 16, 32], strides = [1, 1, 1]} : vector<2x16x128xbf16> to vector<2x16x32xbf16>
    "tpu.trace_start"() <{level = 10 : i32, message = "bqd,bkd->bqk"}> : () -> ()
    %cst_22 = arith.constant dense<0.000000e+00> : vector<2x16x16xf32>
    %58 = tpu.matmul %56, %57, %cst_22 {dimension_numbers = #tpu.dot_dimension_numbers<[2], [2], [1], [1], [0, 0, 0, 1, 1, 1], [0], [0]>} : vector<2x16x32xbf16>, vector<2x16x32xbf16>, vector<2x16x16xf32> -> vector<2x16x16xf32>
    "tpu.trace_stop"() : () -> ()
    %cst_23 = arith.constant dense<0xFF800000> : vector<2x16xf32>
    %59 = vector.multi_reduction <maximumf>, %58, %cst_23 [2] : vector<2x16x16xf32> to vector<2x16xf32>
    %60 = vector.shape_cast %59 : vector<2x16xf32> to vector<2x16x1xf32>
    %61 = vector.broadcast %60 : vector<2x16x1xf32> to vector<2x16x16xf32>
    %62 = arith.subf %58, %61 : vector<2x16x16xf32>
    %63 = math.exp %62 : vector<2x16x16xf32>
    %cst_24 = arith.constant dense<0.000000e+00> : vector<2x16xf32>
    %64 = vector.multi_reduction <add>, %63, %cst_24 [2] : vector<2x16x16xf32> to vector<2x16xf32>
    %65 = vector.shape_cast %64 : vector<2x16xf32> to vector<2x16x1xf32>
    %66 = tpu.reciprocal %65 {approx = true} : vector<2x16x1xf32> -> vector<2x16x1xf32>
    %67 = vector.broadcast %66 : vector<2x16x1xf32> to vector<2x16x16xf32>
    %68 = arith.mulf %63, %67 : vector<2x16x16xf32>
    %69 = arith.truncf %68 : vector<2x16x16xf32> to vector<2x16x16xbf16>
    %70 = vector.extract_strided_slice %23 {offsets = [0, 0, 64], sizes = [2, 16, 32], strides = [1, 1, 1]} : vector<2x16x128xbf16> to vector<2x16x32xbf16>
    "tpu.trace_start"() <{level = 10 : i32, message = "bqk,bkd->bqd"}> : () -> ()
    %cst_25 = arith.constant dense<0.000000e+00> : vector<2x16x32xf32>
    %71 = tpu.matmul %69, %70, %cst_25 {dimension_numbers = #tpu.dot_dimension_numbers<[2], [1], [1], [2], [0, 0, 0, 1, 1, 2], [0], [0]>} : vector<2x16x16xbf16>, vector<2x16x32xbf16>, vector<2x16x32xf32> -> vector<2x16x32xf32>
    "tpu.trace_stop"() : () -> ()
    %72 = vector.extract_strided_slice %19 {offsets = [0, 0, 96], sizes = [2, 16, 32], strides = [1, 1, 1]} : vector<2x16x128xbf16> to vector<2x16x32xbf16>
    %73 = vector.extract_strided_slice %21 {offsets = [0, 0, 96], sizes = [2, 16, 32], strides = [1, 1, 1]} : vector<2x16x128xbf16> to vector<2x16x32xbf16>
    "tpu.trace_start"() <{level = 10 : i32, message = "bqd,bkd->bqk"}> : () -> ()
    %cst_26 = arith.constant dense<0.000000e+00> : vector<2x16x16xf32>
    %74 = tpu.matmul %72, %73, %cst_26 {dimension_numbers = #tpu.dot_dimension_numbers<[2], [2], [1], [1], [0, 0, 0, 1, 1, 1], [0], [0]>} : vector<2x16x32xbf16>, vector<2x16x32xbf16>, vector<2x16x16xf32> -> vector<2x16x16xf32>
    "tpu.trace_stop"() : () -> ()
    %cst_27 = arith.constant dense<0xFF800000> : vector<2x16xf32>
    %75 = vector.multi_reduction <maximumf>, %74, %cst_27 [2] : vector<2x16x16xf32> to vector<2x16xf32>
    %76 = vector.shape_cast %75 : vector<2x16xf32> to vector<2x16x1xf32>
    %77 = vector.broadcast %76 : vector<2x16x1xf32> to vector<2x16x16xf32>
    %78 = arith.subf %74, %77 : vector<2x16x16xf32>
    %79 = math.exp %78 : vector<2x16x16xf32>
    %cst_28 = arith.constant dense<0.000000e+00> : vector<2x16xf32>
    %80 = vector.multi_reduction <add>, %79, %cst_28 [2] : vector<2x16x16xf32> to vector<2x16xf32>
    %81 = vector.shape_cast %80 : vector<2x16xf32> to vector<2x16x1xf32>
    %82 = tpu.reciprocal %81 {approx = true} : vector<2x16x1xf32> -> vector<2x16x1xf32>
    %83 = vector.broadcast %82 : vector<2x16x1xf32> to vector<2x16x16xf32>
    %84 = arith.mulf %79, %83 : vector<2x16x16xf32>
    %85 = arith.truncf %84 : vector<2x16x16xf32> to vector<2x16x16xbf16>
    %86 = vector.extract_strided_slice %23 {offsets = [0, 0, 96], sizes = [2, 16, 32], strides = [1, 1, 1]} : vector<2x16x128xbf16> to vector<2x16x32xbf16>
    "tpu.trace_start"() <{level = 10 : i32, message = "bqk,bkd->bqd"}> : () -> ()
    %cst_29 = arith.constant dense<0.000000e+00> : vector<2x16x32xf32>
    %87 = tpu.matmul %85, %86, %cst_29 {dimension_numbers = #tpu.dot_dimension_numbers<[2], [1], [1], [2], [0, 0, 0, 1, 1, 2], [0], [0]>} : vector<2x16x16xbf16>, vector<2x16x32xbf16>, vector<2x16x32xf32> -> vector<2x16x32xf32>
    "tpu.trace_stop"() : () -> ()
    %88 = tpu.concatenate %39, %55, %71, %87 in 2 : vector<2x16x32xf32>, vector<2x16x32xf32>, vector<2x16x32xf32>, vector<2x16x32xf32> -> vector<2x16x128xf32>
    %89 = vector.shape_cast %88 : vector<2x16x128xf32> to vector<32x128xf32>
    %90 = arith.truncf %89 : vector<32x128xf32> to vector<32x128xbf16>
    %c0_30 = arith.constant 0 : index
    %c0_31 = arith.constant 0 : index
    %c0_32 = arith.constant 0 : index
    %91 = vector.load %arg6[%c0_30, %c0_31, %c0_32] : memref<2x128x128xbf16, #tpu.memory_space<vmem>>, vector<1x128x128xbf16>
    %92 = vector.shape_cast %91 : vector<1x128x128xbf16> to vector<128x128xbf16>
    %cst_33 = arith.constant dense<0.000000e+00> : vector<32x128xf32>
    %93 = tpu.matmul %90, %92, %cst_33 {dimension_numbers = #tpu.dot_dimension_numbers<[1], [0], [0], [1], [0, 0, 1, 1], [], []>} : vector<32x128xbf16>, vector<128x128xbf16>, vector<32x128xf32> -> vector<32x128xf32>
    %c0_34 = arith.constant 0 : index
    %c0_35 = arith.constant 0 : index
    %c0_36 = arith.constant 0 : index
    %94 = vector.load %arg7[%c0_34, %c0_35, %c0_36] : memref<2x1x128xf32, #tpu.memory_space<vmem>>, vector<1x1x128xf32>
    %95 = vector.shape_cast %94 : vector<1x1x128xf32> to vector<1x128xf32>
    %96 = vector.broadcast %95 : vector<1x128xf32> to vector<32x128xf32>
    %97 = arith.addf %93, %96 : vector<32x128xf32>
    %98 = arith.addf %8, %97 : vector<32x128xf32>
    %c0_37 = arith.constant 0 : index
    %c0_38 = arith.constant 0 : index
    %c0_39 = arith.constant 0 : index
    %99 = vector.load %arg8[%c0_37, %c0_38, %c0_39] : memref<2x1x128xf32, #tpu.memory_space<vmem>>, vector<1x1x128xf32>
    %100 = vector.shape_cast %99 : vector<1x1x128xf32> to vector<1x128xf32>
    %c0_40 = arith.constant 0 : index
    %c0_41 = arith.constant 0 : index
    %c0_42 = arith.constant 0 : index
    %101 = vector.load %arg9[%c0_40, %c0_41, %c0_42] : memref<2x1x128xf32, #tpu.memory_space<vmem>>, vector<1x1x128xf32>
    %102 = vector.shape_cast %101 : vector<1x1x128xf32> to vector<1x128xf32>
    %cst_43 = arith.constant dense<0.000000e+00> : vector<32xf32>
    %103 = vector.multi_reduction <add>, %98, %cst_43 [1] : vector<32x128xf32> to vector<32xf32>
    %104 = vector.shape_cast %103 : vector<32xf32> to vector<32x1xf32>
    %cst_44 = arith.constant 1.280000e+02 : f32
    %105 = vector.broadcast %cst_44 : f32 to vector<32x1xf32>
    %106 = arith.divf %104, %105 : vector<32x1xf32>
    %107 = vector.broadcast %106 : vector<32x1xf32> to vector<32x128xf32>
    %108 = arith.subf %98, %107 : vector<32x128xf32>
    %109 = arith.mulf %108, %108 : vector<32x128xf32>
    %cst_45 = arith.constant dense<0.000000e+00> : vector<32xf32>
    %110 = vector.multi_reduction <add>, %109, %cst_45 [1] : vector<32x128xf32> to vector<32xf32>
    %111 = vector.shape_cast %110 : vector<32xf32> to vector<32x1xf32>
    %cst_46 = arith.constant 1.280000e+02 : f32
    %112 = vector.broadcast %cst_46 : f32 to vector<32x1xf32>
    %113 = arith.divf %111, %112 : vector<32x1xf32>
    %114 = vector.broadcast %106 : vector<32x1xf32> to vector<32x128xf32>
    %115 = arith.subf %98, %114 : vector<32x128xf32>
    %cst_47 = arith.constant 9.99999974E-6 : f32
    %116 = vector.broadcast %cst_47 : f32 to vector<32x1xf32>
    %117 = arith.addf %113, %116 : vector<32x1xf32>
    %118 = math.rsqrt %117 : vector<32x1xf32>
    %119 = vector.broadcast %118 : vector<32x1xf32> to vector<32x128xf32>
    %120 = arith.mulf %115, %119 : vector<32x128xf32>
    %121 = vector.broadcast %100 : vector<1x128xf32> to vector<32x128xf32>
    %122 = arith.mulf %120, %121 : vector<32x128xf32>
    %123 = vector.broadcast %102 : vector<1x128xf32> to vector<32x128xf32>
    %124 = arith.addf %122, %123 : vector<32x128xf32>
    %125 = arith.truncf %124 : vector<32x128xf32> to vector<32x128xbf16>
    %c0_48 = arith.constant 0 : index
    %c0_49 = arith.constant 0 : index
    %c0_50 = arith.constant 0 : index
    %126 = vector.load %arg10[%c0_48, %c0_49, %c0_50] : memref<2x128x256xbf16, #tpu.memory_space<vmem>>, vector<1x128x256xbf16>
    %127 = vector.shape_cast %126 : vector<1x128x256xbf16> to vector<128x256xbf16>
    %cst_51 = arith.constant dense<0.000000e+00> : vector<32x256xf32>
    %128 = tpu.matmul %125, %127, %cst_51 {dimension_numbers = #tpu.dot_dimension_numbers<[1], [0], [0], [1], [0, 0, 1, 1], [], []>} : vector<32x128xbf16>, vector<128x256xbf16>, vector<32x256xf32> -> vector<32x256xf32>
    %c0_52 = arith.constant 0 : index
    %c0_53 = arith.constant 0 : index
    %c0_54 = arith.constant 0 : index
    %129 = vector.load %arg11[%c0_52, %c0_53, %c0_54] : memref<2x1x256xf32, #tpu.memory_space<vmem>>, vector<1x1x256xf32>
    %130 = vector.shape_cast %129 : vector<1x1x256xf32> to vector<1x256xf32>
    %131 = vector.broadcast %130 : vector<1x256xf32> to vector<32x256xf32>
    %132 = arith.addf %128, %131 : vector<32x256xf32>
    %cst_55 = arith.constant 0.000000e+00 : f32
    %133 = vector.broadcast %cst_55 : f32 to vector<32x256xf32>
    %134 = arith.maximumf %132, %133 : vector<32x256xf32>
    %135 = arith.truncf %134 : vector<32x256xf32> to vector<32x256xbf16>
    %c0_56 = arith.constant 0 : index
    %c0_57 = arith.constant 0 : index
    %c0_58 = arith.constant 0 : index
    %136 = vector.load %arg12[%c0_56, %c0_57, %c0_58] : memref<2x256x128xbf16, #tpu.memory_space<vmem>>, vector<1x256x128xbf16>
    %137 = vector.shape_cast %136 : vector<1x256x128xbf16> to vector<256x128xbf16>
    %cst_59 = arith.constant dense<0.000000e+00> : vector<32x128xf32>
    %138 = tpu.matmul %135, %137, %cst_59 {dimension_numbers = #tpu.dot_dimension_numbers<[1], [0], [0], [1], [0, 0, 1, 1], [], []>} : vector<32x256xbf16>, vector<256x128xbf16>, vector<32x128xf32> -> vector<32x128xf32>
    %c0_60 = arith.constant 0 : index
    %c0_61 = arith.constant 0 : index
    %c0_62 = arith.constant 0 : index
    %139 = vector.load %arg13[%c0_60, %c0_61, %c0_62] : memref<2x1x128xf32, #tpu.memory_space<vmem>>, vector<1x1x128xf32>
    %140 = vector.shape_cast %139 : vector<1x1x128xf32> to vector<1x128xf32>
    %141 = vector.broadcast %140 : vector<1x128xf32> to vector<32x128xf32>
    %142 = arith.addf %138, %141 : vector<32x128xf32>
    %143 = arith.addf %124, %142 : vector<32x128xf32>
    %c0_63 = arith.constant 0 : index
    %c0_64 = arith.constant 0 : index
    %c0_65 = arith.constant 0 : index
    %144 = vector.load %arg14[%c0_63, %c0_64, %c0_65] : memref<2x1x128xf32, #tpu.memory_space<vmem>>, vector<1x1x128xf32>
    %145 = vector.shape_cast %144 : vector<1x1x128xf32> to vector<1x128xf32>
    %c0_66 = arith.constant 0 : index
    %c0_67 = arith.constant 0 : index
    %c0_68 = arith.constant 0 : index
    %146 = vector.load %arg15[%c0_66, %c0_67, %c0_68] : memref<2x1x128xf32, #tpu.memory_space<vmem>>, vector<1x1x128xf32>
    %147 = vector.shape_cast %146 : vector<1x1x128xf32> to vector<1x128xf32>
    %cst_69 = arith.constant dense<0.000000e+00> : vector<32xf32>
    %148 = vector.multi_reduction <add>, %143, %cst_69 [1] : vector<32x128xf32> to vector<32xf32>
    %149 = vector.shape_cast %148 : vector<32xf32> to vector<32x1xf32>
    %cst_70 = arith.constant 1.280000e+02 : f32
    %150 = vector.broadcast %cst_70 : f32 to vector<32x1xf32>
    %151 = arith.divf %149, %150 : vector<32x1xf32>
    %152 = vector.broadcast %151 : vector<32x1xf32> to vector<32x128xf32>
    %153 = arith.subf %143, %152 : vector<32x128xf32>
    %154 = arith.mulf %153, %153 : vector<32x128xf32>
    %cst_71 = arith.constant dense<0.000000e+00> : vector<32xf32>
    %155 = vector.multi_reduction <add>, %154, %cst_71 [1] : vector<32x128xf32> to vector<32xf32>
    %156 = vector.shape_cast %155 : vector<32xf32> to vector<32x1xf32>
    %cst_72 = arith.constant 1.280000e+02 : f32
    %157 = vector.broadcast %cst_72 : f32 to vector<32x1xf32>
    %158 = arith.divf %156, %157 : vector<32x1xf32>
    %159 = vector.broadcast %151 : vector<32x1xf32> to vector<32x128xf32>
    %160 = arith.subf %143, %159 : vector<32x128xf32>
    %cst_73 = arith.constant 9.99999974E-6 : f32
    %161 = vector.broadcast %cst_73 : f32 to vector<32x1xf32>
    %162 = arith.addf %158, %161 : vector<32x1xf32>
    %163 = math.rsqrt %162 : vector<32x1xf32>
    %164 = vector.broadcast %163 : vector<32x1xf32> to vector<32x128xf32>
    %165 = arith.mulf %160, %164 : vector<32x128xf32>
    %166 = vector.broadcast %145 : vector<1x128xf32> to vector<32x128xf32>
    %167 = arith.mulf %165, %166 : vector<32x128xf32>
    %168 = vector.broadcast %147 : vector<1x128xf32> to vector<32x128xf32>
    %169 = arith.addf %167, %168 : vector<32x128xf32>
    %170 = arith.truncf %169 : vector<32x128xf32> to vector<32x128xbf16>
    %c1 = arith.constant 1 : index
    %c0_74 = arith.constant 0 : index
    %c0_75 = arith.constant 0 : index
    %171 = vector.load %arg4[%c1, %c0_74, %c0_75] : memref<2x128x384xbf16, #tpu.memory_space<vmem>>, vector<1x128x384xbf16>
    %172 = vector.shape_cast %171 : vector<1x128x384xbf16> to vector<128x384xbf16>
    %cst_76 = arith.constant dense<0.000000e+00> : vector<32x384xf32>
    %173 = tpu.matmul %170, %172, %cst_76 {dimension_numbers = #tpu.dot_dimension_numbers<[1], [0], [0], [1], [0, 0, 1, 1], [], []>} : vector<32x128xbf16>, vector<128x384xbf16>, vector<32x384xf32> -> vector<32x384xf32>
    %c1_77 = arith.constant 1 : index
    %c0_78 = arith.constant 0 : index
    %c0_79 = arith.constant 0 : index
    %174 = vector.load %arg5[%c1_77, %c0_78, %c0_79] : memref<2x1x384xf32, #tpu.memory_space<vmem>>, vector<1x1x384xf32>
    %175 = vector.shape_cast %174 : vector<1x1x384xf32> to vector<1x384xf32>
    %176 = vector.broadcast %175 : vector<1x384xf32> to vector<32x384xf32>
    %177 = arith.addf %173, %176 : vector<32x384xf32>
    %178 = arith.truncf %177 : vector<32x384xf32> to vector<32x384xbf16>
    %179 = vector.extract_strided_slice %178 {offsets = [0, 0], sizes = [32, 128], strides = [1, 1]} : vector<32x384xbf16> to vector<32x128xbf16>
    %180 = vector.shape_cast %179 : vector<32x128xbf16> to vector<2x16x128xbf16>
    %181 = vector.extract_strided_slice %178 {offsets = [0, 128], sizes = [32, 128], strides = [1, 1]} : vector<32x384xbf16> to vector<32x128xbf16>
    %182 = vector.shape_cast %181 : vector<32x128xbf16> to vector<2x16x128xbf16>
    %183 = vector.extract_strided_slice %178 {offsets = [0, 256], sizes = [32, 128], strides = [1, 1]} : vector<32x384xbf16> to vector<32x128xbf16>
    %184 = vector.shape_cast %183 : vector<32x128xbf16> to vector<2x16x128xbf16>
    %185 = vector.extract_strided_slice %180 {offsets = [0, 0, 0], sizes = [2, 16, 32], strides = [1, 1, 1]} : vector<2x16x128xbf16> to vector<2x16x32xbf16>
    %186 = vector.extract_strided_slice %182 {offsets = [0, 0, 0], sizes = [2, 16, 32], strides = [1, 1, 1]} : vector<2x16x128xbf16> to vector<2x16x32xbf16>
    "tpu.trace_start"() <{level = 10 : i32, message = "bqd,bkd->bqk"}> : () -> ()
    %cst_80 = arith.constant dense<0.000000e+00> : vector<2x16x16xf32>
    %187 = tpu.matmul %185, %186, %cst_80 {dimension_numbers = #tpu.dot_dimension_numbers<[2], [2], [1], [1], [0, 0, 0, 1, 1, 1], [0], [0]>} : vector<2x16x32xbf16>, vector<2x16x32xbf16>, vector<2x16x16xf32> -> vector<2x16x16xf32>
    "tpu.trace_stop"() : () -> ()
    %cst_81 = arith.constant dense<0xFF800000> : vector<2x16xf32>
    %188 = vector.multi_reduction <maximumf>, %187, %cst_81 [2] : vector<2x16x16xf32> to vector<2x16xf32>
    %189 = vector.shape_cast %188 : vector<2x16xf32> to vector<2x16x1xf32>
    %190 = vector.broadcast %189 : vector<2x16x1xf32> to vector<2x16x16xf32>
    %191 = arith.subf %187, %190 : vector<2x16x16xf32>
    %192 = math.exp %191 : vector<2x16x16xf32>
    %cst_82 = arith.constant dense<0.000000e+00> : vector<2x16xf32>
    %193 = vector.multi_reduction <add>, %192, %cst_82 [2] : vector<2x16x16xf32> to vector<2x16xf32>
    %194 = vector.shape_cast %193 : vector<2x16xf32> to vector<2x16x1xf32>
    %195 = tpu.reciprocal %194 {approx = true} : vector<2x16x1xf32> -> vector<2x16x1xf32>
    %196 = vector.broadcast %195 : vector<2x16x1xf32> to vector<2x16x16xf32>
    %197 = arith.mulf %192, %196 : vector<2x16x16xf32>
    %198 = arith.truncf %197 : vector<2x16x16xf32> to vector<2x16x16xbf16>
    %199 = vector.extract_strided_slice %184 {offsets = [0, 0, 0], sizes = [2, 16, 32], strides = [1, 1, 1]} : vector<2x16x128xbf16> to vector<2x16x32xbf16>
    "tpu.trace_start"() <{level = 10 : i32, message = "bqk,bkd->bqd"}> : () -> ()
    %cst_83 = arith.constant dense<0.000000e+00> : vector<2x16x32xf32>
    %200 = tpu.matmul %198, %199, %cst_83 {dimension_numbers = #tpu.dot_dimension_numbers<[2], [1], [1], [2], [0, 0, 0, 1, 1, 2], [0], [0]>} : vector<2x16x16xbf16>, vector<2x16x32xbf16>, vector<2x16x32xf32> -> vector<2x16x32xf32>
    "tpu.trace_stop"() : () -> ()
    %201 = vector.extract_strided_slice %180 {offsets = [0, 0, 32], sizes = [2, 16, 32], strides = [1, 1, 1]} : vector<2x16x128xbf16> to vector<2x16x32xbf16>
    %202 = vector.extract_strided_slice %182 {offsets = [0, 0, 32], sizes = [2, 16, 32], strides = [1, 1, 1]} : vector<2x16x128xbf16> to vector<2x16x32xbf16>
    "tpu.trace_start"() <{level = 10 : i32, message = "bqd,bkd->bqk"}> : () -> ()
    %cst_84 = arith.constant dense<0.000000e+00> : vector<2x16x16xf32>
    %203 = tpu.matmul %201, %202, %cst_84 {dimension_numbers = #tpu.dot_dimension_numbers<[2], [2], [1], [1], [0, 0, 0, 1, 1, 1], [0], [0]>} : vector<2x16x32xbf16>, vector<2x16x32xbf16>, vector<2x16x16xf32> -> vector<2x16x16xf32>
    "tpu.trace_stop"() : () -> ()
    %cst_85 = arith.constant dense<0xFF800000> : vector<2x16xf32>
    %204 = vector.multi_reduction <maximumf>, %203, %cst_85 [2] : vector<2x16x16xf32> to vector<2x16xf32>
    %205 = vector.shape_cast %204 : vector<2x16xf32> to vector<2x16x1xf32>
    %206 = vector.broadcast %205 : vector<2x16x1xf32> to vector<2x16x16xf32>
    %207 = arith.subf %203, %206 : vector<2x16x16xf32>
    %208 = math.exp %207 : vector<2x16x16xf32>
    %cst_86 = arith.constant dense<0.000000e+00> : vector<2x16xf32>
    %209 = vector.multi_reduction <add>, %208, %cst_86 [2] : vector<2x16x16xf32> to vector<2x16xf32>
    %210 = vector.shape_cast %209 : vector<2x16xf32> to vector<2x16x1xf32>
    %211 = tpu.reciprocal %210 {approx = true} : vector<2x16x1xf32> -> vector<2x16x1xf32>
    %212 = vector.broadcast %211 : vector<2x16x1xf32> to vector<2x16x16xf32>
    %213 = arith.mulf %208, %212 : vector<2x16x16xf32>
    %214 = arith.truncf %213 : vector<2x16x16xf32> to vector<2x16x16xbf16>
    %215 = vector.extract_strided_slice %184 {offsets = [0, 0, 32], sizes = [2, 16, 32], strides = [1, 1, 1]} : vector<2x16x128xbf16> to vector<2x16x32xbf16>
    "tpu.trace_start"() <{level = 10 : i32, message = "bqk,bkd->bqd"}> : () -> ()
    %cst_87 = arith.constant dense<0.000000e+00> : vector<2x16x32xf32>
    %216 = tpu.matmul %214, %215, %cst_87 {dimension_numbers = #tpu.dot_dimension_numbers<[2], [1], [1], [2], [0, 0, 0, 1, 1, 2], [0], [0]>} : vector<2x16x16xbf16>, vector<2x16x32xbf16>, vector<2x16x32xf32> -> vector<2x16x32xf32>
    "tpu.trace_stop"() : () -> ()
    %217 = vector.extract_strided_slice %180 {offsets = [0, 0, 64], sizes = [2, 16, 32], strides = [1, 1, 1]} : vector<2x16x128xbf16> to vector<2x16x32xbf16>
    %218 = vector.extract_strided_slice %182 {offsets = [0, 0, 64], sizes = [2, 16, 32], strides = [1, 1, 1]} : vector<2x16x128xbf16> to vector<2x16x32xbf16>
    "tpu.trace_start"() <{level = 10 : i32, message = "bqd,bkd->bqk"}> : () -> ()
    %cst_88 = arith.constant dense<0.000000e+00> : vector<2x16x16xf32>
    %219 = tpu.matmul %217, %218, %cst_88 {dimension_numbers = #tpu.dot_dimension_numbers<[2], [2], [1], [1], [0, 0, 0, 1, 1, 1], [0], [0]>} : vector<2x16x32xbf16>, vector<2x16x32xbf16>, vector<2x16x16xf32> -> vector<2x16x16xf32>
    "tpu.trace_stop"() : () -> ()
    %cst_89 = arith.constant dense<0xFF800000> : vector<2x16xf32>
    %220 = vector.multi_reduction <maximumf>, %219, %cst_89 [2] : vector<2x16x16xf32> to vector<2x16xf32>
    %221 = vector.shape_cast %220 : vector<2x16xf32> to vector<2x16x1xf32>
    %222 = vector.broadcast %221 : vector<2x16x1xf32> to vector<2x16x16xf32>
    %223 = arith.subf %219, %222 : vector<2x16x16xf32>
    %224 = math.exp %223 : vector<2x16x16xf32>
    %cst_90 = arith.constant dense<0.000000e+00> : vector<2x16xf32>
    %225 = vector.multi_reduction <add>, %224, %cst_90 [2] : vector<2x16x16xf32> to vector<2x16xf32>
    %226 = vector.shape_cast %225 : vector<2x16xf32> to vector<2x16x1xf32>
    %227 = tpu.reciprocal %226 {approx = true} : vector<2x16x1xf32> -> vector<2x16x1xf32>
    %228 = vector.broadcast %227 : vector<2x16x1xf32> to vector<2x16x16xf32>
    %229 = arith.mulf %224, %228 : vector<2x16x16xf32>
    %230 = arith.truncf %229 : vector<2x16x16xf32> to vector<2x16x16xbf16>
    %231 = vector.extract_strided_slice %184 {offsets = [0, 0, 64], sizes = [2, 16, 32], strides = [1, 1, 1]} : vector<2x16x128xbf16> to vector<2x16x32xbf16>
    "tpu.trace_start"() <{level = 10 : i32, message = "bqk,bkd->bqd"}> : () -> ()
    %cst_91 = arith.constant dense<0.000000e+00> : vector<2x16x32xf32>
    %232 = tpu.matmul %230, %231, %cst_91 {dimension_numbers = #tpu.dot_dimension_numbers<[2], [1], [1], [2], [0, 0, 0, 1, 1, 2], [0], [0]>} : vector<2x16x16xbf16>, vector<2x16x32xbf16>, vector<2x16x32xf32> -> vector<2x16x32xf32>
    "tpu.trace_stop"() : () -> ()
    %233 = vector.extract_strided_slice %180 {offsets = [0, 0, 96], sizes = [2, 16, 32], strides = [1, 1, 1]} : vector<2x16x128xbf16> to vector<2x16x32xbf16>
    %234 = vector.extract_strided_slice %182 {offsets = [0, 0, 96], sizes = [2, 16, 32], strides = [1, 1, 1]} : vector<2x16x128xbf16> to vector<2x16x32xbf16>
    "tpu.trace_start"() <{level = 10 : i32, message = "bqd,bkd->bqk"}> : () -> ()
    %cst_92 = arith.constant dense<0.000000e+00> : vector<2x16x16xf32>
    %235 = tpu.matmul %233, %234, %cst_92 {dimension_numbers = #tpu.dot_dimension_numbers<[2], [2], [1], [1], [0, 0, 0, 1, 1, 1], [0], [0]>} : vector<2x16x32xbf16>, vector<2x16x32xbf16>, vector<2x16x16xf32> -> vector<2x16x16xf32>
    "tpu.trace_stop"() : () -> ()
    %cst_93 = arith.constant dense<0xFF800000> : vector<2x16xf32>
    %236 = vector.multi_reduction <maximumf>, %235, %cst_93 [2] : vector<2x16x16xf32> to vector<2x16xf32>
    %237 = vector.shape_cast %236 : vector<2x16xf32> to vector<2x16x1xf32>
    %238 = vector.broadcast %237 : vector<2x16x1xf32> to vector<2x16x16xf32>
    %239 = arith.subf %235, %238 : vector<2x16x16xf32>
    %240 = math.exp %239 : vector<2x16x16xf32>
    %cst_94 = arith.constant dense<0.000000e+00> : vector<2x16xf32>
    %241 = vector.multi_reduction <add>, %240, %cst_94 [2] : vector<2x16x16xf32> to vector<2x16xf32>
    %242 = vector.shape_cast %241 : vector<2x16xf32> to vector<2x16x1xf32>
    %243 = tpu.reciprocal %242 {approx = true} : vector<2x16x1xf32> -> vector<2x16x1xf32>
    %244 = vector.broadcast %243 : vector<2x16x1xf32> to vector<2x16x16xf32>
    %245 = arith.mulf %240, %244 : vector<2x16x16xf32>
    %246 = arith.truncf %245 : vector<2x16x16xf32> to vector<2x16x16xbf16>
    %247 = vector.extract_strided_slice %184 {offsets = [0, 0, 96], sizes = [2, 16, 32], strides = [1, 1, 1]} : vector<2x16x128xbf16> to vector<2x16x32xbf16>
    "tpu.trace_start"() <{level = 10 : i32, message = "bqk,bkd->bqd"}> : () -> ()
    %cst_95 = arith.constant dense<0.000000e+00> : vector<2x16x32xf32>
    %248 = tpu.matmul %246, %247, %cst_95 {dimension_numbers = #tpu.dot_dimension_numbers<[2], [1], [1], [2], [0, 0, 0, 1, 1, 2], [0], [0]>} : vector<2x16x16xbf16>, vector<2x16x32xbf16>, vector<2x16x32xf32> -> vector<2x16x32xf32>
    "tpu.trace_stop"() : () -> ()
    %249 = tpu.concatenate %200, %216, %232, %248 in 2 : vector<2x16x32xf32>, vector<2x16x32xf32>, vector<2x16x32xf32>, vector<2x16x32xf32> -> vector<2x16x128xf32>
    %250 = vector.shape_cast %249 : vector<2x16x128xf32> to vector<32x128xf32>
    %251 = arith.truncf %250 : vector<32x128xf32> to vector<32x128xbf16>
    %c1_96 = arith.constant 1 : index
    %c0_97 = arith.constant 0 : index
    %c0_98 = arith.constant 0 : index
    %252 = vector.load %arg6[%c1_96, %c0_97, %c0_98] : memref<2x128x128xbf16, #tpu.memory_space<vmem>>, vector<1x128x128xbf16>
    %253 = vector.shape_cast %252 : vector<1x128x128xbf16> to vector<128x128xbf16>
    %cst_99 = arith.constant dense<0.000000e+00> : vector<32x128xf32>
    %254 = tpu.matmul %251, %253, %cst_99 {dimension_numbers = #tpu.dot_dimension_numbers<[1], [0], [0], [1], [0, 0, 1, 1], [], []>} : vector<32x128xbf16>, vector<128x128xbf16>, vector<32x128xf32> -> vector<32x128xf32>
    %c1_100 = arith.constant 1 : index
    %c0_101 = arith.constant 0 : index
    %c0_102 = arith.constant 0 : index
    %255 = vector.load %arg7[%c1_100, %c0_101, %c0_102] : memref<2x1x128xf32, #tpu.memory_space<vmem>>, vector<1x1x128xf32>
    %256 = vector.shape_cast %255 : vector<1x1x128xf32> to vector<1x128xf32>
    %257 = vector.broadcast %256 : vector<1x128xf32> to vector<32x128xf32>
    %258 = arith.addf %254, %257 : vector<32x128xf32>
    %259 = arith.addf %169, %258 : vector<32x128xf32>
    %c1_103 = arith.constant 1 : index
    %c0_104 = arith.constant 0 : index
    %c0_105 = arith.constant 0 : index
    %260 = vector.load %arg8[%c1_103, %c0_104, %c0_105] : memref<2x1x128xf32, #tpu.memory_space<vmem>>, vector<1x1x128xf32>
    %261 = vector.shape_cast %260 : vector<1x1x128xf32> to vector<1x128xf32>
    %c1_106 = arith.constant 1 : index
    %c0_107 = arith.constant 0 : index
    %c0_108 = arith.constant 0 : index
    %262 = vector.load %arg9[%c1_106, %c0_107, %c0_108] : memref<2x1x128xf32, #tpu.memory_space<vmem>>, vector<1x1x128xf32>
    %263 = vector.shape_cast %262 : vector<1x1x128xf32> to vector<1x128xf32>
    %cst_109 = arith.constant dense<0.000000e+00> : vector<32xf32>
    %264 = vector.multi_reduction <add>, %259, %cst_109 [1] : vector<32x128xf32> to vector<32xf32>
    %265 = vector.shape_cast %264 : vector<32xf32> to vector<32x1xf32>
    %cst_110 = arith.constant 1.280000e+02 : f32
    %266 = vector.broadcast %cst_110 : f32 to vector<32x1xf32>
    %267 = arith.divf %265, %266 : vector<32x1xf32>
    %268 = vector.broadcast %267 : vector<32x1xf32> to vector<32x128xf32>
    %269 = arith.subf %259, %268 : vector<32x128xf32>
    %270 = arith.mulf %269, %269 : vector<32x128xf32>
    %cst_111 = arith.constant dense<0.000000e+00> : vector<32xf32>
    %271 = vector.multi_reduction <add>, %270, %cst_111 [1] : vector<32x128xf32> to vector<32xf32>
    %272 = vector.shape_cast %271 : vector<32xf32> to vector<32x1xf32>
    %cst_112 = arith.constant 1.280000e+02 : f32
    %273 = vector.broadcast %cst_112 : f32 to vector<32x1xf32>
    %274 = arith.divf %272, %273 : vector<32x1xf32>
    %275 = vector.broadcast %267 : vector<32x1xf32> to vector<32x128xf32>
    %276 = arith.subf %259, %275 : vector<32x128xf32>
    %cst_113 = arith.constant 9.99999974E-6 : f32
    %277 = vector.broadcast %cst_113 : f32 to vector<32x1xf32>
    %278 = arith.addf %274, %277 : vector<32x1xf32>
    %279 = math.rsqrt %278 : vector<32x1xf32>
    %280 = vector.broadcast %279 : vector<32x1xf32> to vector<32x128xf32>
    %281 = arith.mulf %276, %280 : vector<32x128xf32>
    %282 = vector.broadcast %261 : vector<1x128xf32> to vector<32x128xf32>
    %283 = arith.mulf %281, %282 : vector<32x128xf32>
    %284 = vector.broadcast %263 : vector<1x128xf32> to vector<32x128xf32>
    %285 = arith.addf %283, %284 : vector<32x128xf32>
    %286 = arith.truncf %285 : vector<32x128xf32> to vector<32x128xbf16>
    %c1_114 = arith.constant 1 : index
    %c0_115 = arith.constant 0 : index
    %c0_116 = arith.constant 0 : index
    %287 = vector.load %arg10[%c1_114, %c0_115, %c0_116] : memref<2x128x256xbf16, #tpu.memory_space<vmem>>, vector<1x128x256xbf16>
    %288 = vector.shape_cast %287 : vector<1x128x256xbf16> to vector<128x256xbf16>
    %cst_117 = arith.constant dense<0.000000e+00> : vector<32x256xf32>
    %289 = tpu.matmul %286, %288, %cst_117 {dimension_numbers = #tpu.dot_dimension_numbers<[1], [0], [0], [1], [0, 0, 1, 1], [], []>} : vector<32x128xbf16>, vector<128x256xbf16>, vector<32x256xf32> -> vector<32x256xf32>
    %c1_118 = arith.constant 1 : index
    %c0_119 = arith.constant 0 : index
    %c0_120 = arith.constant 0 : index
    %290 = vector.load %arg11[%c1_118, %c0_119, %c0_120] : memref<2x1x256xf32, #tpu.memory_space<vmem>>, vector<1x1x256xf32>
    %291 = vector.shape_cast %290 : vector<1x1x256xf32> to vector<1x256xf32>
    %292 = vector.broadcast %291 : vector<1x256xf32> to vector<32x256xf32>
    %293 = arith.addf %289, %292 : vector<32x256xf32>
    %cst_121 = arith.constant 0.000000e+00 : f32
    %294 = vector.broadcast %cst_121 : f32 to vector<32x256xf32>
    %295 = arith.maximumf %293, %294 : vector<32x256xf32>
    %296 = arith.truncf %295 : vector<32x256xf32> to vector<32x256xbf16>
    %c1_122 = arith.constant 1 : index
    %c0_123 = arith.constant 0 : index
    %c0_124 = arith.constant 0 : index
    %297 = vector.load %arg12[%c1_122, %c0_123, %c0_124] : memref<2x256x128xbf16, #tpu.memory_space<vmem>>, vector<1x256x128xbf16>
    %298 = vector.shape_cast %297 : vector<1x256x128xbf16> to vector<256x128xbf16>
    %cst_125 = arith.constant dense<0.000000e+00> : vector<32x128xf32>
    %299 = tpu.matmul %296, %298, %cst_125 {dimension_numbers = #tpu.dot_dimension_numbers<[1], [0], [0], [1], [0, 0, 1, 1], [], []>} : vector<32x256xbf16>, vector<256x128xbf16>, vector<32x128xf32> -> vector<32x128xf32>
    %c1_126 = arith.constant 1 : index
    %c0_127 = arith.constant 0 : index
    %c0_128 = arith.constant 0 : index
    %300 = vector.load %arg13[%c1_126, %c0_127, %c0_128] : memref<2x1x128xf32, #tpu.memory_space<vmem>>, vector<1x1x128xf32>
    %301 = vector.shape_cast %300 : vector<1x1x128xf32> to vector<1x128xf32>
    %302 = vector.broadcast %301 : vector<1x128xf32> to vector<32x128xf32>
    %303 = arith.addf %299, %302 : vector<32x128xf32>
    %304 = arith.addf %285, %303 : vector<32x128xf32>
    %c1_129 = arith.constant 1 : index
    %c0_130 = arith.constant 0 : index
    %c0_131 = arith.constant 0 : index
    %305 = vector.load %arg14[%c1_129, %c0_130, %c0_131] : memref<2x1x128xf32, #tpu.memory_space<vmem>>, vector<1x1x128xf32>
    %306 = vector.shape_cast %305 : vector<1x1x128xf32> to vector<1x128xf32>
    %c1_132 = arith.constant 1 : index
    %c0_133 = arith.constant 0 : index
    %c0_134 = arith.constant 0 : index
    %307 = vector.load %arg15[%c1_132, %c0_133, %c0_134] : memref<2x1x128xf32, #tpu.memory_space<vmem>>, vector<1x1x128xf32>
    %308 = vector.shape_cast %307 : vector<1x1x128xf32> to vector<1x128xf32>
    %cst_135 = arith.constant dense<0.000000e+00> : vector<32xf32>
    %309 = vector.multi_reduction <add>, %304, %cst_135 [1] : vector<32x128xf32> to vector<32xf32>
    %310 = vector.shape_cast %309 : vector<32xf32> to vector<32x1xf32>
    %cst_136 = arith.constant 1.280000e+02 : f32
    %311 = vector.broadcast %cst_136 : f32 to vector<32x1xf32>
    %312 = arith.divf %310, %311 : vector<32x1xf32>
    %313 = vector.broadcast %312 : vector<32x1xf32> to vector<32x128xf32>
    %314 = arith.subf %304, %313 : vector<32x128xf32>
    %315 = arith.mulf %314, %314 : vector<32x128xf32>
    %cst_137 = arith.constant dense<0.000000e+00> : vector<32xf32>
    %316 = vector.multi_reduction <add>, %315, %cst_137 [1] : vector<32x128xf32> to vector<32xf32>
    %317 = vector.shape_cast %316 : vector<32xf32> to vector<32x1xf32>
    %cst_138 = arith.constant 1.280000e+02 : f32
    %318 = vector.broadcast %cst_138 : f32 to vector<32x1xf32>
    %319 = arith.divf %317, %318 : vector<32x1xf32>
    %320 = vector.broadcast %312 : vector<32x1xf32> to vector<32x128xf32>
    %321 = arith.subf %304, %320 : vector<32x128xf32>
    %cst_139 = arith.constant 9.99999974E-6 : f32
    %322 = vector.broadcast %cst_139 : f32 to vector<32x1xf32>
    %323 = arith.addf %319, %322 : vector<32x1xf32>
    %324 = math.rsqrt %323 : vector<32x1xf32>
    %325 = vector.broadcast %324 : vector<32x1xf32> to vector<32x128xf32>
    %326 = arith.mulf %321, %325 : vector<32x128xf32>
    %327 = vector.broadcast %306 : vector<1x128xf32> to vector<32x128xf32>
    %328 = arith.mulf %326, %327 : vector<32x128xf32>
    %329 = vector.broadcast %308 : vector<1x128xf32> to vector<32x128xf32>
    %330 = arith.addf %328, %329 : vector<32x128xf32>
    %331 = vector.shape_cast %330 : vector<32x128xf32> to vector<2x16x128xf32>
    %cst_140 = arith.constant dense<0.000000e+00> : vector<2x128xf32>
    %332 = vector.multi_reduction <add>, %331, %cst_140 [1] : vector<2x16x128xf32> to vector<2x128xf32>
    %cst_141 = arith.constant 1.600000e+01 : f32
    %333 = vector.broadcast %cst_141 : f32 to vector<2x128xf32>
    %334 = arith.divf %332, %333 : vector<2x128xf32>
    %c0_142 = arith.constant 0 : index
    %c0_143 = arith.constant 0 : index
    %335 = vector.load %arg16[%c0_142, %c0_143] : memref<1x128xf32, #tpu.memory_space<vmem>>, vector<1x128xf32>
    %c0_144 = arith.constant 0 : index
    %c0_145 = arith.constant 0 : index
    %336 = vector.load %arg17[%c0_144, %c0_145] : memref<1x128xf32, #tpu.memory_space<vmem>>, vector<1x128xf32>
    %cst_146 = arith.constant dense<0.000000e+00> : vector<2xf32>
    %337 = vector.multi_reduction <add>, %334, %cst_146 [1] : vector<2x128xf32> to vector<2xf32>
    %338 = vector.shape_cast %337 : vector<2xf32> to vector<2x1xf32>
    %cst_147 = arith.constant 1.280000e+02 : f32
    %339 = vector.broadcast %cst_147 : f32 to vector<2x1xf32>
    %340 = arith.divf %338, %339 : vector<2x1xf32>
    %341 = vector.broadcast %340 : vector<2x1xf32> to vector<2x128xf32>
    %342 = arith.subf %334, %341 : vector<2x128xf32>
    %343 = arith.mulf %342, %342 : vector<2x128xf32>
    %cst_148 = arith.constant dense<0.000000e+00> : vector<2xf32>
    %344 = vector.multi_reduction <add>, %343, %cst_148 [1] : vector<2x128xf32> to vector<2xf32>
    %345 = vector.shape_cast %344 : vector<2xf32> to vector<2x1xf32>
    %cst_149 = arith.constant 1.280000e+02 : f32
    %346 = vector.broadcast %cst_149 : f32 to vector<2x1xf32>
    %347 = arith.divf %345, %346 : vector<2x1xf32>
    %348 = vector.broadcast %340 : vector<2x1xf32> to vector<2x128xf32>
    %349 = arith.subf %334, %348 : vector<2x128xf32>
    %cst_150 = arith.constant 9.99999974E-6 : f32
    %350 = vector.broadcast %cst_150 : f32 to vector<2x1xf32>
    %351 = arith.addf %347, %350 : vector<2x1xf32>
    %352 = math.rsqrt %351 : vector<2x1xf32>
    %353 = vector.broadcast %352 : vector<2x1xf32> to vector<2x128xf32>
    %354 = arith.mulf %349, %353 : vector<2x128xf32>
    %355 = vector.broadcast %335 : vector<1x128xf32> to vector<2x128xf32>
    %356 = arith.mulf %354, %355 : vector<2x128xf32>
    %357 = vector.broadcast %336 : vector<1x128xf32> to vector<2x128xf32>
    %358 = arith.addf %356, %357 : vector<2x128xf32>
    %c0_151 = arith.constant 0 : index
    %c0_152 = arith.constant 0 : index
    %359 = vector.load %arg18[%c0_151, %c0_152] : memref<128x128xf32, #tpu.memory_space<vmem>>, vector<128x128xf32>
    %cst_153 = arith.constant dense<0.000000e+00> : vector<2x128xf32>
    %360 = tpu.matmul %358, %359, %cst_153 {dimension_numbers = #tpu.dot_dimension_numbers<[1], [0], [0], [1], [0, 0, 1, 1], [], []>} : vector<2x128xf32>, vector<128x128xf32>, vector<2x128xf32> -> vector<2x128xf32>
    %c0_154 = arith.constant 0 : index
    %c0_155 = arith.constant 0 : index
    %361 = vector.load %arg19[%c0_154, %c0_155] : memref<1x128xf32, #tpu.memory_space<vmem>>, vector<1x128xf32>
    %362 = vector.broadcast %361 : vector<1x128xf32> to vector<2x128xf32>
    %363 = arith.addf %360, %362 : vector<2x128xf32>
    %c0_156 = arith.constant 0 : index
    %c0_157 = arith.constant 0 : index
    %364 = vector.load %arg20[%c0_156, %c0_157] : memref<2x128xf32, #tpu.memory_space<vmem>>, vector<2x128xf32>
    tpu.vector_store %arg20[%c0_156, %c0_157], %363 {strides = array<i32>} : memref<2x128xf32, #tpu.memory_space<vmem>>, vector<2x128xf32>,
    return
  }
}

</mosaic_0001>

<llo_original>
// kernel: transformer_encoder_forward.1
$region0: #{transformer_encoder_forward.1}
  #allocation0 [shape = 'u32[]', space=smem, size = 0x4, offset = 0x4, fixed_abs, tag = 'smem constant byte address 0x4 - core index']
  #allocation1 [shape = 'u32[72,128]{1,0:T(1,128)}', space=vmem, size = 0x9000, scoped, tag = 'internal scratch']
  %s0 = inlined_call_operand.vmem [shape: f32[32,192], index: 0, kind: input, shape index: {}]
  %s1 = inlined_call_operand.vmem [shape: f32[32,128], index: 1, kind: input, shape index: {}]
  %s2 = inlined_call_operand.vmem [shape: bf16[192,128], index: 2, kind: input, shape index: {}]
  %s3 = inlined_call_operand.vmem [shape: f32[1,128], index: 3, kind: input, shape index: {}]
  %s4 = inlined_call_operand.vmem [shape: bf16[2,128,384], index: 4, kind: input, shape index: {}]
  %s5 = inlined_call_operand.vmem [shape: f32[2,1,384], index: 5, kind: input, shape index: {}]
  %s6 = inlined_call_operand.vmem [shape: bf16[2,128,128], index: 6, kind: input, shape index: {}]
  %s7 = inlined_call_operand.vmem [shape: f32[2,1,128], index: 7, kind: input, shape index: {}]
  %s8 = inlined_call_operand.vmem [shape: f32[2,1,128], index: 8, kind: input, shape index: {}]
  %s9 = inlined_call_operand.vmem [shape: f32[2,1,128], index: 9, kind: input, shape index: {}]
  %s10 = inlined_call_operand.vmem [shape: bf16[2,128,256], index: 10, kind: input, shape index: {}]
  %s11 = inlined_call_operand.vmem [shape: f32[2,1,256], index: 11, kind: input, shape index: {}]
  %s12 = inlined_call_operand.vmem [shape: bf16[2,256,128], index: 12, kind: input, shape index: {}]
  %s13 = inlined_call_operand.vmem [shape: f32[2,1,128], index: 13, kind: input, shape index: {}]
  %s14 = inlined_call_operand.vmem [shape: f32[2,1,128], index: 14, kind: input, shape index: {}]
  %s15 = inlined_call_operand.vmem [shape: f32[2,1,128], index: 15, kind: input, shape index: {}]
  %s16 = inlined_call_operand.vmem [shape: f32[1,128], index: 16, kind: input, shape index: {}]
  %s17 = inlined_call_operand.vmem [shape: f32[1,128], index: 17, kind: input, shape index: {}]
  %s18 = inlined_call_operand.vmem [shape: f32[128,128], index: 18, kind: input, shape index: {}]
  %s19 = inlined_call_operand.vmem [shape: f32[1,128], index: 19, kind: input, shape index: {}]
  %s20 = inlined_call_operand.hbm [shape: f32[2,128], index: 20, kind: output, shape index: {}]
  %s21 = sld [smem:[#allocation0]]
  $region90: #{transformer_encoder_forward.1} parent=0
    _
  %s23 = ssub.s32 1, %s21
  %s24 = scalar_select 0, %s23, %s21
  $region1: #{transformer_encoder_forward.1} parent=0
    #allocation2 [shape = 'u8[1024]{0}', space=vmem, size = 0x400, scoped, tag = 'output window, operand 0, single buffered']
    #allocation3 [shape = 's32[1]{0}', space=sflag, size = 0x4, scoped, tag = 'scoped memory for transformer_encoder_forward.1']
    %25 = vsyncpa [#allocation3], 0
    // Predicated region
    $region2: #{transformer_encoder_forward.1} parent=1 // pred_check
      _
    $region3: #{transformer_encoder_forward.1} parent=1 // pred_check_branch
      %27 = sbr.rel (0) target = $region5
    $region4: #{transformer_encoder_forward.1} parent=1 // pred_region
      _
    $region5: #{transformer_encoder_forward.1} parent=1 // pred_fallthru
      _
    // Predicated region
    $region6: #{transformer_encoder_forward.1} parent=1 // pred_check
      _
    $region7: #{transformer_encoder_forward.1} parent=1 // pred_check_branch
      %29 = sbr.rel (0) target = $region9
    $region8: #{transformer_encoder_forward.1} parent=1 // pred_region
      _
    $region9: #{transformer_encoder_forward.1} parent=1 // pred_fallthru
      _
    // Predicated region
    $region10: #{transformer_encoder_forward.1} parent=1 // pred_check
      _
    $region11: #{transformer_encoder_forward.1} parent=1 // pred_check_branch
      %31 = sbr.rel (0) target = $region13
    $region12: #{transformer_encoder_forward.1} parent=1 // pred_region
      _
    $region13: #{transformer_encoder_forward.1} parent=1 // pred_fallthru
      _
    // Predicated region
    $region14: #{transformer_encoder_forward.1} parent=1 // pred_check
      _
    $region15: #{transformer_encoder_forward.1} parent=1 // pred_check_branch
      %33 = sbr.rel (0) target = $region17
    $region16: #{transformer_encoder_forward.1} parent=1 // pred_region
      _
    $region17: #{transformer_encoder_forward.1} parent=1 // pred_fallthru
      _
    // Predicated region
    $region18: #{transformer_encoder_forward.1} parent=1 // pred_check
      _
    $region19: #{transformer_encoder_forward.1} parent=1 // pred_check_branch
      %35 = sbr.rel (0) target = $region21
    $region20: #{transformer_encoder_forward.1} parent=1 // pred_region
      _
    $region21: #{transformer_encoder_forward.1} parent=1 // pred_fallthru
      _
    // Predicated region
    $region22: #{transformer_encoder_forward.1} parent=1 // pred_check
      _
    $region23: #{transformer_encoder_forward.1} parent=1 // pred_check_branch
      %37 = sbr.rel (0) target = $region25
    $region24: #{transformer_encoder_forward.1} parent=1 // pred_region
      _
    $region25: #{transformer_encoder_forward.1} parent=1 // pred_fallthru
      _
    // Predicated region
    $region26: #{transformer_encoder_forward.1} parent=1 // pred_check
      _
    $region27: #{transformer_encoder_forward.1} parent=1 // pred_check_branch
      %39 = sbr.rel (0) target = $region29
    $region28: #{transformer_encoder_forward.1} parent=1 // pred_region
      _
    $region29: #{transformer_encoder_forward.1} parent=1 // pred_fallthru
      _
    // Predicated region
    $region30: #{transformer_encoder_forward.1} parent=1 // pred_check
      _
    $region31: #{transformer_encoder_forward.1} parent=1 // pred_check_branch
      %41 = sbr.rel (0) target = $region33
    $region32: #{transformer_encoder_forward.1} parent=1 // pred_region
      _
    $region33: #{transformer_encoder_forward.1} parent=1 // pred_fallthru
      _
    // Predicated region
    $region34: #{transformer_encoder_forward.1} parent=1 // pred_check
      _
    $region35: #{transformer_encoder_forward.1} parent=1 // pred_check_branch
      %43 = sbr.rel (0) target = $region37
    $region36: #{transformer_encoder_forward.1} parent=1 // pred_region
      _
    $region37: #{transformer_encoder_forward.1} parent=1 // pred_fallthru
      _
    // Predicated region
    $region38: #{transformer_encoder_forward.1} parent=1 // pred_check
      _
    $region39: #{transformer_encoder_forward.1} parent=1 // pred_check_branch
      %45 = sbr.rel (0) target = $region41
    $region40: #{transformer_encoder_forward.1} parent=1 // pred_region
      _
    $region41: #{transformer_encoder_forward.1} parent=1 // pred_fallthru
      _
    // Predicated region
    $region42: #{transformer_encoder_forward.1} parent=1 // pred_check
      _
    $region43: #{transformer_encoder_forward.1} parent=1 // pred_check_branch
      %47 = sbr.rel (0) target = $region45
    $region44: #{transformer_encoder_forward.1} parent=1 // pred_region
      _
    $region45: #{transformer_encoder_forward.1} parent=1 // pred_fallthru
      _
    // Predicated region
    $region46: #{transformer_encoder_forward.1} parent=1 // pred_check
      _
    $region47: #{transformer_encoder_forward.1} parent=1 // pred_check_branch
      %49 = sbr.rel (0) target = $region49
    $region48: #{transformer_encoder_forward.1} parent=1 // pred_region
      _
    $region49: #{transformer_encoder_forward.1} parent=1 // pred_fallthru
      _
    // Predicated region
    $region50: #{transformer_encoder_forward.1} parent=1 // pred_check
      _
    $region51: #{transformer_encoder_forward.1} parent=1 // pred_check_branch
      %51 = sbr.rel (0) target = $region53
    $region52: #{transformer_encoder_forward.1} parent=1 // pred_region
      _
    $region53: #{transformer_encoder_forward.1} parent=1 // pred_fallthru
      _
    // Predicated region
    $region54: #{transformer_encoder_forward.1} parent=1 // pred_check
      _
    $region55: #{transformer_encoder_forward.1} parent=1 // pred_check_branch
      %53 = sbr.rel (0) target = $region57
    $region56: #{transformer_encoder_forward.1} parent=1 // pred_region
      _
    $region57: #{transformer_encoder_forward.1} parent=1 // pred_fallthru
      _
    // Predicated region
    $region58: #{transformer_encoder_forward.1} parent=1 // pred_check
      _
    $region59: #{transformer_encoder_forward.1} parent=1 // pred_check_branch
      %55 = sbr.rel (0) target = $region61
    $region60: #{transformer_encoder_forward.1} parent=1 // pred_region
      _
    $region61: #{transformer_encoder_forward.1} parent=1 // pred_fallthru
      _
    // Predicated region
    $region62: #{transformer_encoder_forward.1} parent=1 // pred_check
      _
    $region63: #{transformer_encoder_forward.1} parent=1 // pred_check_branch
      %57 = sbr.rel (0) target = $region65
    $region64: #{transformer_encoder_forward.1} parent=1 // pred_region
      _
    $region65: #{transformer_encoder_forward.1} parent=1 // pred_fallthru
      _
    // Predicated region
    $region66: #{transformer_encoder_forward.1} parent=1 // pred_check
      _
    $region67: #{transformer_encoder_forward.1} parent=1 // pred_check_branch
      %59 = sbr.rel (0) target = $region69
    $region68: #{transformer_encoder_forward.1} parent=1 // pred_region
      _
    $region69: #{transformer_encoder_forward.1} parent=1 // pred_fallthru
      _
    // Predicated region
    $region70: #{transformer_encoder_forward.1} parent=1 // pred_check
      _
    $region71: #{transformer_encoder_forward.1} parent=1 // pred_check_branch
      %61 = sbr.rel (0) target = $region73
    $region72: #{transformer_encoder_forward.1} parent=1 // pred_region
      _
    $region73: #{transformer_encoder_forward.1} parent=1 // pred_fallthru
      _
    // Predicated region
    $region74: #{transformer_encoder_forward.1} parent=1 // pred_check
      _
    $region75: #{transformer_encoder_forward.1} parent=1 // pred_check_branch
      %63 = sbr.rel (0) target = $region77
    $region76: #{transformer_encoder_forward.1} parent=1 // pred_region
      _
    $region77: #{transformer_encoder_forward.1} parent=1 // pred_fallthru
      _
    // Predicated region
    $region78: #{transformer_encoder_forward.1} parent=1 // pred_check
      _
    $region79: #{transformer_encoder_forward.1} parent=1 // pred_check_branch
      %65 = sbr.rel (0) target = $region81
    $region80: #{transformer_encoder_forward.1} parent=1 // pred_region
      _
    $region81: #{transformer_encoder_forward.1} parent=1 // pred_fallthru
      _
    %v67 = vld [vmem:[%s0] sm:$0xff]
    %v68 = vld [vmem:[%s0 + $0x8] sm:$0xff]
    %v69 = vld [vmem:[%s0 + $0x10] sm:$0xff]
    %v70 = vld [vmem:[%s0 + $0x18] sm:$0xff]
    %v71 = vld [vmem:[%s0 + $0x20] sm:$0xff]
    %v72 = vld [vmem:[%s0 + $0x28] sm:$0xff]
    %v73 = vld [vmem:[%s0 + $0x30] sm:$0xff]
    %v74 = vld [vmem:[%s0 + $0x38] sm:$0xff]
    %v75 = vpack.c.bf16 %v69, %v67
    %v76 = vpack.c.bf16 %v70, %v68
    %v77 = vpack.c.bf16 %v73, %v71
    %v78 = vpack.c.bf16 %v74, %v72
    %v79 = vld [vmem:[%s2] sm:$0xf]
    %v80 = vld [vmem:[%s2 + $0x4] sm:$0xf]
    %v81 = vld [vmem:[%s2 + $0x8] sm:$0xf]
    %v82 = vld [vmem:[%s2 + $0xc] sm:$0xf]
    %v83 = vld [vmem:[%s2 + $0x10] sm:$0xf]
    %v84 = vld [vmem:[%s2 + $0x14] sm:$0xf]
    %v85 = vld [vmem:[%s2 + $0x18] sm:$0xf]
    %v86 = vld [vmem:[%s2 + $0x1c] sm:$0xf]
    %v87 = vld [vmem:[%s2 + $0x20] sm:$0xf]
    %v88 = vld [vmem:[%s2 + $0x24] sm:$0xf]
    %v89 = vld [vmem:[%s2 + $0x28] sm:$0xf]
    %v90 = vld [vmem:[%s2 + $0x2c] sm:$0xf]
    %v91 = vld [vmem:[%s2 + $0x30] sm:$0xf]
    %v92 = vld [vmem:[%s2 + $0x34] sm:$0xf]
    %v93 = vld [vmem:[%s2 + $0x38] sm:$0xf]
    %v94 = vld [vmem:[%s2 + $0x3c] sm:$0xf]
    %v95 = vld [vmem:[%s2 + $0x40] sm:$0xf]
    %v96 = vld [vmem:[%s2 + $0x44] sm:$0xf]
    %v97 = vld [vmem:[%s2 + $0x48] sm:$0xf]
    %v98 = vld [vmem:[%s2 + $0x4c] sm:$0xf]
    %v99 = vld [vmem:[%s2 + $0x50] sm:$0xf]
    %v100 = vld [vmem:[%s2 + $0x54] sm:$0xf]
    %v101 = vld [vmem:[%s2 + $0x58] sm:$0xf]
    %v102 = vld [vmem:[%s2 + $0x5c] sm:$0xf]
    %v103 = vld [vmem:[%s3] sm:$0x1]
    %v105 = vperm.slane %v103, 0
    %v131 = vunpack.c.l.b16 %v79
    %v132 = vunpack.c.l.b16 %v80
    %v133 = vunpack.c.l.b16 %v81
    %v134 = vunpack.c.l.b16 %v82
    %v135 = vunpack.c.l.b16 %v83
    %v136 = vunpack.c.l.b16 %v84
    %v137 = vunpack.c.l.b16 %v85
    %v138 = vunpack.c.l.b16 %v86
    %v139 = vunpack.c.l.b16 %v87
    %v140 = vunpack.c.l.b16 %v88
    %v141 = vunpack.c.l.b16 %v89
    %v142 = vunpack.c.l.b16 %v90
    %v143 = vunpack.c.l.b16 %v91
    %v144 = vunpack.c.l.b16 %v92
    %v145 = vunpack.c.l.b16 %v93
    %v146 = vunpack.c.l.b16 %v94
    %v147 = vunpack.c.l.b16 %v95
    %v148 = vunpack.c.l.b16 %v96
    %v149 = vunpack.c.l.b16 %v97
    %v150 = vunpack.c.l.b16 %v98
    %v151 = vunpack.c.l.b16 %v99
    %v152 = vunpack.c.l.b16 %v100
    %v153 = vunpack.c.l.b16 %v101
    %v154 = vunpack.c.l.b16 %v102
    %v155 = vpack.c.b16 %v132, %v131
    %v156 = vpack.c.b16 %v134, %v133
    %v157 = vpack.c.b16 %v136, %v135
    %v158 = vpack.c.b16 %v138, %v137
    %v159 = vpack.c.b16 %v140, %v139
    %v160 = vpack.c.b16 %v142, %v141
    %v161 = vpack.c.b16 %v144, %v143
    %v162 = vpack.c.b16 %v146, %v145
    %v163 = vpack.c.b16 %v148, %v147
    %v164 = vpack.c.b16 %v150, %v149
    %v165 = vpack.c.b16 %v152, %v151
    %v166 = vpack.c.b16 %v154, %v153
    %vm179 = vcmask 523264
    %v181 = vsel %vm179, %v76, 0
    %v184 = vsel %vm179, %v78, 0
    %186 = vmatpush.bf16.msra.mxu0 %v162
    %187 = vmatpush.bf16.msra.mxu0 %v161
    %188 = vmatpush.bf16.msra.mxu0 %v160
    %189 = vmatpush.bf16.msra.mxu0 %v159
    %190 = vmatpush.bf16.msra.mxu0 %v158
    %191 = vmatpush.bf16.msra.mxu0 %v157
    %192 = vmatpush.bf16.msra.mxu0 %v156
    %193 = vmatpush.bf16.msra.mxu0 %v155
    %194 = vmatmul.bf16.gmra.mxu0 %v75
    %v195 = vpop.f32.mrf.mxu0
    %v196 = vadd.f32 %v105, %v195
    %v197 = vpop.f32.mrf.mxu0
    %v198 = vadd.f32 %v105, %v197
    %199 = vmatmul.bf16.gmra.mxu0 %v77
    %v200 = vpop.f32.mrf.mxu0
    %v201 = vadd.f32 %v105, %v200
    %v202 = vpop.f32.mrf.mxu0
    %v203 = vadd.f32 %v105, %v202
    %204 = vdwg.mxu0
    %205 = vmatpush.bf16.msra.mxu0 0
    %206 = vmatpush.bf16.msra.mxu0 0
    %207 = vmatpush.bf16.msra.mxu0 0
    %208 = vmatpush.bf16.msra.mxu0 0
    %209 = vmatpush.bf16.msra.mxu0 %v166
    %210 = vmatpush.bf16.msra.mxu0 %v165
    %211 = vmatpush.bf16.msra.mxu0 %v164
    %212 = vmatpush.bf16.msra.mxu0 %v163
    %213 = vmatmul.bf16.gmra.mxu0 %v181
    %v214 = vpop.f32.mrf.mxu0
    %v215 = vadd.f32 %v196, %v214
    %v216 = vpop.f32.mrf.mxu0
    %v217 = vadd.f32 %v198, %v216
    %218 = vmatmul.bf16.gmra.mxu0 %v184
    %v219 = vpop.f32.mrf.mxu0
    %v220 = vadd.f32 %v201, %v219
    %v221 = vpop.f32.mrf.mxu0
    %v222 = vadd.f32 %v203, %v221
    %223 = vdwg.mxu0
    %v224 = vld [vmem:[%s1] sm:$0xff]
    %v225 = vld [vmem:[%s1 + $0x8] sm:$0xff]
    %v226 = vld [vmem:[%s1 + $0x10] sm:$0xff]
    %v227 = vld [vmem:[%s1 + $0x18] sm:$0xff]
    %v228 = vadd.f32 %v215, %v224
    %v229 = vadd.f32 %v217, %v225
    %v230 = vadd.f32 %v220, %v226
    %v231 = vadd.f32 %v222, %v227
    %v232 = vpack.c.bf16 %v229, %v228
    %v233 = vpack.c.bf16 %v231, %v230
    %v234 = vld [vmem:[%s4] sm:$0xff]
    %v235 = vld [vmem:[%s4 + $0x8] sm:$0xf]
    %v236 = vld [vmem:[%s4 + $0xc] sm:$0xff]
    %v237 = vld [vmem:[%s4 + $0x14] sm:$0xf]
    %v238 = vld [vmem:[%s4 + $0x18] sm:$0xff]
    %v239 = vld [vmem:[%s4 + $0x20] sm:$0xf]
    %v240 = vld [vmem:[%s4 + $0x24] sm:$0xff]
    %v241 = vld [vmem:[%s4 + $0x2c] sm:$0xf]
    %v242 = vld [vmem:[%s4 + $0x30] sm:$0xff]
    %v243 = vld [vmem:[%s4 + $0x38] sm:$0xf]
    %v244 = vld [vmem:[%s4 + $0x3c] sm:$0xff]
    %v245 = vld [vmem:[%s4 + $0x44] sm:$0xf]
    %v246 = vld [vmem:[%s4 + $0x48] sm:$0xff]
    %v247 = vld [vmem:[%s4 + $0x50] sm:$0xf]
    %v248 = vld [vmem:[%s4 + $0x54] sm:$0xff]
    %v249 = vld [vmem:[%s4 + $0x5c] sm:$0xf]
    %v250 = vld [vmem:[%s4 + $0x60] sm:$0xff]
    %v251 = vld [vmem:[%s4 + $0x68] sm:$0xf]
    %v252 = vld [vmem:[%s4 + $0x6c] sm:$0xff]
    %v253 = vld [vmem:[%s4 + $0x74] sm:$0xf]
    %v254 = vld [vmem:[%s4 + $0x78] sm:$0xff]
    %v255 = vld [vmem:[%s4 + $0x80] sm:$0xf]
    %v256 = vld [vmem:[%s4 + $0x84] sm:$0xff]
    %v257 = vld [vmem:[%s4 + $0x8c] sm:$0xf]
    %v258 = vld [vmem:[%s4 + $0x90] sm:$0xff]
    %v259 = vld [vmem:[%s4 + $0x98] sm:$0xf]
    %v260 = vld [vmem:[%s4 + $0x9c] sm:$0xff]
    %v261 = vld [vmem:[%s4 + $0xa4] sm:$0xf]
    %v262 = vld [vmem:[%s4 + $0xa8] sm:$0xff]
    %v263 = vld [vmem:[%s4 + $0xb0] sm:$0xf]
    %v264 = vld [vmem:[%s4 + $0xb4] sm:$0xff]
    %v265 = vld [vmem:[%s4 + $0xbc] sm:$0xf]
    %v266 = vld [vmem:[%s5] sm:$0x7]
    %v268 = vperm.slane %v266, 0
    %v269 = vperm.slane %v266, 1
    %v270 = vperm.slane %v266, 2
    %v306 = vunpack.c.l.b16 %v234
    %v307 = vunpack.c.h.b16 %v234
    %v308 = vunpack.c.l.b16 %v235
    %v309 = vunpack.c.l.b16 %v236
    %v310 = vunpack.c.h.b16 %v236
    %v311 = vunpack.c.l.b16 %v237
    %v312 = vunpack.c.l.b16 %v238
    %v313 = vunpack.c.h.b16 %v238
    %v314 = vunpack.c.l.b16 %v239
    %v315 = vunpack.c.l.b16 %v240
    %v316 = vunpack.c.h.b16 %v240
    %v317 = vunpack.c.l.b16 %v241
    %v318 = vunpack.c.l.b16 %v242
    %v319 = vunpack.c.h.b16 %v242
    %v320 = vunpack.c.l.b16 %v243
    %v321 = vunpack.c.l.b16 %v244
    %v322 = vunpack.c.h.b16 %v244
    %v323 = vunpack.c.l.b16 %v245
    %v324 = vunpack.c.l.b16 %v246
    %v325 = vunpack.c.h.b16 %v246
    %v326 = vunpack.c.l.b16 %v247
    %v327 = vunpack.c.l.b16 %v248
    %v328 = vunpack.c.h.b16 %v248
    %v329 = vunpack.c.l.b16 %v249
    %v330 = vunpack.c.l.b16 %v250
    %v331 = vunpack.c.h.b16 %v250
    %v332 = vunpack.c.l.b16 %v251
    %v333 = vunpack.c.l.b16 %v252
    %v334 = vunpack.c.h.b16 %v252
    %v335 = vunpack.c.l.b16 %v253
    %v336 = vunpack.c.l.b16 %v254
    %v337 = vunpack.c.h.b16 %v254
    %v338 = vunpack.c.l.b16 %v255
    %v339 = vunpack.c.l.b16 %v256
    %v340 = vunpack.c.h.b16 %v256
    %v341 = vunpack.c.l.b16 %v257
    %v342 = vunpack.c.l.b16 %v258
    %v343 = vunpack.c.h.b16 %v258
    %v344 = vunpack.c.l.b16 %v259
    %v345 = vunpack.c.l.b16 %v260
    %v346 = vunpack.c.h.b16 %v260
    %v347 = vunpack.c.l.b16 %v261
    %v348 = vunpack.c.l.b16 %v262
    %v349 = vunpack.c.h.b16 %v262
    %v350 = vunpack.c.l.b16 %v263
    %v351 = vunpack.c.l.b16 %v264
    %v352 = vunpack.c.h.b16 %v264
    %v353 = vunpack.c.l.b16 %v265
    %v354 = vpack.c.b16 %v309, %v306
    %v355 = vpack.c.b16 %v310, %v307
    %v356 = vpack.c.b16 %v311, %v308
    %v357 = vpack.c.b16 %v315, %v312
    %v358 = vpack.c.b16 %v316, %v313
    %v359 = vpack.c.b16 %v317, %v314
    %v360 = vpack.c.b16 %v321, %v318
    %v361 = vpack.c.b16 %v322, %v319
    %v362 = vpack.c.b16 %v323, %v320
    %v363 = vpack.c.b16 %v327, %v324
    %v364 = vpack.c.b16 %v328, %v325
    %v365 = vpack.c.b16 %v329, %v326
    %v366 = vpack.c.b16 %v333, %v330
    %v367 = vpack.c.b16 %v334, %v331
    %v368 = vpack.c.b16 %v335, %v332
    %v369 = vpack.c.b16 %v339, %v336
    %v370 = vpack.c.b16 %v340, %v337
    %v371 = vpack.c.b16 %v341, %v338
    %v372 = vpack.c.b16 %v345, %v342
    %v373 = vpack.c.b16 %v346, %v343
    %v374 = vpack.c.b16 %v347, %v344
    %v375 = vpack.c.b16 %v351, %v348
    %v376 = vpack.c.b16 %v352, %v349
    %v377 = vpack.c.b16 %v353, %v350
    %402 = vmatpush.bf16.msra.mxu0 %v375
    %403 = vmatpush.bf16.msra.mxu0 %v372
    %404 = vmatpush.bf16.msra.mxu0 %v369
    %405 = vmatpush.bf16.msra.mxu0 %v366
    %406 = vmatpush.bf16.msra.mxu0 %v363
    %407 = vmatpush.bf16.msra.mxu0 %v360
    %408 = vmatpush.bf16.msra.mxu0 %v357
    %409 = vmatpush.bf16.msra.mxu0 %v354
    %410 = vmatmul.bf16.gmra.mxu0 %v232
    %v411 = vpop.f32.mrf.mxu0
    %v412 = vadd.f32 %v268, %v411
    %v413 = vpop.f32.mrf.mxu0
    %v414 = vadd.f32 %v268, %v413
    %415 = vmatmul.bf16.gmra.mxu0 %v233
    %v416 = vpop.f32.mrf.mxu0
    %v417 = vadd.f32 %v268, %v416
    %v418 = vpop.f32.mrf.mxu0
    %v419 = vadd.f32 %v268, %v418
    %420 = vdwg.mxu0
    %421 = vmatpush.bf16.msra.mxu0 %v376
    %422 = vmatpush.bf16.msra.mxu0 %v373
    %423 = vmatpush.bf16.msra.mxu0 %v370
    %424 = vmatpush.bf16.msra.mxu0 %v367
    %425 = vmatpush.bf16.msra.mxu0 %v364
    %426 = vmatpush.bf16.msra.mxu0 %v361
    %427 = vmatpush.bf16.msra.mxu0 %v358
    %428 = vmatpush.bf16.msra.mxu0 %v355
    %429 = vmatmul.bf16.gmra.mxu0 %v232
    %v430 = vpop.f32.mrf.mxu0
    %v431 = vadd.f32 %v269, %v430
    %v432 = vpop.f32.mrf.mxu0
    %v433 = vadd.f32 %v269, %v432
    %434 = vmatmul.bf16.gmra.mxu0 %v233
    %v435 = vpop.f32.mrf.mxu0
    %v436 = vadd.f32 %v269, %v435
    %v437 = vpop.f32.mrf.mxu0
    %v438 = vadd.f32 %v269, %v437
    %439 = vdwg.mxu0
    %440 = vmatpush.bf16.msra.mxu0 %v377
    %441 = vmatpush.bf16.msra.mxu0 %v374
    %442 = vmatpush.bf16.msra.mxu0 %v371
    %443 = vmatpush.bf16.msra.mxu0 %v368
    %444 = vmatpush.bf16.msra.mxu0 %v365
    %445 = vmatpush.bf16.msra.mxu0 %v362
    %446 = vmatpush.bf16.msra.mxu0 %v359
    %447 = vmatpush.bf16.msra.mxu0 %v356
    %448 = vmatmul.bf16.gmra.mxu0 %v232
    %v449 = vpop.f32.mrf.mxu0
    %v450 = vadd.f32 %v270, %v449
    %v451 = vpop.f32.mrf.mxu0
    %v452 = vadd.f32 %v270, %v451
    %453 = vmatmul.bf16.gmra.mxu0 %v233
    %v454 = vpop.f32.mrf.mxu0
    %v455 = vadd.f32 %v270, %v454
    %v456 = vpop.f32.mrf.mxu0
    %v457 = vadd.f32 %v270, %v456
    %458 = vdwg.mxu0
    %v459 = vpack.c.bf16 %v431, %v412
    %v460 = vpack.c.bf16 %v450, %v450
    %v461 = vpack.c.bf16 %v433, %v414
    %v462 = vpack.c.bf16 %v452, %v452
    %v463 = vpack.c.bf16 %v436, %v417
    %v464 = vpack.c.bf16 %v455, %v455
    %v465 = vpack.c.bf16 %v438, %v419
    %v466 = vpack.c.bf16 %v457, %v457
    %v471 = vrot.slane %v459, 4
    %v472 = vrot.slane %v461, 4
    %v473 = vrot.slane %v463, 4
    %v474 = vrot.slane %v465, 4
    %v475 = vunpack.c.l.b16 %v459
    %v476 = vunpack.c.l.b16 %v461
    %v477 = vpack.c.b16 %v476, %v475
    %v478 = vunpack.c.l.b16 %v471
    %v479 = vunpack.c.l.b16 %v472
    %v480 = vpack.c.b16 %v479, %v478
    %vm481 = vcmask 261120
    %v483 = vsel %vm481, %v477, 0
    %v486 = vsel %vm481, %v480, 0
    %488 = vmatpush.bf16.xpose.msra.mxu0 0
    %489 = vmatpush.bf16.xpose.msra.mxu0 0
    %490 = vmatpush.bf16.xpose.msra.mxu0 0
    %491 = vmatpush.bf16.xpose.msra.mxu0 0
    %492 = vmatpush.bf16.xpose.msra.mxu0 0
    %493 = vmatpush.bf16.xpose.msra.mxu0 0
    %494 = vmatpush.bf16.xpose.msra.mxu0 0
    %495 = vmatpush.bf16.xpose.msra.mxu0 %v486
    %496 = vmatmul.bf16.gmra.mxu0 %v483
    %v497 = vpop.f32.mrf.mxu0
    %v498 = vadd.f32 0.0, %v497
    %v499 = vpop.f32.mrf.mxu0
    %v500 = vadd.f32 0.0, %v499
    %501 = vdwg.mxu0
    %v502 = vunpack.c.l.b16 %v463
    %v503 = vunpack.c.l.b16 %v465
    %v504 = vpack.c.b16 %v503, %v502
    %v505 = vunpack.c.l.b16 %v473
    %v506 = vunpack.c.l.b16 %v474
    %v507 = vpack.c.b16 %v506, %v505
    %v509 = vsel %vm481, %v504, 0
    %v512 = vsel %vm481, %v507, 0
    %514 = vmatpush.bf16.xpose.msra.mxu0 0
    %515 = vmatpush.bf16.xpose.msra.mxu0 0
    %516 = vmatpush.bf16.xpose.msra.mxu0 0
    %517 = vmatpush.bf16.xpose.msra.mxu0 0
    %518 = vmatpush.bf16.xpose.msra.mxu0 0
    %519 = vmatpush.bf16.xpose.msra.mxu0 0
    %520 = vmatpush.bf16.xpose.msra.mxu0 0
    %521 = vmatpush.bf16.xpose.msra.mxu0 %v512
    %522 = vmatmul.bf16.gmra.mxu0 %v509
    %v523 = vpop.f32.mrf.mxu0
    %v524 = vadd.f32 0.0, %v523
    %v525 = vpop.f32.mrf.mxu0
    %v526 = vadd.f32 0.0, %v525
    %527 = vdwg.mxu0
    %vm528 = vcmask 130048
    %v529 = vsel %vm528, %v498, -inf
    %530 = vmax.xlane.f32.xlu0 %v529
    %v531 = vpop.xlane.xlu0 %530
    %v532 = vsel %vm528, %v500, -inf
    %533 = vmax.xlane.f32.xlu0 %v532
    %v534 = vpop.xlane.xlu0 %533
    %v535 = vsel %vm528, %v524, -inf
    %536 = vmax.xlane.f32.xlu0 %v535
    %v537 = vpop.xlane.xlu0 %536
    %v538 = vsel %vm528, %v526, -inf
    %539 = vmax.xlane.f32.xlu0 %v538
    %v540 = vpop.xlane.xlu0 %539
    %v541 = vsub.f32 %v498, %v531
    %v542 = vsub.f32 %v500, %v534
    %v543 = vsub.f32 %v524, %v537
    %v544 = vsub.f32 %v526, %v540
    %v545 = vmul.f32 %v541, 1.442695
    %v546 = vpow.pop %v545
    %v547 = vmul.f32 %v542, 1.442695
    %v548 = vpow.pop %v547
    %v549 = vmul.f32 %v543, 1.442695
    %v550 = vpow.pop %v549
    %v551 = vmul.f32 %v544, 1.442695
    %v552 = vpow.pop %v551
    %v553 = vsel %vm528, %v546, 0.0
    %554 = vadd.xlane.f32.xlu0 %v553
    %v555 = vpop.xlane.xlu0 %554
    %v556 = vsel %vm528, %v548, 0.0
    %557 = vadd.xlane.f32.xlu0 %v556
    %v558 = vpop.xlane.xlu0 %557
    %v559 = vsel %vm528, %v550, 0.0
    %560 = vadd.xlane.f32.xlu0 %v559
    %v561 = vpop.xlane.xlu0 %560
    %v562 = vsel %vm528, %v552, 0.0
    %563 = vadd.xlane.f32.xlu0 %v562
    %v564 = vpop.xlane.xlu0 %563
    %v565 = vrcp.pop %v555
    %v566 = vrcp.pop %v558
    %v567 = vrcp.pop %v561
    %v568 = vrcp.pop %v564
    %v569 = vmul.f32 %v546, %v565
    %v570 = vmul.f32 %v548, %v566
    %v571 = vmul.f32 %v550, %v567
    %v572 = vmul.f32 %v552, %v568
    %v573 = vpack.c.bf16 %v569, %v569
    %v574 = vpack.c.bf16 %v570, %v570
    %v575 = vpack.c.bf16 %v571, %v571
    %v576 = vpack.c.bf16 %v572, %v572
    %v579 = vunpack.c.l.b16 %v573
    %v580 = vunpack.c.l.b16 %v574
    %v581 = vpack.c.b16 %v580, %v579
    %v584 = vunpack.c.l.b16 %v460
    %v585 = vunpack.c.l.b16 %v462
    %v586 = vpack.c.b16 %v585, %v584
    %v589 = vsel %vm528, %v581, 0
    %591 = vmatpush.bf16.msra.mxu0 0
    %592 = vmatpush.bf16.msra.mxu0 0
    %593 = vmatpush.bf16.msra.mxu0 0
    %594 = vmatpush.bf16.msra.mxu0 0
    %595 = vmatpush.bf16.msra.mxu0 0
    %596 = vmatpush.bf16.msra.mxu0 0
    %597 = vmatpush.bf16.msra.mxu0 0
    %598 = vmatpush.bf16.msra.mxu0 %v586
    %599 = vmatmul.bf16.gmra.mxu0 %v589
    %v600 = vpop.f32.mrf.mxu0
    %v601 = vadd.f32 0.0, %v600
    %v602 = vpop.f32.mrf.mxu0
    %v603 = vadd.f32 0.0, %v602
    %604 = vdwg.mxu0
    %v607 = vunpack.c.l.b16 %v575
    %v608 = vunpack.c.l.b16 %v576
    %v609 = vpack.c.b16 %v608, %v607
    %v612 = vunpack.c.l.b16 %v464
    %v613 = vunpack.c.l.b16 %v466
    %v614 = vpack.c.b16 %v613, %v612
    %v617 = vsel %vm528, %v609, 0
    %619 = vmatpush.bf16.msra.mxu0 0
    %620 = vmatpush.bf16.msra.mxu0 0
    %621 = vmatpush.bf16.msra.mxu0 0
    %622 = vmatpush.bf16.msra.mxu0 0
    %623 = vmatpush.bf16.msra.mxu0 0
    %624 = vmatpush.bf16.msra.mxu0 0
    %625 = vmatpush.bf16.msra.mxu0 0
    %626 = vmatpush.bf16.msra.mxu0 %v614
    %627 = vmatmul.bf16.gmra.mxu0 %v617
    %v628 = vpop.f32.mrf.mxu0
    %v629 = vadd.f32 0.0, %v628
    %v630 = vpop.f32.mrf.mxu0
    %v631 = vadd.f32 0.0, %v630
    %632 = vdwg.mxu0
    %633 = vrot.lane.b32.xlu0 %v477, 96
    %v634 = vpop.permute.xlu0 %633
    %635 = vrot.lane.b32.xlu0 %v480, 96
    %v636 = vpop.permute.xlu0 %635
    %v638 = vsel %vm481, %v634, 0
    %v641 = vsel %vm481, %v636, 0
    %643 = vmatpush.bf16.xpose.msra.mxu0 0
    %644 = vmatpush.bf16.xpose.msra.mxu0 0
    %645 = vmatpush.bf16.xpose.msra.mxu0 0
    %646 = vmatpush.bf16.xpose.msra.mxu0 0
    %647 = vmatpush.bf16.xpose.msra.mxu0 0
    %648 = vmatpush.bf16.xpose.msra.mxu0 0
    %649 = vmatpush.bf16.xpose.msra.mxu0 0
    %650 = vmatpush.bf16.xpose.msra.mxu0 %v641
    %651 = vmatmul.bf16.gmra.mxu0 %v638
    %v652 = vpop.f32.mrf.mxu0
    %v653 = vadd.f32 0.0, %v652
    %v654 = vpop.f32.mrf.mxu0
    %v655 = vadd.f32 0.0, %v654
    %656 = vdwg.mxu0
    %657 = vrot.lane.b32.xlu0 %v504, 96
    %v658 = vpop.permute.xlu0 %657
    %659 = vrot.lane.b32.xlu0 %v507, 96
    %v660 = vpop.permute.xlu0 %659
    %v662 = vsel %vm481, %v658, 0
    %v665 = vsel %vm481, %v660, 0
    %667 = vmatpush.bf16.xpose.msra.mxu0 0
    %668 = vmatpush.bf16.xpose.msra.mxu0 0
    %669 = vmatpush.bf16.xpose.msra.mxu0 0
    %670 = vmatpush.bf16.xpose.msra.mxu0 0
    %671 = vmatpush.bf16.xpose.msra.mxu0 0
    %672 = vmatpush.bf16.xpose.msra.mxu0 0
    %673 = vmatpush.bf16.xpose.msra.mxu0 0
    %674 = vmatpush.bf16.xpose.msra.mxu0 %v665
    %675 = vmatmul.bf16.gmra.mxu0 %v662
    %v676 = vpop.f32.mrf.mxu0
    %v677 = vadd.f32 0.0, %v676
    %v678 = vpop.f32.mrf.mxu0
    %v679 = vadd.f32 0.0, %v678
    %680 = vdwg.mxu0
    %v681 = vsel %vm528, %v653, -inf
    %682 = vmax.xlane.f32.xlu0 %v681
    %v683 = vpop.xlane.xlu0 %682
    %v684 = vsel %vm528, %v655, -inf
    %685 = vmax.xlane.f32.xlu0 %v684
    %v686 = vpop.xlane.xlu0 %685
    %v687 = vsel %vm528, %v677, -inf
    %688 = vmax.xlane.f32.xlu0 %v687
    %v689 = vpop.xlane.xlu0 %688
    %v690 = vsel %vm528, %v679, -inf
    %691 = vmax.xlane.f32.xlu0 %v690
    %v692 = vpop.xlane.xlu0 %691
    %v693 = vsub.f32 %v653, %v683
    %v694 = vsub.f32 %v655, %v686
    %v695 = vsub.f32 %v677, %v689
    %v696 = vsub.f32 %v679, %v692
    %v697 = vmul.f32 %v693, 1.442695
    %v698 = vpow.pop %v697
    %v699 = vmul.f32 %v694, 1.442695
    %v700 = vpow.pop %v699
    %v701 = vmul.f32 %v695, 1.442695
    %v702 = vpow.pop %v701
    %v703 = vmul.f32 %v696, 1.442695
    %v704 = vpow.pop %v703
    %v705 = vsel %vm528, %v698, 0.0
    %706 = vadd.xlane.f32.xlu0 %v705
    %v707 = vpop.xlane.xlu0 %706
    %v708 = vsel %vm528, %v700, 0.0
    %709 = vadd.xlane.f32.xlu0 %v708
    %v710 = vpop.xlane.xlu0 %709
    %v711 = vsel %vm528, %v702, 0.0
    %712 = vadd.xlane.f32.xlu0 %v711
    %v713 = vpop.xlane.xlu0 %712
    %v714 = vsel %vm528, %v704, 0.0
    %715 = vadd.xlane.f32.xlu0 %v714
    %v716 = vpop.xlane.xlu0 %715
    %v717 = vrcp.pop %v707
    %v718 = vrcp.pop %v710
    %v719 = vrcp.pop %v713
    %v720 = vrcp.pop %v716
    %v721 = vmul.f32 %v698, %v717
    %v722 = vmul.f32 %v700, %v718
    %v723 = vmul.f32 %v702, %v719
    %v724 = vmul.f32 %v704, %v720
    %v725 = vpack.c.bf16 %v721, %v721
    %v726 = vpack.c.bf16 %v722, %v722
    %v727 = vpack.c.bf16 %v723, %v723
    %v728 = vpack.c.bf16 %v724, %v724
    %v731 = vunpack.c.l.b16 %v725
    %v732 = vunpack.c.l.b16 %v726
    %v733 = vpack.c.b16 %v732, %v731
    %734 = vrot.lane.b32.xlu0 %v586, 96
    %v735 = vpop.permute.xlu0 %734
    %v738 = vsel %vm528, %v733, 0
    %740 = vmatpush.bf16.msra.mxu0 0
    %741 = vmatpush.bf16.msra.mxu0 0
    %742 = vmatpush.bf16.msra.mxu0 0
    %743 = vmatpush.bf16.msra.mxu0 0
    %744 = vmatpush.bf16.msra.mxu0 0
    %745 = vmatpush.bf16.msra.mxu0 0
    %746 = vmatpush.bf16.msra.mxu0 0
    %747 = vmatpush.bf16.msra.mxu0 %v735
    %748 = vmatmul.bf16.gmra.mxu0 %v738
    %v749 = vpop.f32.mrf.mxu0
    %v750 = vadd.f32 0.0, %v749
    %v751 = vpop.f32.mrf.mxu0
    %v752 = vadd.f32 0.0, %v751
    %753 = vdwg.mxu0
    %v756 = vunpack.c.l.b16 %v727
    %v757 = vunpack.c.l.b16 %v728
    %v758 = vpack.c.b16 %v757, %v756
    %759 = vrot.lane.b32.xlu0 %v614, 96
    %v760 = vpop.permute.xlu0 %759
    %v763 = vsel %vm528, %v758, 0
    %765 = vmatpush.bf16.msra.mxu0 0
    %766 = vmatpush.bf16.msra.mxu0 0
    %767 = vmatpush.bf16.msra.mxu0 0
    %768 = vmatpush.bf16.msra.mxu0 0
    %769 = vmatpush.bf16.msra.mxu0 0
    %770 = vmatpush.bf16.msra.mxu0 0
    %771 = vmatpush.bf16.msra.mxu0 0
    %772 = vmatpush.bf16.msra.mxu0 %v760
    %773 = vmatmul.bf16.gmra.mxu0 %v763
    %v774 = vpop.f32.mrf.mxu0
    %v775 = vadd.f32 0.0, %v774
    %v776 = vpop.f32.mrf.mxu0
    %v777 = vadd.f32 0.0, %v776
    %778 = vdwg.mxu0
    %779 = vrot.lane.b32.xlu0 %v477, 64
    %v780 = vpop.permute.xlu0 %779
    %781 = vrot.lane.b32.xlu0 %v480, 64
    %v782 = vpop.permute.xlu0 %781
    %v784 = vsel %vm481, %v780, 0
    %v787 = vsel %vm481, %v782, 0
    %789 = vmatpush.bf16.xpose.msra.mxu0 0
    %790 = vmatpush.bf16.xpose.msra.mxu0 0
    %791 = vmatpush.bf16.xpose.msra.mxu0 0
    %792 = vmatpush.bf16.xpose.msra.mxu0 0
    %793 = vmatpush.bf16.xpose.msra.mxu0 0
    %794 = vmatpush.bf16.xpose.msra.mxu0 0
    %795 = vmatpush.bf16.xpose.msra.mxu0 0
    %796 = vmatpush.bf16.xpose.msra.mxu0 %v787
    %797 = vmatmul.bf16.gmra.mxu0 %v784
    %v798 = vpop.f32.mrf.mxu0
    %v799 = vadd.f32 0.0, %v798
    %v800 = vpop.f32.mrf.mxu0
    %v801 = vadd.f32 0.0, %v800
    %802 = vdwg.mxu0
    %803 = vrot.lane.b32.xlu0 %v504, 64
    %v804 = vpop.permute.xlu0 %803
    %805 = vrot.lane.b32.xlu0 %v507, 64
    %v806 = vpop.permute.xlu0 %805
    %v808 = vsel %vm481, %v804, 0
    %v811 = vsel %vm481, %v806, 0
    %813 = vmatpush.bf16.xpose.msra.mxu0 0
    %814 = vmatpush.bf16.xpose.msra.mxu0 0
    %815 = vmatpush.bf16.xpose.msra.mxu0 0
    %816 = vmatpush.bf16.xpose.msra.mxu0 0
    %817 = vmatpush.bf16.xpose.msra.mxu0 0
    %818 = vmatpush.bf16.xpose.msra.mxu0 0
    %819 = vmatpush.bf16.xpose.msra.mxu0 0
    %820 = vmatpush.bf16.xpose.msra.mxu0 %v811
    %821 = vmatmul.bf16.gmra.mxu0 %v808
    %v822 = vpop.f32.mrf.mxu0
    %v823 = vadd.f32 0.0, %v822
    %v824 = vpop.f32.mrf.mxu0
    %v825 = vadd.f32 0.0, %v824
    %826 = vdwg.mxu0
    %v827 = vsel %vm528, %v799, -inf
    %828 = vmax.xlane.f32.xlu0 %v827
    %v829 = vpop.xlane.xlu0 %828
    %v830 = vsel %vm528, %v801, -inf
    %831 = vmax.xlane.f32.xlu0 %v830
    %v832 = vpop.xlane.xlu0 %831
    %v833 = vsel %vm528, %v823, -inf
    %834 = vmax.xlane.f32.xlu0 %v833
    %v835 = vpop.xlane.xlu0 %834
    %v836 = vsel %vm528, %v825, -inf
    %837 = vmax.xlane.f32.xlu0 %v836
    %v838 = vpop.xlane.xlu0 %837
    %v839 = vsub.f32 %v799, %v829
    %v840 = vsub.f32 %v801, %v832
    %v841 = vsub.f32 %v823, %v835
    %v842 = vsub.f32 %v825, %v838
    %v843 = vmul.f32 %v839, 1.442695
    %v844 = vpow.pop %v843
    %v845 = vmul.f32 %v840, 1.442695
    %v846 = vpow.pop %v845
    %v847 = vmul.f32 %v841, 1.442695
    %v848 = vpow.pop %v847
    %v849 = vmul.f32 %v842, 1.442695
    %v850 = vpow.pop %v849
    %v851 = vsel %vm528, %v844, 0.0
    %852 = vadd.xlane.f32.xlu0 %v851
    %v853 = vpop.xlane.xlu0 %852
    %v854 = vsel %vm528, %v846, 0.0
    %855 = vadd.xlane.f32.xlu0 %v854
    %v856 = vpop.xlane.xlu0 %855
    %v857 = vsel %vm528, %v848, 0.0
    %858 = vadd.xlane.f32.xlu0 %v857
    %v859 = vpop.xlane.xlu0 %858
    %v860 = vsel %vm528, %v850, 0.0
    %861 = vadd.xlane.f32.xlu0 %v860
    %v862 = vpop.xlane.xlu0 %861
    %v863 = vrcp.pop %v853
    %v864 = vrcp.pop %v856
    %v865 = vrcp.pop %v859
    %v866 = vrcp.pop %v862
    %v867 = vmul.f32 %v844, %v863
    %v868 = vmul.f32 %v846, %v864
    %v869 = vmul.f32 %v848, %v865
    %v870 = vmul.f32 %v850, %v866
    %v871 = vpack.c.bf16 %v867, %v867
    %v872 = vpack.c.bf16 %v868, %v868
    %v873 = vpack.c.bf16 %v869, %v869
    %v874 = vpack.c.bf16 %v870, %v870
    %v877 = vunpack.c.l.b16 %v871
    %v878 = vunpack.c.l.b16 %v872
    %v879 = vpack.c.b16 %v878, %v877
    %880 = vrot.lane.b32.xlu0 %v586, 64
    %v881 = vpop.permute.xlu0 %880
    %v884 = vsel %vm528, %v879, 0
    %886 = vmatpush.bf16.msra.mxu0 0
    %887 = vmatpush.bf16.msra.mxu0 0
    %888 = vmatpush.bf16.msra.mxu0 0
    %889 = vmatpush.bf16.msra.mxu0 0
    %890 = vmatpush.bf16.msra.mxu0 0
    %891 = vmatpush.bf16.msra.mxu0 0
    %892 = vmatpush.bf16.msra.mxu0 0
    %893 = vmatpush.bf16.msra.mxu0 %v881
    %894 = vmatmul.bf16.gmra.mxu0 %v884
    %v895 = vpop.f32.mrf.mxu0
    %v896 = vadd.f32 0.0, %v895
    %v897 = vpop.f32.mrf.mxu0
    %v898 = vadd.f32 0.0, %v897
    %899 = vdwg.mxu0
    %v902 = vunpack.c.l.b16 %v873
    %v903 = vunpack.c.l.b16 %v874
    %v904 = vpack.c.b16 %v903, %v902
    %905 = vrot.lane.b32.xlu0 %v614, 64
    %v906 = vpop.permute.xlu0 %905
    %v909 = vsel %vm528, %v904, 0
    %911 = vmatpush.bf16.msra.mxu0 0
    %912 = vmatpush.bf16.msra.mxu0 0
    %913 = vmatpush.bf16.msra.mxu0 0
    %914 = vmatpush.bf16.msra.mxu0 0
    %915 = vmatpush.bf16.msra.mxu0 0
    %916 = vmatpush.bf16.msra.mxu0 0
    %917 = vmatpush.bf16.msra.mxu0 0
    %918 = vmatpush.bf16.msra.mxu0 %v906
    %919 = vmatmul.bf16.gmra.mxu0 %v909
    %v920 = vpop.f32.mrf.mxu0
    %v921 = vadd.f32 0.0, %v920
    %v922 = vpop.f32.mrf.mxu0
    %v923 = vadd.f32 0.0, %v922
    %924 = vdwg.mxu0
    %925 = vrot.lane.b32.xlu0 %v477, 32
    %v926 = vpop.permute.xlu0 %925
    %927 = vrot.lane.b32.xlu0 %v480, 32
    %v928 = vpop.permute.xlu0 %927
    %v930 = vsel %vm481, %v926, 0
    %v933 = vsel %vm481, %v928, 0
    %935 = vmatpush.bf16.xpose.msra.mxu0 0
    %936 = vmatpush.bf16.xpose.msra.mxu0 0
    %937 = vmatpush.bf16.xpose.msra.mxu0 0
    %938 = vmatpush.bf16.xpose.msra.mxu0 0
    %939 = vmatpush.bf16.xpose.msra.mxu0 0
    %940 = vmatpush.bf16.xpose.msra.mxu0 0
    %941 = vmatpush.bf16.xpose.msra.mxu0 0
    %942 = vmatpush.bf16.xpose.msra.mxu0 %v933
    %943 = vmatmul.bf16.gmra.mxu0 %v930
    %v944 = vpop.f32.mrf.mxu0
    %v945 = vadd.f32 0.0, %v944
    %v946 = vpop.f32.mrf.mxu0
    %v947 = vadd.f32 0.0, %v946
    %948 = vdwg.mxu0
    %949 = vrot.lane.b32.xlu0 %v504, 32
    %v950 = vpop.permute.xlu0 %949
    %951 = vrot.lane.b32.xlu0 %v507, 32
    %v952 = vpop.permute.xlu0 %951
    %v954 = vsel %vm481, %v950, 0
    %v957 = vsel %vm481, %v952, 0
    %959 = vmatpush.bf16.xpose.msra.mxu0 0
    %960 = vmatpush.bf16.xpose.msra.mxu0 0
    %961 = vmatpush.bf16.xpose.msra.mxu0 0
    %962 = vmatpush.bf16.xpose.msra.mxu0 0
    %963 = vmatpush.bf16.xpose.msra.mxu0 0
    %964 = vmatpush.bf16.xpose.msra.mxu0 0
    %965 = vmatpush.bf16.xpose.msra.mxu0 0
    %966 = vmatpush.bf16.xpose.msra.mxu0 %v957
    %967 = vmatmul.bf16.gmra.mxu0 %v954
    %v968 = vpop.f32.mrf.mxu0
    %v969 = vadd.f32 0.0, %v968
    %v970 = vpop.f32.mrf.mxu0
    %v971 = vadd.f32 0.0, %v970
    %972 = vdwg.mxu0
    %v973 = vsel %vm528, %v945, -inf
    %974 = vmax.xlane.f32.xlu0 %v973
    %v975 = vpop.xlane.xlu0 %974
    %v976 = vsel %vm528, %v947, -inf
    %977 = vmax.xlane.f32.xlu0 %v976
    %v978 = vpop.xlane.xlu0 %977
    %v979 = vsel %vm528, %v969, -inf
    %980 = vmax.xlane.f32.xlu0 %v979
    %v981 = vpop.xlane.xlu0 %980
    %v982 = vsel %vm528, %v971, -inf
    %983 = vmax.xlane.f32.xlu0 %v982
    %v984 = vpop.xlane.xlu0 %983
    %v985 = vsub.f32 %v945, %v975
    %v986 = vsub.f32 %v947, %v978
    %v987 = vsub.f32 %v969, %v981
    %v988 = vsub.f32 %v971, %v984
    %v989 = vmul.f32 %v985, 1.442695
    %v990 = vpow.pop %v989
    %v991 = vmul.f32 %v986, 1.442695
    %v992 = vpow.pop %v991
    %v993 = vmul.f32 %v987, 1.442695
    %v994 = vpow.pop %v993
    %v995 = vmul.f32 %v988, 1.442695
    %v996 = vpow.pop %v995
    %v997 = vsel %vm528, %v990, 0.0
    %998 = vadd.xlane.f32.xlu0 %v997
    %v999 = vpop.xlane.xlu0 %998
    %v1000 = vsel %vm528, %v992, 0.0
    %1001 = vadd.xlane.f32.xlu0 %v1000
    %v1002 = vpop.xlane.xlu0 %1001
    %v1003 = vsel %vm528, %v994, 0.0
    %1004 = vadd.xlane.f32.xlu0 %v1003
    %v1005 = vpop.xlane.xlu0 %1004
    %v1006 = vsel %vm528, %v996, 0.0
    %1007 = vadd.xlane.f32.xlu0 %v1006
    %v1008 = vpop.xlane.xlu0 %1007
    %v1009 = vrcp.pop %v999
    %v1010 = vrcp.pop %v1002
    %v1011 = vrcp.pop %v1005
    %v1012 = vrcp.pop %v1008
    %v1013 = vmul.f32 %v990, %v1009
    %v1014 = vmul.f32 %v992, %v1010
    %v1015 = vmul.f32 %v994, %v1011
    %v1016 = vmul.f32 %v996, %v1012
    %v1017 = vpack.c.bf16 %v1013, %v1013
    %v1018 = vpack.c.bf16 %v1014, %v1014
    %v1019 = vpack.c.bf16 %v1015, %v1015
    %v1020 = vpack.c.bf16 %v1016, %v1016
    %v1023 = vunpack.c.l.b16 %v1017
    %v1024 = vunpack.c.l.b16 %v1018
    %v1025 = vpack.c.b16 %v1024, %v1023
    %1026 = vrot.lane.b32.xlu0 %v586, 32
    %v1027 = vpop.permute.xlu0 %1026
    %v1030 = vsel %vm528, %v1025, 0
    %1032 = vmatpush.bf16.msra.mxu0 0
    %1033 = vmatpush.bf16.msra.mxu0 0
    %1034 = vmatpush.bf16.msra.mxu0 0
    %1035 = vmatpush.bf16.msra.mxu0 0
    %1036 = vmatpush.bf16.msra.mxu0 0
    %1037 = vmatpush.bf16.msra.mxu0 0
    %1038 = vmatpush.bf16.msra.mxu0 0
    %1039 = vmatpush.bf16.msra.mxu0 %v1027
    %1040 = vmatmul.bf16.gmra.mxu0 %v1030
    %v1041 = vpop.f32.mrf.mxu0
    %v1042 = vadd.f32 0.0, %v1041
    %v1043 = vpop.f32.mrf.mxu0
    %v1044 = vadd.f32 0.0, %v1043
    %1045 = vdwg.mxu0
    %v1048 = vunpack.c.l.b16 %v1019
    %v1049 = vunpack.c.l.b16 %v1020
    %v1050 = vpack.c.b16 %v1049, %v1048
    %1051 = vrot.lane.b32.xlu0 %v614, 32
    %v1052 = vpop.permute.xlu0 %1051
    %v1055 = vsel %vm528, %v1050, 0
    %1057 = vmatpush.bf16.msra.mxu0 0
    %1058 = vmatpush.bf16.msra.mxu0 0
    %1059 = vmatpush.bf16.msra.mxu0 0
    %1060 = vmatpush.bf16.msra.mxu0 0
    %1061 = vmatpush.bf16.msra.mxu0 0
    %1062 = vmatpush.bf16.msra.mxu0 0
    %1063 = vmatpush.bf16.msra.mxu0 0
    %1064 = vmatpush.bf16.msra.mxu0 %v1052
    %1065 = vmatmul.bf16.gmra.mxu0 %v1055
    %v1066 = vpop.f32.mrf.mxu0
    %v1067 = vadd.f32 0.0, %v1066
    %v1068 = vpop.f32.mrf.mxu0
    %v1069 = vadd.f32 0.0, %v1068
    %1070 = vdwg.mxu0
    %1075 = vrot.lane.b32.xlu0 %v750, 32
    %v1076 = vpop.permute.xlu0 %1075
    %1077 = vrot.lane.b32.xlu0 %v752, 32
    %v1078 = vpop.permute.xlu0 %1077
    %1079 = vrot.lane.b32.xlu0 %v775, 32
    %v1080 = vpop.permute.xlu0 %1079
    %1081 = vrot.lane.b32.xlu0 %v777, 32
    %v1082 = vpop.permute.xlu0 %1081
    %1091 = vrot.lane.b32.xlu0 %v896, 64
    %v1092 = vpop.permute.xlu0 %1091
    %1093 = vrot.lane.b32.xlu0 %v898, 64
    %v1094 = vpop.permute.xlu0 %1093
    %1095 = vrot.lane.b32.xlu0 %v921, 64
    %v1096 = vpop.permute.xlu0 %1095
    %1097 = vrot.lane.b32.xlu0 %v923, 64
    %v1098 = vpop.permute.xlu0 %1097
    %1107 = vrot.lane.b32.xlu0 %v1042, 96
    %v1108 = vpop.permute.xlu0 %1107
    %1109 = vrot.lane.b32.xlu0 %v1044, 96
    %v1110 = vpop.permute.xlu0 %1109
    %1111 = vrot.lane.b32.xlu0 %v1067, 96
    %v1112 = vpop.permute.xlu0 %1111
    %1113 = vrot.lane.b32.xlu0 %v1069, 96
    %v1114 = vpop.permute.xlu0 %1113
    %v1119 = vsel %vm481, %v601, %v1076
    %v1120 = vsel %vm481, %v603, %v1078
    %v1121 = vsel %vm481, %v629, %v1080
    %v1122 = vsel %vm481, %v631, %v1082
    %v1123 = vsel %vm179, %v1119, %v1092
    %v1124 = vsel %vm179, %v1120, %v1094
    %v1125 = vsel %vm179, %v1121, %v1096
    %v1126 = vsel %vm179, %v1122, %v1098
    %vm1127 = vcmask 785408
    %v1128 = vsel %vm1127, %v1123, %v1108
    %v1129 = vsel %vm1127, %v1124, %v1110
    %v1130 = vsel %vm1127, %v1125, %v1112
    %v1131 = vsel %vm1127, %v1126, %v1114
    %v1132 = vpack.c.bf16 %v1129, %v1128
    %v1133 = vpack.c.bf16 %v1131, %v1130
    %v1134 = vld [vmem:[%s6] sm:$0xf]
    %v1135 = vld [vmem:[%s6 + $0x4] sm:$0xf]
    %v1136 = vld [vmem:[%s6 + $0x8] sm:$0xf]
    %v1137 = vld [vmem:[%s6 + $0xc] sm:$0xf]
    %v1138 = vld [vmem:[%s6 + $0x10] sm:$0xf]
    %v1139 = vld [vmem:[%s6 + $0x14] sm:$0xf]
    %v1140 = vld [vmem:[%s6 + $0x18] sm:$0xf]
    %v1141 = vld [vmem:[%s6 + $0x1c] sm:$0xf]
    %v1142 = vld [vmem:[%s6 + $0x20] sm:$0xf]
    %v1143 = vld [vmem:[%s6 + $0x24] sm:$0xf]
    %v1144 = vld [vmem:[%s6 + $0x28] sm:$0xf]
    %v1145 = vld [vmem:[%s6 + $0x2c] sm:$0xf]
    %v1146 = vld [vmem:[%s6 + $0x30] sm:$0xf]
    %v1147 = vld [vmem:[%s6 + $0x34] sm:$0xf]
    %v1148 = vld [vmem:[%s6 + $0x38] sm:$0xf]
    %v1149 = vld [vmem:[%s6 + $0x3c] sm:$0xf]
    %v1150 = vld [vmem:[%s7] sm:$0x1]
    %v1152 = vperm.slane %v1150, 0
    %v1170 = vunpack.c.l.b16 %v1134
    %v1171 = vunpack.c.l.b16 %v1135
    %v1172 = vunpack.c.l.b16 %v1136
    %v1173 = vunpack.c.l.b16 %v1137
    %v1174 = vunpack.c.l.b16 %v1138
    %v1175 = vunpack.c.l.b16 %v1139
    %v1176 = vunpack.c.l.b16 %v1140
    %v1177 = vunpack.c.l.b16 %v1141
    %v1178 = vunpack.c.l.b16 %v1142
    %v1179 = vunpack.c.l.b16 %v1143
    %v1180 = vunpack.c.l.b16 %v1144
    %v1181 = vunpack.c.l.b16 %v1145
    %v1182 = vunpack.c.l.b16 %v1146
    %v1183 = vunpack.c.l.b16 %v1147
    %v1184 = vunpack.c.l.b16 %v1148
    %v1185 = vunpack.c.l.b16 %v1149
    %v1186 = vpack.c.b16 %v1171, %v1170
    %v1187 = vpack.c.b16 %v1173, %v1172
    %v1188 = vpack.c.b16 %v1175, %v1174
    %v1189 = vpack.c.b16 %v1177, %v1176
    %v1190 = vpack.c.b16 %v1179, %v1178
    %v1191 = vpack.c.b16 %v1181, %v1180
    %v1192 = vpack.c.b16 %v1183, %v1182
    %v1193 = vpack.c.b16 %v1185, %v1184
    %1202 = vmatpush.bf16.msra.mxu0 %v1193
    %1203 = vmatpush.bf16.msra.mxu0 %v1192
    %1204 = vmatpush.bf16.msra.mxu0 %v1191
    %1205 = vmatpush.bf16.msra.mxu0 %v1190
    %1206 = vmatpush.bf16.msra.mxu0 %v1189
    %1207 = vmatpush.bf16.msra.mxu0 %v1188
    %1208 = vmatpush.bf16.msra.mxu0 %v1187
    %1209 = vmatpush.bf16.msra.mxu0 %v1186
    %1210 = vmatmul.bf16.gmra.mxu0 %v1132
    %v1211 = vpop.f32.mrf.mxu0
    %v1212 = vadd.f32 %v1152, %v1211
    %v1213 = vpop.f32.mrf.mxu0
    %v1214 = vadd.f32 %v1152, %v1213
    %1215 = vmatmul.bf16.gmra.mxu0 %v1133
    %v1216 = vpop.f32.mrf.mxu0
    %v1217 = vadd.f32 %v1152, %v1216
    %v1218 = vpop.f32.mrf.mxu0
    %v1219 = vadd.f32 %v1152, %v1218
    %1220 = vdwg.mxu0
    %v1221 = vadd.f32 %v228, %v1212
    %v1222 = vadd.f32 %v229, %v1214
    %v1223 = vadd.f32 %v230, %v1217
    %v1224 = vadd.f32 %v231, %v1219
    %v1225 = vld [vmem:[%s8] sm:$0x1]
    %v1226 = vld [vmem:[%s9] sm:$0x1]
    %1227 = vadd.xlane.f32.xlu0 %v1221
    %v1228 = vpop.xlane.xlu0 %1227
    %1229 = vadd.xlane.f32.xlu0 %v1222
    %v1230 = vpop.xlane.xlu0 %1229
    %1231 = vadd.xlane.f32.xlu0 %v1223
    %v1232 = vpop.xlane.xlu0 %1231
    %1233 = vadd.xlane.f32.xlu0 %v1224
    %v1234 = vpop.xlane.xlu0 %1233
    %v1235 = vrcp.pop 128.0
    %v1236 = vmul.f32 128.0, %v1235
    %v1237 = vsub.f32 1.0, %v1236
    %v1238 = vmul.f32 %v1235, %v1237
    %v1239 = vadd.f32 %v1235, %v1238
    %vm1240 = vweird.f32 %v1235
    %v1241 = vsel %vm1240, %v1235, %v1239
    %v1242 = vmul.f32 %v1228, %v1241
    %v1243 = vmul.f32 %v1230, %v1241
    %v1244 = vmul.f32 %v1232, %v1241
    %v1245 = vmul.f32 %v1234, %v1241
    %v1246 = vsub.f32 %v1221, %v1242
    %v1247 = vsub.f32 %v1222, %v1243
    %v1248 = vsub.f32 %v1223, %v1244
    %v1249 = vsub.f32 %v1224, %v1245
    %v1250 = vmul.f32 %v1246, %v1246
    %v1251 = vmul.f32 %v1247, %v1247
    %v1252 = vmul.f32 %v1248, %v1248
    %v1253 = vmul.f32 %v1249, %v1249
    %1254 = vadd.xlane.f32.xlu0 %v1250
    %v1255 = vpop.xlane.xlu0 %1254
    %1256 = vadd.xlane.f32.xlu0 %v1251
    %v1257 = vpop.xlane.xlu0 %1256
    %1258 = vadd.xlane.f32.xlu0 %v1252
    %v1259 = vpop.xlane.xlu0 %1258
    %1260 = vadd.xlane.f32.xlu0 %v1253
    %v1261 = vpop.xlane.xlu0 %1260
    %v1262 = vmul.f32 %v1255, %v1241
    %v1263 = vmul.f32 %v1257, %v1241
    %v1264 = vmul.f32 %v1259, %v1241
    %v1265 = vmul.f32 %v1261, %v1241
    %v1266 = vadd.f32 %v1262, 1e-05
    %v1267 = vadd.f32 %v1263, 1e-05
    %v1268 = vadd.f32 %v1264, 1e-05
    %v1269 = vadd.f32 %v1265, 1e-05
    %v1270 = vrsqrt.pop %v1266
    %v1271 = vmul.f32 %v1270, %v1266
    %v1272 = vmul.f32 %v1271, %v1270
    %v1273 = vmul.f32 0.5, %v1272
    %v1274 = vsub.f32 1.5, %v1273
    %v1275 = vmul.f32 %v1270, %v1274
    %vm1276 = vweird.f32 %v1266
    %vm1277 = vweird.f32 %v1270
    %vm1278 = vmor %vm1276, %vm1277
    %v1279 = vsel %vm1278, %v1270, %v1275
    %v1280 = vrsqrt.pop %v1267
    %v1281 = vmul.f32 %v1280, %v1267
    %v1282 = vmul.f32 %v1281, %v1280
    %v1283 = vmul.f32 0.5, %v1282
    %v1284 = vsub.f32 1.5, %v1283
    %v1285 = vmul.f32 %v1280, %v1284
    %vm1286 = vweird.f32 %v1267
    %vm1287 = vweird.f32 %v1280
    %vm1288 = vmor %vm1286, %vm1287
    %v1289 = vsel %vm1288, %v1280, %v1285
    %v1290 = vrsqrt.pop %v1268
    %v1291 = vmul.f32 %v1290, %v1268
    %v1292 = vmul.f32 %v1291, %v1290
    %v1293 = vmul.f32 0.5, %v1292
    %v1294 = vsub.f32 1.5, %v1293
    %v1295 = vmul.f32 %v1290, %v1294
    %vm1296 = vweird.f32 %v1268
    %vm1297 = vweird.f32 %v1290
    %vm1298 = vmor %vm1296, %vm1297
    %v1299 = vsel %vm1298, %v1290, %v1295
    %v1300 = vrsqrt.pop %v1269
    %v1301 = vmul.f32 %v1300, %v1269
    %v1302 = vmul.f32 %v1301, %v1300
    %v1303 = vmul.f32 0.5, %v1302
    %v1304 = vsub.f32 1.5, %v1303
    %v1305 = vmul.f32 %v1300, %v1304
    %vm1306 = vweird.f32 %v1269
    %vm1307 = vweird.f32 %v1300
    %vm1308 = vmor %vm1306, %vm1307
    %v1309 = vsel %vm1308, %v1300, %v1305
    %v1310 = vmul.f32 %v1246, %v1279
    %v1311 = vmul.f32 %v1247, %v1289
    %v1312 = vmul.f32 %v1248, %v1299
    %v1313 = vmul.f32 %v1249, %v1309
    %v1315 = vperm.slane %v1225, 0
    %v1317 = vmul.f32 %v1310, %v1315
    %v1318 = vmul.f32 %v1311, %v1315
    %v1319 = vmul.f32 %v1312, %v1315
    %v1320 = vmul.f32 %v1313, %v1315
    %v1322 = vperm.slane %v1226, 0
    %v1324 = vadd.f32 %v1317, %v1322
    %v1325 = vadd.f32 %v1318, %v1322
    %v1326 = vadd.f32 %v1319, %v1322
    %v1327 = vadd.f32 %v1320, %v1322
    %v1328 = vpack.c.bf16 %v1325, %v1324
    %v1329 = vpack.c.bf16 %v1327, %v1326
    %v1330 = vld [vmem:[%s10] sm:$0xff]
    %v1331 = vld [vmem:[%s10 + $0x8] sm:$0xff]
    %v1332 = vld [vmem:[%s10 + $0x10] sm:$0xff]
    %v1333 = vld [vmem:[%s10 + $0x18] sm:$0xff]
    %v1334 = vld [vmem:[%s10 + $0x20] sm:$0xff]
    %v1335 = vld [vmem:[%s10 + $0x28] sm:$0xff]
    %v1336 = vld [vmem:[%s10 + $0x30] sm:$0xff]
    %v1337 = vld [vmem:[%s10 + $0x38] sm:$0xff]
    %v1338 = vld [vmem:[%s10 + $0x40] sm:$0xff]
    %v1339 = vld [vmem:[%s10 + $0x48] sm:$0xff]
    %v1340 = vld [vmem:[%s10 + $0x50] sm:$0xff]
    %v1341 = vld [vmem:[%s10 + $0x58] sm:$0xff]
    %v1342 = vld [vmem:[%s10 + $0x60] sm:$0xff]
    %v1343 = vld [vmem:[%s10 + $0x68] sm:$0xff]
    %v1344 = vld [vmem:[%s10 + $0x70] sm:$0xff]
    %v1345 = vld [vmem:[%s10 + $0x78] sm:$0xff]
    %v1346 = vld [vmem:[%s11] sm:$0x3]
    %v1348 = vperm.slane %v1346, 0
    %v1349 = vperm.slane %v1346, 1
    %v1368 = vunpack.c.l.b16 %v1330
    %v1369 = vunpack.c.h.b16 %v1330
    %v1370 = vunpack.c.l.b16 %v1331
    %v1371 = vunpack.c.h.b16 %v1331
    %v1372 = vunpack.c.l.b16 %v1332
    %v1373 = vunpack.c.h.b16 %v1332
    %v1374 = vunpack.c.l.b16 %v1333
    %v1375 = vunpack.c.h.b16 %v1333
    %v1376 = vunpack.c.l.b16 %v1334
    %v1377 = vunpack.c.h.b16 %v1334
    %v1378 = vunpack.c.l.b16 %v1335
    %v1379 = vunpack.c.h.b16 %v1335
    %v1380 = vunpack.c.l.b16 %v1336
    %v1381 = vunpack.c.h.b16 %v1336
    %v1382 = vunpack.c.l.b16 %v1337
    %v1383 = vunpack.c.h.b16 %v1337
    %v1384 = vunpack.c.l.b16 %v1338
    %v1385 = vunpack.c.h.b16 %v1338
    %v1386 = vunpack.c.l.b16 %v1339
    %v1387 = vunpack.c.h.b16 %v1339
    %v1388 = vunpack.c.l.b16 %v1340
    %v1389 = vunpack.c.h.b16 %v1340
    %v1390 = vunpack.c.l.b16 %v1341
    %v1391 = vunpack.c.h.b16 %v1341
    %v1392 = vunpack.c.l.b16 %v1342
    %v1393 = vunpack.c.h.b16 %v1342
    %v1394 = vunpack.c.l.b16 %v1343
    %v1395 = vunpack.c.h.b16 %v1343
    %v1396 = vunpack.c.l.b16 %v1344
    %v1397 = vunpack.c.h.b16 %v1344
    %v1398 = vunpack.c.l.b16 %v1345
    %v1399 = vunpack.c.h.b16 %v1345
    %v1400 = vpack.c.b16 %v1370, %v1368
    %v1401 = vpack.c.b16 %v1371, %v1369
    %v1402 = vpack.c.b16 %v1374, %v1372
    %v1403 = vpack.c.b16 %v1375, %v1373
    %v1404 = vpack.c.b16 %v1378, %v1376
    %v1405 = vpack.c.b16 %v1379, %v1377
    %v1406 = vpack.c.b16 %v1382, %v1380
    %v1407 = vpack.c.b16 %v1383, %v1381
    %v1408 = vpack.c.b16 %v1386, %v1384
    %v1409 = vpack.c.b16 %v1387, %v1385
    %v1410 = vpack.c.b16 %v1390, %v1388
    %v1411 = vpack.c.b16 %v1391, %v1389
    %v1412 = vpack.c.b16 %v1394, %v1392
    %v1413 = vpack.c.b16 %v1395, %v1393
    %v1414 = vpack.c.b16 %v1398, %v1396
    %v1415 = vpack.c.b16 %v1399, %v1397
    %1432 = vmatpush.bf16.msra.mxu0 %v1414
    %1433 = vmatpush.bf16.msra.mxu0 %v1412
    %1434 = vmatpush.bf16.msra.mxu0 %v1410
    %1435 = vmatpush.bf16.msra.mxu0 %v1408
    %1436 = vmatpush.bf16.msra.mxu0 %v1406
    %1437 = vmatpush.bf16.msra.mxu0 %v1404
    %1438 = vmatpush.bf16.msra.mxu0 %v1402
    %1439 = vmatpush.bf16.msra.mxu0 %v1400
    %1440 = vmatmul.bf16.gmra.mxu0 %v1328
    %v1441 = vpop.f32.mrf.mxu0
    %v1442 = vadd.f32 %v1348, %v1441
    %v1443 = vpop.f32.mrf.mxu0
    %v1444 = vadd.f32 %v1348, %v1443
    %1445 = vmatmul.bf16.gmra.mxu0 %v1329
    %v1446 = vpop.f32.mrf.mxu0
    %v1447 = vadd.f32 %v1348, %v1446
    %v1448 = vpop.f32.mrf.mxu0
    %v1449 = vadd.f32 %v1348, %v1448
    %1450 = vdwg.mxu0
    %1451 = vmatpush.bf16.msra.mxu0 %v1415
    %1452 = vmatpush.bf16.msra.mxu0 %v1413
    %1453 = vmatpush.bf16.msra.mxu0 %v1411
    %1454 = vmatpush.bf16.msra.mxu0 %v1409
    %1455 = vmatpush.bf16.msra.mxu0 %v1407
    %1456 = vmatpush.bf16.msra.mxu0 %v1405
    %1457 = vmatpush.bf16.msra.mxu0 %v1403
    %1458 = vmatpush.bf16.msra.mxu0 %v1401
    %1459 = vmatmul.bf16.gmra.mxu0 %v1328
    %v1460 = vpop.f32.mrf.mxu0
    %v1461 = vadd.f32 %v1349, %v1460
    %v1462 = vpop.f32.mrf.mxu0
    %v1463 = vadd.f32 %v1349, %v1462
    %1464 = vmatmul.bf16.gmra.mxu0 %v1329
    %v1465 = vpop.f32.mrf.mxu0
    %v1466 = vadd.f32 %v1349, %v1465
    %v1467 = vpop.f32.mrf.mxu0
    %v1468 = vadd.f32 %v1349, %v1467
    %1469 = vdwg.mxu0
    %v1470 = vmax.f32 %v1442, 0.0
    %v1471 = vmax.f32 %v1461, 0.0
    %v1472 = vmax.f32 %v1444, 0.0
    %v1473 = vmax.f32 %v1463, 0.0
    %v1474 = vmax.f32 %v1447, 0.0
    %v1475 = vmax.f32 %v1466, 0.0
    %v1476 = vmax.f32 %v1449, 0.0
    %v1477 = vmax.f32 %v1468, 0.0
    %v1478 = vpack.c.bf16 %v1472, %v1470
    %v1479 = vpack.c.bf16 %v1473, %v1471
    %v1480 = vpack.c.bf16 %v1476, %v1474
    %v1481 = vpack.c.bf16 %v1477, %v1475
    %v1482 = vld [vmem:[%s12] sm:$0xf]
    %v1483 = vld [vmem:[%s12 + $0x4] sm:$0xf]
    %v1484 = vld [vmem:[%s12 + $0x8] sm:$0xf]
    %v1485 = vld [vmem:[%s12 + $0xc] sm:$0xf]
    %v1486 = vld [vmem:[%s12 + $0x10] sm:$0xf]
    %v1487 = vld [vmem:[%s12 + $0x14] sm:$0xf]
    %v1488 = vld [vmem:[%s12 + $0x18] sm:$0xf]
    %v1489 = vld [vmem:[%s12 + $0x1c] sm:$0xf]
    %v1490 = vld [vmem:[%s12 + $0x20] sm:$0xf]
    %v1491 = vld [vmem:[%s12 + $0x24] sm:$0xf]
    %v1492 = vld [vmem:[%s12 + $0x28] sm:$0xf]
    %v1493 = vld [vmem:[%s12 + $0x2c] sm:$0xf]
    %v1494 = vld [vmem:[%s12 + $0x30] sm:$0xf]
    %v1495 = vld [vmem:[%s12 + $0x34] sm:$0xf]
    %v1496 = vld [vmem:[%s12 + $0x38] sm:$0xf]
    %v1497 = vld [vmem:[%s12 + $0x3c] sm:$0xf]
    %v1498 = vld [vmem:[%s12 + $0x40] sm:$0xf]
    %v1499 = vld [vmem:[%s12 + $0x44] sm:$0xf]
    %v1500 = vld [vmem:[%s12 + $0x48] sm:$0xf]
    %v1501 = vld [vmem:[%s12 + $0x4c] sm:$0xf]
    %v1502 = vld [vmem:[%s12 + $0x50] sm:$0xf]
    %v1503 = vld [vmem:[%s12 + $0x54] sm:$0xf]
    %v1504 = vld [vmem:[%s12 + $0x58] sm:$0xf]
    %v1505 = vld [vmem:[%s12 + $0x5c] sm:$0xf]
    %v1506 = vld [vmem:[%s12 + $0x60] sm:$0xf]
    %v1507 = vld [vmem:[%s12 + $0x64] sm:$0xf]
    %v1508 = vld [vmem:[%s12 + $0x68] sm:$0xf]
    %v1509 = vld [vmem:[%s12 + $0x6c] sm:$0xf]
    %v1510 = vld [vmem:[%s12 + $0x70] sm:$0xf]
    %v1511 = vld [vmem:[%s12 + $0x74] sm:$0xf]
    %v1512 = vld [vmem:[%s12 + $0x78] sm:$0xf]
    %v1513 = vld [vmem:[%s12 + $0x7c] sm:$0xf]
    %v1514 = vld [vmem:[%s13] sm:$0x1]
    %v1516 = vperm.slane %v1514, 0
    %v1550 = vunpack.c.l.b16 %v1482
    %v1551 = vunpack.c.l.b16 %v1483
    %v1552 = vunpack.c.l.b16 %v1484
    %v1553 = vunpack.c.l.b16 %v1485
    %v1554 = vunpack.c.l.b16 %v1486
    %v1555 = vunpack.c.l.b16 %v1487
    %v1556 = vunpack.c.l.b16 %v1488
    %v1557 = vunpack.c.l.b16 %v1489
    %v1558 = vunpack.c.l.b16 %v1490
    %v1559 = vunpack.c.l.b16 %v1491
    %v1560 = vunpack.c.l.b16 %v1492
    %v1561 = vunpack.c.l.b16 %v1493
    %v1562 = vunpack.c.l.b16 %v1494
    %v1563 = vunpack.c.l.b16 %v1495
    %v1564 = vunpack.c.l.b16 %v1496
    %v1565 = vunpack.c.l.b16 %v1497
    %v1566 = vunpack.c.l.b16 %v1498
    %v1567 = vunpack.c.l.b16 %v1499
    %v1568 = vunpack.c.l.b16 %v1500
    %v1569 = vunpack.c.l.b16 %v1501
    %v1570 = vunpack.c.l.b16 %v1502
    %v1571 = vunpack.c.l.b16 %v1503
    %v1572 = vunpack.c.l.b16 %v1504
    %v1573 = vunpack.c.l.b16 %v1505
    %v1574 = vunpack.c.l.b16 %v1506
    %v1575 = vunpack.c.l.b16 %v1507
    %v1576 = vunpack.c.l.b16 %v1508
    %v1577 = vunpack.c.l.b16 %v1509
    %v1578 = vunpack.c.l.b16 %v1510
    %v1579 = vunpack.c.l.b16 %v1511
    %v1580 = vunpack.c.l.b16 %v1512
    %v1581 = vunpack.c.l.b16 %v1513
    %v1582 = vpack.c.b16 %v1551, %v1550
    %v1583 = vpack.c.b16 %v1553, %v1552
    %v1584 = vpack.c.b16 %v1555, %v1554
    %v1585 = vpack.c.b16 %v1557, %v1556
    %v1586 = vpack.c.b16 %v1559, %v1558
    %v1587 = vpack.c.b16 %v1561, %v1560
    %v1588 = vpack.c.b16 %v1563, %v1562
    %v1589 = vpack.c.b16 %v1565, %v1564
    %v1590 = vpack.c.b16 %v1567, %v1566
    %v1591 = vpack.c.b16 %v1569, %v1568
    %v1592 = vpack.c.b16 %v1571, %v1570
    %v1593 = vpack.c.b16 %v1573, %v1572
    %v1594 = vpack.c.b16 %v1575, %v1574
    %v1595 = vpack.c.b16 %v1577, %v1576
    %v1596 = vpack.c.b16 %v1579, %v1578
    %v1597 = vpack.c.b16 %v1581, %v1580
    %1614 = vmatpush.bf16.msra.mxu0 %v1589
    %1615 = vmatpush.bf16.msra.mxu0 %v1588
    %1616 = vmatpush.bf16.msra.mxu0 %v1587
    %1617 = vmatpush.bf16.msra.mxu0 %v1586
    %1618 = vmatpush.bf16.msra.mxu0 %v1585
    %1619 = vmatpush.bf16.msra.mxu0 %v1584
    %1620 = vmatpush.bf16.msra.mxu0 %v1583
    %1621 = vmatpush.bf16.msra.mxu0 %v1582
    %1622 = vmatmul.bf16.gmra.mxu0 %v1478
    %v1623 = vpop.f32.mrf.mxu0
    %v1624 = vadd.f32 %v1516, %v1623
    %v1625 = vpop.f32.mrf.mxu0
    %v1626 = vadd.f32 %v1516, %v1625
    %1627 = vmatmul.bf16.gmra.mxu0 %v1480
    %v1628 = vpop.f32.mrf.mxu0
    %v1629 = vadd.f32 %v1516, %v1628
    %v1630 = vpop.f32.mrf.mxu0
    %v1631 = vadd.f32 %v1516, %v1630
    %1632 = vdwg.mxu0
    %1633 = vmatpush.bf16.msra.mxu0 %v1597
    %1634 = vmatpush.bf16.msra.mxu0 %v1596
    %1635 = vmatpush.bf16.msra.mxu0 %v1595
    %1636 = vmatpush.bf16.msra.mxu0 %v1594
    %1637 = vmatpush.bf16.msra.mxu0 %v1593
    %1638 = vmatpush.bf16.msra.mxu0 %v1592
    %1639 = vmatpush.bf16.msra.mxu0 %v1591
    %1640 = vmatpush.bf16.msra.mxu0 %v1590
    %1641 = vmatmul.bf16.gmra.mxu0 %v1479
    %v1642 = vpop.f32.mrf.mxu0
    %v1643 = vadd.f32 %v1624, %v1642
    %v1644 = vpop.f32.mrf.mxu0
    %v1645 = vadd.f32 %v1626, %v1644
    %1646 = vmatmul.bf16.gmra.mxu0 %v1481
    %v1647 = vpop.f32.mrf.mxu0
    %v1648 = vadd.f32 %v1629, %v1647
    %v1649 = vpop.f32.mrf.mxu0
    %v1650 = vadd.f32 %v1631, %v1649
    %1651 = vdwg.mxu0
    %v1652 = vadd.f32 %v1324, %v1643
    %v1653 = vadd.f32 %v1325, %v1645
    %v1654 = vadd.f32 %v1326, %v1648
    %v1655 = vadd.f32 %v1327, %v1650
    %v1656 = vld [vmem:[%s14] sm:$0x1]
    %v1657 = vld [vmem:[%s15] sm:$0x1]
    %1658 = vadd.xlane.f32.xlu0 %v1652
    %v1659 = vpop.xlane.xlu0 %1658
    %1660 = vadd.xlane.f32.xlu0 %v1653
    %v1661 = vpop.xlane.xlu0 %1660
    %1662 = vadd.xlane.f32.xlu0 %v1654
    %v1663 = vpop.xlane.xlu0 %1662
    %1664 = vadd.xlane.f32.xlu0 %v1655
    %v1665 = vpop.xlane.xlu0 %1664
    %v1666 = vmul.f32 %v1659, %v1241
    %v1667 = vmul.f32 %v1661, %v1241
    %v1668 = vmul.f32 %v1663, %v1241
    %v1669 = vmul.f32 %v1665, %v1241
    %v1670 = vsub.f32 %v1652, %v1666
    %v1671 = vsub.f32 %v1653, %v1667
    %v1672 = vsub.f32 %v1654, %v1668
    %v1673 = vsub.f32 %v1655, %v1669
    %v1674 = vmul.f32 %v1670, %v1670
    %v1675 = vmul.f32 %v1671, %v1671
    %v1676 = vmul.f32 %v1672, %v1672
    %v1677 = vmul.f32 %v1673, %v1673
    %1678 = vadd.xlane.f32.xlu0 %v1674
    %v1679 = vpop.xlane.xlu0 %1678
    %1680 = vadd.xlane.f32.xlu0 %v1675
    %v1681 = vpop.xlane.xlu0 %1680
    %1682 = vadd.xlane.f32.xlu0 %v1676
    %v1683 = vpop.xlane.xlu0 %1682
    %1684 = vadd.xlane.f32.xlu0 %v1677
    %v1685 = vpop.xlane.xlu0 %1684
    %v1686 = vmul.f32 %v1679, %v1241
    %v1687 = vmul.f32 %v1681, %v1241
    %v1688 = vmul.f32 %v1683, %v1241
    %v1689 = vmul.f32 %v1685, %v1241
    %v1690 = vadd.f32 %v1686, 1e-05
    %v1691 = vadd.f32 %v1687, 1e-05
    %v1692 = vadd.f32 %v1688, 1e-05
    %v1693 = vadd.f32 %v1689, 1e-05
    %v1694 = vrsqrt.pop %v1690
    %v1695 = vmul.f32 %v1694, %v1690
    %v1696 = vmul.f32 %v1695, %v1694
    %v1697 = vmul.f32 0.5, %v1696
    %v1698 = vsub.f32 1.5, %v1697
    %v1699 = vmul.f32 %v1694, %v1698
    %vm1700 = vweird.f32 %v1690
    %vm1701 = vweird.f32 %v1694
    %vm1702 = vmor %vm1700, %vm1701
    %v1703 = vsel %vm1702, %v1694, %v1699
    %v1704 = vrsqrt.pop %v1691
    %v1705 = vmul.f32 %v1704, %v1691
    %v1706 = vmul.f32 %v1705, %v1704
    %v1707 = vmul.f32 0.5, %v1706
    %v1708 = vsub.f32 1.5, %v1707
    %v1709 = vmul.f32 %v1704, %v1708
    %vm1710 = vweird.f32 %v1691
    %vm1711 = vweird.f32 %v1704
    %vm1712 = vmor %vm1710, %vm1711
    %v1713 = vsel %vm1712, %v1704, %v1709
    %v1714 = vrsqrt.pop %v1692
    %v1715 = vmul.f32 %v1714, %v1692
    %v1716 = vmul.f32 %v1715, %v1714
    %v1717 = vmul.f32 0.5, %v1716
    %v1718 = vsub.f32 1.5, %v1717
    %v1719 = vmul.f32 %v1714, %v1718
    %vm1720 = vweird.f32 %v1692
    %vm1721 = vweird.f32 %v1714
    %vm1722 = vmor %vm1720, %vm1721
    %v1723 = vsel %vm1722, %v1714, %v1719
    %v1724 = vrsqrt.pop %v1693
    %v1725 = vmul.f32 %v1724, %v1693
    %v1726 = vmul.f32 %v1725, %v1724
    %v1727 = vmul.f32 0.5, %v1726
    %v1728 = vsub.f32 1.5, %v1727
    %v1729 = vmul.f32 %v1724, %v1728
    %vm1730 = vweird.f32 %v1693
    %vm1731 = vweird.f32 %v1724
    %vm1732 = vmor %vm1730, %vm1731
    %v1733 = vsel %vm1732, %v1724, %v1729
    %v1734 = vmul.f32 %v1670, %v1703
    %v1735 = vmul.f32 %v1671, %v1713
    %v1736 = vmul.f32 %v1672, %v1723
    %v1737 = vmul.f32 %v1673, %v1733
    %v1739 = vperm.slane %v1656, 0
    %v1741 = vmul.f32 %v1734, %v1739
    %v1742 = vmul.f32 %v1735, %v1739
    %v1743 = vmul.f32 %v1736, %v1739
    %v1744 = vmul.f32 %v1737, %v1739
    %v1746 = vperm.slane %v1657, 0
    %v1748 = vadd.f32 %v1741, %v1746
    %v1749 = vadd.f32 %v1742, %v1746
    %v1750 = vadd.f32 %v1743, %v1746
    %v1751 = vadd.f32 %v1744, %v1746
    %v1752 = vpack.c.bf16 %v1749, %v1748
    %v1753 = vpack.c.bf16 %v1751, %v1750
    %s1754 = scalar_lea.vmem %s4, 192
    %v1755 = vld [vmem:[%s1754] sm:$0xff]
    %v1756 = vld [vmem:[%s1754 + $0x8] sm:$0xf]
    %v1757 = vld [vmem:[%s1754 + $0xc] sm:$0xff]
    %v1758 = vld [vmem:[%s1754 + $0x14] sm:$0xf]
    %v1759 = vld [vmem:[%s1754 + $0x18] sm:$0xff]
    %v1760 = vld [vmem:[%s1754 + $0x20] sm:$0xf]
    %v1761 = vld [vmem:[%s1754 + $0x24] sm:$0xff]
    %v1762 = vld [vmem:[%s1754 + $0x2c] sm:$0xf]
    %v1763 = vld [vmem:[%s1754 + $0x30] sm:$0xff]
    %v1764 = vld [vmem:[%s1754 + $0x38] sm:$0xf]
    %v1765 = vld [vmem:[%s1754 + $0x3c] sm:$0xff]
    %v1766 = vld [vmem:[%s1754 + $0x44] sm:$0xf]
    %v1767 = vld [vmem:[%s1754 + $0x48] sm:$0xff]
    %v1768 = vld [vmem:[%s1754 + $0x50] sm:$0xf]
    %v1769 = vld [vmem:[%s1754 + $0x54] sm:$0xff]
    %v1770 = vld [vmem:[%s1754 + $0x5c] sm:$0xf]
    %v1771 = vld [vmem:[%s1754 + $0x60] sm:$0xff]
    %v1772 = vld [vmem:[%s1754 + $0x68] sm:$0xf]
    %v1773 = vld [vmem:[%s1754 + $0x6c] sm:$0xff]
    %v1774 = vld [vmem:[%s1754 + $0x74] sm:$0xf]
    %v1775 = vld [vmem:[%s1754 + $0x78] sm:$0xff]
    %v1776 = vld [vmem:[%s1754 + $0x80] sm:$0xf]
    %v1777 = vld [vmem:[%s1754 + $0x84] sm:$0xff]
    %v1778 = vld [vmem:[%s1754 + $0x8c] sm:$0xf]
    %v1779 = vld [vmem:[%s1754 + $0x90] sm:$0xff]
    %v1780 = vld [vmem:[%s1754 + $0x98] sm:$0xf]
    %v1781 = vld [vmem:[%s1754 + $0x9c] sm:$0xff]
    %v1782 = vld [vmem:[%s1754 + $0xa4] sm:$0xf]
    %v1783 = vld [vmem:[%s1754 + $0xa8] sm:$0xff]
    %v1784 = vld [vmem:[%s1754 + $0xb0] sm:$0xf]
    %v1785 = vld [vmem:[%s1754 + $0xb4] sm:$0xff]
    %v1786 = vld [vmem:[%s1754 + $0xbc] sm:$0xf]
    %s1787 = scalar_lea.vmem %s5, 3
    %v1788 = vld [vmem:[%s1787] sm:$0x7]
    %v1790 = vperm.slane %v1788, 0
    %v1791 = vperm.slane %v1788, 1
    %v1792 = vperm.slane %v1788, 2
    %v1828 = vunpack.c.l.b16 %v1755
    %v1829 = vunpack.c.h.b16 %v1755
    %v1830 = vunpack.c.l.b16 %v1756
    %v1831 = vunpack.c.l.b16 %v1757
    %v1832 = vunpack.c.h.b16 %v1757
    %v1833 = vunpack.c.l.b16 %v1758
    %v1834 = vunpack.c.l.b16 %v1759
    %v1835 = vunpack.c.h.b16 %v1759
    %v1836 = vunpack.c.l.b16 %v1760
    %v1837 = vunpack.c.l.b16 %v1761
    %v1838 = vunpack.c.h.b16 %v1761
    %v1839 = vunpack.c.l.b16 %v1762
    %v1840 = vunpack.c.l.b16 %v1763
    %v1841 = vunpack.c.h.b16 %v1763
    %v1842 = vunpack.c.l.b16 %v1764
    %v1843 = vunpack.c.l.b16 %v1765
    %v1844 = vunpack.c.h.b16 %v1765
    %v1845 = vunpack.c.l.b16 %v1766
    %v1846 = vunpack.c.l.b16 %v1767
    %v1847 = vunpack.c.h.b16 %v1767
    %v1848 = vunpack.c.l.b16 %v1768
    %v1849 = vunpack.c.l.b16 %v1769
    %v1850 = vunpack.c.h.b16 %v1769
    %v1851 = vunpack.c.l.b16 %v1770
    %v1852 = vunpack.c.l.b16 %v1771
    %v1853 = vunpack.c.h.b16 %v1771
    %v1854 = vunpack.c.l.b16 %v1772
    %v1855 = vunpack.c.l.b16 %v1773
    %v1856 = vunpack.c.h.b16 %v1773
    %v1857 = vunpack.c.l.b16 %v1774
    %v1858 = vunpack.c.l.b16 %v1775
    %v1859 = vunpack.c.h.b16 %v1775
    %v1860 = vunpack.c.l.b16 %v1776
    %v1861 = vunpack.c.l.b16 %v1777
    %v1862 = vunpack.c.h.b16 %v1777
    %v1863 = vunpack.c.l.b16 %v1778
    %v1864 = vunpack.c.l.b16 %v1779
    %v1865 = vunpack.c.h.b16 %v1779
    %v1866 = vunpack.c.l.b16 %v1780
    %v1867 = vunpack.c.l.b16 %v1781
    %v1868 = vunpack.c.h.b16 %v1781
    %v1869 = vunpack.c.l.b16 %v1782
    %v1870 = vunpack.c.l.b16 %v1783
    %v1871 = vunpack.c.h.b16 %v1783
    %v1872 = vunpack.c.l.b16 %v1784
    %v1873 = vunpack.c.l.b16 %v1785
    %v1874 = vunpack.c.h.b16 %v1785
    %v1875 = vunpack.c.l.b16 %v1786
    %v1876 = vpack.c.b16 %v1831, %v1828
    %v1877 = vpack.c.b16 %v1832, %v1829
    %v1878 = vpack.c.b16 %v1833, %v1830
    %v1879 = vpack.c.b16 %v1837, %v1834
    %v1880 = vpack.c.b16 %v1838, %v1835
    %v1881 = vpack.c.b16 %v1839, %v1836
    %v1882 = vpack.c.b16 %v1843, %v1840
    %v1883 = vpack.c.b16 %v1844, %v1841
    %v1884 = vpack.c.b16 %v1845, %v1842
    %v1885 = vpack.c.b16 %v1849, %v1846
    %v1886 = vpack.c.b16 %v1850, %v1847
    %v1887 = vpack.c.b16 %v1851, %v1848
    %v1888 = vpack.c.b16 %v1855, %v1852
    %v1889 = vpack.c.b16 %v1856, %v1853
    %v1890 = vpack.c.b16 %v1857, %v1854
    %v1891 = vpack.c.b16 %v1861, %v1858
    %v1892 = vpack.c.b16 %v1862, %v1859
    %v1893 = vpack.c.b16 %v1863, %v1860
    %v1894 = vpack.c.b16 %v1867, %v1864
    %v1895 = vpack.c.b16 %v1868, %v1865
    %v1896 = vpack.c.b16 %v1869, %v1866
    %v1897 = vpack.c.b16 %v1873, %v1870
    %v1898 = vpack.c.b16 %v1874, %v1871
    %v1899 = vpack.c.b16 %v1875, %v1872
    %1924 = vmatpush.bf16.msra.mxu0 %v1897
    %1925 = vmatpush.bf16.msra.mxu0 %v1894
    %1926 = vmatpush.bf16.msra.mxu0 %v1891
    %1927 = vmatpush.bf16.msra.mxu0 %v1888
    %1928 = vmatpush.bf16.msra.mxu0 %v1885
    %1929 = vmatpush.bf16.msra.mxu0 %v1882
    %1930 = vmatpush.bf16.msra.mxu0 %v1879
    %1931 = vmatpush.bf16.msra.mxu0 %v1876
    %1932 = vmatmul.bf16.gmra.mxu0 %v1752
    %v1933 = vpop.f32.mrf.mxu0
    %v1934 = vadd.f32 %v1790, %v1933
    %v1935 = vpop.f32.mrf.mxu0
    %v1936 = vadd.f32 %v1790, %v1935
    %1937 = vmatmul.bf16.gmra.mxu0 %v1753
    %v1938 = vpop.f32.mrf.mxu0
    %v1939 = vadd.f32 %v1790, %v1938
    %v1940 = vpop.f32.mrf.mxu0
    %v1941 = vadd.f32 %v1790, %v1940
    %1942 = vdwg.mxu0
    %1943 = vmatpush.bf16.msra.mxu0 %v1898
    %1944 = vmatpush.bf16.msra.mxu0 %v1895
    %1945 = vmatpush.bf16.msra.mxu0 %v1892
    %1946 = vmatpush.bf16.msra.mxu0 %v1889
    %1947 = vmatpush.bf16.msra.mxu0 %v1886
    %1948 = vmatpush.bf16.msra.mxu0 %v1883
    %1949 = vmatpush.bf16.msra.mxu0 %v1880
    %1950 = vmatpush.bf16.msra.mxu0 %v1877
    %1951 = vmatmul.bf16.gmra.mxu0 %v1752
    %v1952 = vpop.f32.mrf.mxu0
    %v1953 = vadd.f32 %v1791, %v1952
    %v1954 = vpop.f32.mrf.mxu0
    %v1955 = vadd.f32 %v1791, %v1954
    %1956 = vmatmul.bf16.gmra.mxu0 %v1753
    %v1957 = vpop.f32.mrf.mxu0
    %v1958 = vadd.f32 %v1791, %v1957
    %v1959 = vpop.f32.mrf.mxu0
    %v1960 = vadd.f32 %v1791, %v1959
    %1961 = vdwg.mxu0
    %1962 = vmatpush.bf16.msra.mxu0 %v1899
    %1963 = vmatpush.bf16.msra.mxu0 %v1896
    %1964 = vmatpush.bf16.msra.mxu0 %v1893
    %1965 = vmatpush.bf16.msra.mxu0 %v1890
    %1966 = vmatpush.bf16.msra.mxu0 %v1887
    %1967 = vmatpush.bf16.msra.mxu0 %v1884
    %1968 = vmatpush.bf16.msra.mxu0 %v1881
    %1969 = vmatpush.bf16.msra.mxu0 %v1878
    %1970 = vmatmul.bf16.gmra.mxu0 %v1752
    %v1971 = vpop.f32.mrf.mxu0
    %v1972 = vadd.f32 %v1792, %v1971
    %v1973 = vpop.f32.mrf.mxu0
    %v1974 = vadd.f32 %v1792, %v1973
    %1975 = vmatmul.bf16.gmra.mxu0 %v1753
    %v1976 = vpop.f32.mrf.mxu0
    %v1977 = vadd.f32 %v1792, %v1976
    %v1978 = vpop.f32.mrf.mxu0
    %v1979 = vadd.f32 %v1792, %v1978
    %1980 = vdwg.mxu0
    %v1981 = vpack.c.bf16 %v1953, %v1934
    %v1982 = vpack.c.bf16 %v1972, %v1972
    %v1983 = vpack.c.bf16 %v1955, %v1936
    %v1984 = vpack.c.bf16 %v1974, %v1974
    %v1985 = vpack.c.bf16 %v1958, %v1939
    %v1986 = vpack.c.bf16 %v1977, %v1977
    %v1987 = vpack.c.bf16 %v1960, %v1941
    %v1988 = vpack.c.bf16 %v1979, %v1979
    %v1993 = vrot.slane %v1981, 4
    %v1994 = vrot.slane %v1983, 4
    %v1995 = vrot.slane %v1985, 4
    %v1996 = vrot.slane %v1987, 4
    %v1997 = vunpack.c.l.b16 %v1981
    %v1998 = vunpack.c.l.b16 %v1983
    %v1999 = vpack.c.b16 %v1998, %v1997
    %v2000 = vunpack.c.l.b16 %v1993
    %v2001 = vunpack.c.l.b16 %v1994
    %v2002 = vpack.c.b16 %v2001, %v2000
    %v2004 = vsel %vm481, %v1999, 0
    %v2007 = vsel %vm481, %v2002, 0
    %2009 = vmatpush.bf16.xpose.msra.mxu0 0
    %2010 = vmatpush.bf16.xpose.msra.mxu0 0
    %2011 = vmatpush.bf16.xpose.msra.mxu0 0
    %2012 = vmatpush.bf16.xpose.msra.mxu0 0
    %2013 = vmatpush.bf16.xpose.msra.mxu0 0
    %2014 = vmatpush.bf16.xpose.msra.mxu0 0
    %2015 = vmatpush.bf16.xpose.msra.mxu0 0
    %2016 = vmatpush.bf16.xpose.msra.mxu0 %v2007
    %2017 = vmatmul.bf16.gmra.mxu0 %v2004
    %v2018 = vpop.f32.mrf.mxu0
    %v2019 = vadd.f32 0.0, %v2018
    %v2020 = vpop.f32.mrf.mxu0
    %v2021 = vadd.f32 0.0, %v2020
    %2022 = vdwg.mxu0
    %v2023 = vunpack.c.l.b16 %v1985
    %v2024 = vunpack.c.l.b16 %v1987
    %v2025 = vpack.c.b16 %v2024, %v2023
    %v2026 = vunpack.c.l.b16 %v1995
    %v2027 = vunpack.c.l.b16 %v1996
    %v2028 = vpack.c.b16 %v2027, %v2026
    %v2030 = vsel %vm481, %v2025, 0
    %v2033 = vsel %vm481, %v2028, 0
    %2035 = vmatpush.bf16.xpose.msra.mxu0 0
    %2036 = vmatpush.bf16.xpose.msra.mxu0 0
    %2037 = vmatpush.bf16.xpose.msra.mxu0 0
    %2038 = vmatpush.bf16.xpose.msra.mxu0 0
    %2039 = vmatpush.bf16.xpose.msra.mxu0 0
    %2040 = vmatpush.bf16.xpose.msra.mxu0 0
    %2041 = vmatpush.bf16.xpose.msra.mxu0 0
    %2042 = vmatpush.bf16.xpose.msra.mxu0 %v2033
    %2043 = vmatmul.bf16.gmra.mxu0 %v2030
    %v2044 = vpop.f32.mrf.mxu0
    %v2045 = vadd.f32 0.0, %v2044
    %v2046 = vpop.f32.mrf.mxu0
    %v2047 = vadd.f32 0.0, %v2046
    %2048 = vdwg.mxu0
    %v2049 = vsel %vm528, %v2019, -inf
    %2050 = vmax.xlane.f32.xlu0 %v2049
    %v2051 = vpop.xlane.xlu0 %2050
    %v2052 = vsel %vm528, %v2021, -inf
    %2053 = vmax.xlane.f32.xlu0 %v2052
    %v2054 = vpop.xlane.xlu0 %2053
    %v2055 = vsel %vm528, %v2045, -inf
    %2056 = vmax.xlane.f32.xlu0 %v2055
    %v2057 = vpop.xlane.xlu0 %2056
    %v2058 = vsel %vm528, %v2047, -inf
    %2059 = vmax.xlane.f32.xlu0 %v2058
    %v2060 = vpop.xlane.xlu0 %2059
    %v2061 = vsub.f32 %v2019, %v2051
    %v2062 = vsub.f32 %v2021, %v2054
    %v2063 = vsub.f32 %v2045, %v2057
    %v2064 = vsub.f32 %v2047, %v2060
    %v2065 = vmul.f32 %v2061, 1.442695
    %v2066 = vpow.pop %v2065
    %v2067 = vmul.f32 %v2062, 1.442695
    %v2068 = vpow.pop %v2067
    %v2069 = vmul.f32 %v2063, 1.442695
    %v2070 = vpow.pop %v2069
    %v2071 = vmul.f32 %v2064, 1.442695
    %v2072 = vpow.pop %v2071
    %v2073 = vsel %vm528, %v2066, 0.0
    %2074 = vadd.xlane.f32.xlu0 %v2073
    %v2075 = vpop.xlane.xlu0 %2074
    %v2076 = vsel %vm528, %v2068, 0.0
    %2077 = vadd.xlane.f32.xlu0 %v2076
    %v2078 = vpop.xlane.xlu0 %2077
    %v2079 = vsel %vm528, %v2070, 0.0
    %2080 = vadd.xlane.f32.xlu0 %v2079
    %v2081 = vpop.xlane.xlu0 %2080
    %v2082 = vsel %vm528, %v2072, 0.0
    %2083 = vadd.xlane.f32.xlu0 %v2082
    %v2084 = vpop.xlane.xlu0 %2083
    %v2085 = vrcp.pop %v2075
    %v2086 = vrcp.pop %v2078
    %v2087 = vrcp.pop %v2081
    %v2088 = vrcp.pop %v2084
    %v2089 = vmul.f32 %v2066, %v2085
    %v2090 = vmul.f32 %v2068, %v2086
    %v2091 = vmul.f32 %v2070, %v2087
    %v2092 = vmul.f32 %v2072, %v2088
    %v2093 = vpack.c.bf16 %v2089, %v2089
    %v2094 = vpack.c.bf16 %v2090, %v2090
    %v2095 = vpack.c.bf16 %v2091, %v2091
    %v2096 = vpack.c.bf16 %v2092, %v2092
    %v2099 = vunpack.c.l.b16 %v2093
    %v2100 = vunpack.c.l.b16 %v2094
    %v2101 = vpack.c.b16 %v2100, %v2099
    %v2104 = vunpack.c.l.b16 %v1982
    %v2105 = vunpack.c.l.b16 %v1984
    %v2106 = vpack.c.b16 %v2105, %v2104
    %v2109 = vsel %vm528, %v2101, 0
    %2111 = vmatpush.bf16.msra.mxu0 0
    %2112 = vmatpush.bf16.msra.mxu0 0
    %2113 = vmatpush.bf16.msra.mxu0 0
    %2114 = vmatpush.bf16.msra.mxu0 0
    %2115 = vmatpush.bf16.msra.mxu0 0
    %2116 = vmatpush.bf16.msra.mxu0 0
    %2117 = vmatpush.bf16.msra.mxu0 0
    %2118 = vmatpush.bf16.msra.mxu0 %v2106
    %2119 = vmatmul.bf16.gmra.mxu0 %v2109
    %v2120 = vpop.f32.mrf.mxu0
    %v2121 = vadd.f32 0.0, %v2120
    %v2122 = vpop.f32.mrf.mxu0
    %v2123 = vadd.f32 0.0, %v2122
    %2124 = vdwg.mxu0
    %v2127 = vunpack.c.l.b16 %v2095
    %v2128 = vunpack.c.l.b16 %v2096
    %v2129 = vpack.c.b16 %v2128, %v2127
    %v2132 = vunpack.c.l.b16 %v1986
    %v2133 = vunpack.c.l.b16 %v1988
    %v2134 = vpack.c.b16 %v2133, %v2132
    %v2137 = vsel %vm528, %v2129, 0
    %2139 = vmatpush.bf16.msra.mxu0 0
    %2140 = vmatpush.bf16.msra.mxu0 0
    %2141 = vmatpush.bf16.msra.mxu0 0
    %2142 = vmatpush.bf16.msra.mxu0 0
    %2143 = vmatpush.bf16.msra.mxu0 0
    %2144 = vmatpush.bf16.msra.mxu0 0
    %2145 = vmatpush.bf16.msra.mxu0 0
    %2146 = vmatpush.bf16.msra.mxu0 %v2134
    %2147 = vmatmul.bf16.gmra.mxu0 %v2137
    %v2148 = vpop.f32.mrf.mxu0
    %v2149 = vadd.f32 0.0, %v2148
    %v2150 = vpop.f32.mrf.mxu0
    %v2151 = vadd.f32 0.0, %v2150
    %2152 = vdwg.mxu0
    %2153 = vrot.lane.b32.xlu0 %v1999, 96
    %v2154 = vpop.permute.xlu0 %2153
    %2155 = vrot.lane.b32.xlu0 %v2002, 96
    %v2156 = vpop.permute.xlu0 %2155
    %v2158 = vsel %vm481, %v2154, 0
    %v2161 = vsel %vm481, %v2156, 0
    %2163 = vmatpush.bf16.xpose.msra.mxu0 0
    %2164 = vmatpush.bf16.xpose.msra.mxu0 0
    %2165 = vmatpush.bf16.xpose.msra.mxu0 0
    %2166 = vmatpush.bf16.xpose.msra.mxu0 0
    %2167 = vmatpush.bf16.xpose.msra.mxu0 0
    %2168 = vmatpush.bf16.xpose.msra.mxu0 0
    %2169 = vmatpush.bf16.xpose.msra.mxu0 0
    %2170 = vmatpush.bf16.xpose.msra.mxu0 %v2161
    %2171 = vmatmul.bf16.gmra.mxu0 %v2158
    %v2172 = vpop.f32.mrf.mxu0
    %v2173 = vadd.f32 0.0, %v2172
    %v2174 = vpop.f32.mrf.mxu0
    %v2175 = vadd.f32 0.0, %v2174
    %2176 = vdwg.mxu0
    %2177 = vrot.lane.b32.xlu0 %v2025, 96
    %v2178 = vpop.permute.xlu0 %2177
    %2179 = vrot.lane.b32.xlu0 %v2028, 96
    %v2180 = vpop.permute.xlu0 %2179
    %v2182 = vsel %vm481, %v2178, 0
    %v2185 = vsel %vm481, %v2180, 0
    %2187 = vmatpush.bf16.xpose.msra.mxu0 0
    %2188 = vmatpush.bf16.xpose.msra.mxu0 0
    %2189 = vmatpush.bf16.xpose.msra.mxu0 0
    %2190 = vmatpush.bf16.xpose.msra.mxu0 0
    %2191 = vmatpush.bf16.xpose.msra.mxu0 0
    %2192 = vmatpush.bf16.xpose.msra.mxu0 0
    %2193 = vmatpush.bf16.xpose.msra.mxu0 0
    %2194 = vmatpush.bf16.xpose.msra.mxu0 %v2185
    %2195 = vmatmul.bf16.gmra.mxu0 %v2182
    %v2196 = vpop.f32.mrf.mxu0
    %v2197 = vadd.f32 0.0, %v2196
    %v2198 = vpop.f32.mrf.mxu0
    %v2199 = vadd.f32 0.0, %v2198
    %2200 = vdwg.mxu0
    %v2201 = vsel %vm528, %v2173, -inf
    %2202 = vmax.xlane.f32.xlu0 %v2201
    %v2203 = vpop.xlane.xlu0 %2202
    %v2204 = vsel %vm528, %v2175, -inf
    %2205 = vmax.xlane.f32.xlu0 %v2204
    %v2206 = vpop.xlane.xlu0 %2205
    %v2207 = vsel %vm528, %v2197, -inf
    %2208 = vmax.xlane.f32.xlu0 %v2207
    %v2209 = vpop.xlane.xlu0 %2208
    %v2210 = vsel %vm528, %v2199, -inf
    %2211 = vmax.xlane.f32.xlu0 %v2210
    %v2212 = vpop.xlane.xlu0 %2211
    %v2213 = vsub.f32 %v2173, %v2203
    %v2214 = vsub.f32 %v2175, %v2206
    %v2215 = vsub.f32 %v2197, %v2209
    %v2216 = vsub.f32 %v2199, %v2212
    %v2217 = vmul.f32 %v2213, 1.442695
    %v2218 = vpow.pop %v2217
    %v2219 = vmul.f32 %v2214, 1.442695
    %v2220 = vpow.pop %v2219
    %v2221 = vmul.f32 %v2215, 1.442695
    %v2222 = vpow.pop %v2221
    %v2223 = vmul.f32 %v2216, 1.442695
    %v2224 = vpow.pop %v2223
    %v2225 = vsel %vm528, %v2218, 0.0
    %2226 = vadd.xlane.f32.xlu0 %v2225
    %v2227 = vpop.xlane.xlu0 %2226
    %v2228 = vsel %vm528, %v2220, 0.0
    %2229 = vadd.xlane.f32.xlu0 %v2228
    %v2230 = vpop.xlane.xlu0 %2229
    %v2231 = vsel %vm528, %v2222, 0.0
    %2232 = vadd.xlane.f32.xlu0 %v2231
    %v2233 = vpop.xlane.xlu0 %2232
    %v2234 = vsel %vm528, %v2224, 0.0
    %2235 = vadd.xlane.f32.xlu0 %v2234
    %v2236 = vpop.xlane.xlu0 %2235
    %v2237 = vrcp.pop %v2227
    %v2238 = vrcp.pop %v2230
    %v2239 = vrcp.pop %v2233
    %v2240 = vrcp.pop %v2236
    %v2241 = vmul.f32 %v2218, %v2237
    %v2242 = vmul.f32 %v2220, %v2238
    %v2243 = vmul.f32 %v2222, %v2239
    %v2244 = vmul.f32 %v2224, %v2240
    %v2245 = vpack.c.bf16 %v2241, %v2241
    %v2246 = vpack.c.bf16 %v2242, %v2242
    %v2247 = vpack.c.bf16 %v2243, %v2243
    %v2248 = vpack.c.bf16 %v2244, %v2244
    %v2251 = vunpack.c.l.b16 %v2245
    %v2252 = vunpack.c.l.b16 %v2246
    %v2253 = vpack.c.b16 %v2252, %v2251
    %2254 = vrot.lane.b32.xlu0 %v2106, 96
    %v2255 = vpop.permute.xlu0 %2254
    %v2258 = vsel %vm528, %v2253, 0
    %2260 = vmatpush.bf16.msra.mxu0 0
    %2261 = vmatpush.bf16.msra.mxu0 0
    %2262 = vmatpush.bf16.msra.mxu0 0
    %2263 = vmatpush.bf16.msra.mxu0 0
    %2264 = vmatpush.bf16.msra.mxu0 0
    %2265 = vmatpush.bf16.msra.mxu0 0
    %2266 = vmatpush.bf16.msra.mxu0 0
    %2267 = vmatpush.bf16.msra.mxu0 %v2255
    %2268 = vmatmul.bf16.gmra.mxu0 %v2258
    %v2269 = vpop.f32.mrf.mxu0
    %v2270 = vadd.f32 0.0, %v2269
    %v2271 = vpop.f32.mrf.mxu0
    %v2272 = vadd.f32 0.0, %v2271
    %2273 = vdwg.mxu0
    %v2276 = vunpack.c.l.b16 %v2247
    %v2277 = vunpack.c.l.b16 %v2248
    %v2278 = vpack.c.b16 %v2277, %v2276
    %2279 = vrot.lane.b32.xlu0 %v2134, 96
    %v2280 = vpop.permute.xlu0 %2279
    %v2283 = vsel %vm528, %v2278, 0
    %2285 = vmatpush.bf16.msra.mxu0 0
    %2286 = vmatpush.bf16.msra.mxu0 0
    %2287 = vmatpush.bf16.msra.mxu0 0
    %2288 = vmatpush.bf16.msra.mxu0 0
    %2289 = vmatpush.bf16.msra.mxu0 0
    %2290 = vmatpush.bf16.msra.mxu0 0
    %2291 = vmatpush.bf16.msra.mxu0 0
    %2292 = vmatpush.bf16.msra.mxu0 %v2280
    %2293 = vmatmul.bf16.gmra.mxu0 %v2283
    %v2294 = vpop.f32.mrf.mxu0
    %v2295 = vadd.f32 0.0, %v2294
    %v2296 = vpop.f32.mrf.mxu0
    %v2297 = vadd.f32 0.0, %v2296
    %2298 = vdwg.mxu0
    %2299 = vrot.lane.b32.xlu0 %v1999, 64
    %v2300 = vpop.permute.xlu0 %2299
    %2301 = vrot.lane.b32.xlu0 %v2002, 64
    %v2302 = vpop.permute.xlu0 %2301
    %v2304 = vsel %vm481, %v2300, 0
    %v2307 = vsel %vm481, %v2302, 0
    %2309 = vmatpush.bf16.xpose.msra.mxu0 0
    %2310 = vmatpush.bf16.xpose.msra.mxu0 0
    %2311 = vmatpush.bf16.xpose.msra.mxu0 0
    %2312 = vmatpush.bf16.xpose.msra.mxu0 0
    %2313 = vmatpush.bf16.xpose.msra.mxu0 0
    %2314 = vmatpush.bf16.xpose.msra.mxu0 0
    %2315 = vmatpush.bf16.xpose.msra.mxu0 0
    %2316 = vmatpush.bf16.xpose.msra.mxu0 %v2307
    %2317 = vmatmul.bf16.gmra.mxu0 %v2304
    %v2318 = vpop.f32.mrf.mxu0
    %v2319 = vadd.f32 0.0, %v2318
    %v2320 = vpop.f32.mrf.mxu0
    %v2321 = vadd.f32 0.0, %v2320
    %2322 = vdwg.mxu0
    %2323 = vrot.lane.b32.xlu0 %v2025, 64
    %v2324 = vpop.permute.xlu0 %2323
    %2325 = vrot.lane.b32.xlu0 %v2028, 64
    %v2326 = vpop.permute.xlu0 %2325
    %v2328 = vsel %vm481, %v2324, 0
    %v2331 = vsel %vm481, %v2326, 0
    %2333 = vmatpush.bf16.xpose.msra.mxu0 0
    %2334 = vmatpush.bf16.xpose.msra.mxu0 0
    %2335 = vmatpush.bf16.xpose.msra.mxu0 0
    %2336 = vmatpush.bf16.xpose.msra.mxu0 0
    %2337 = vmatpush.bf16.xpose.msra.mxu0 0
    %2338 = vmatpush.bf16.xpose.msra.mxu0 0
    %2339 = vmatpush.bf16.xpose.msra.mxu0 0
    %2340 = vmatpush.bf16.xpose.msra.mxu0 %v2331
    %2341 = vmatmul.bf16.gmra.mxu0 %v2328
    %v2342 = vpop.f32.mrf.mxu0
    %v2343 = vadd.f32 0.0, %v2342
    %v2344 = vpop.f32.mrf.mxu0
    %v2345 = vadd.f32 0.0, %v2344
    %2346 = vdwg.mxu0
    %v2347 = vsel %vm528, %v2319, -inf
    %2348 = vmax.xlane.f32.xlu0 %v2347
    %v2349 = vpop.xlane.xlu0 %2348
    %v2350 = vsel %vm528, %v2321, -inf
    %2351 = vmax.xlane.f32.xlu0 %v2350
    %v2352 = vpop.xlane.xlu0 %2351
    %v2353 = vsel %vm528, %v2343, -inf
    %2354 = vmax.xlane.f32.xlu0 %v2353
    %v2355 = vpop.xlane.xlu0 %2354
    %v2356 = vsel %vm528, %v2345, -inf
    %2357 = vmax.xlane.f32.xlu0 %v2356
    %v2358 = vpop.xlane.xlu0 %2357
    %v2359 = vsub.f32 %v2319, %v2349
    %v2360 = vsub.f32 %v2321, %v2352
    %v2361 = vsub.f32 %v2343, %v2355
    %v2362 = vsub.f32 %v2345, %v2358
    %v2363 = vmul.f32 %v2359, 1.442695
    %v2364 = vpow.pop %v2363
    %v2365 = vmul.f32 %v2360, 1.442695
    %v2366 = vpow.pop %v2365
    %v2367 = vmul.f32 %v2361, 1.442695
    %v2368 = vpow.pop %v2367
    %v2369 = vmul.f32 %v2362, 1.442695
    %v2370 = vpow.pop %v2369
    %v2371 = vsel %vm528, %v2364, 0.0
    %2372 = vadd.xlane.f32.xlu0 %v2371
    %v2373 = vpop.xlane.xlu0 %2372
    %v2374 = vsel %vm528, %v2366, 0.0
    %2375 = vadd.xlane.f32.xlu0 %v2374
    %v2376 = vpop.xlane.xlu0 %2375
    %v2377 = vsel %vm528, %v2368, 0.0
    %2378 = vadd.xlane.f32.xlu0 %v2377
    %v2379 = vpop.xlane.xlu0 %2378
    %v2380 = vsel %vm528, %v2370, 0.0
    %2381 = vadd.xlane.f32.xlu0 %v2380
    %v2382 = vpop.xlane.xlu0 %2381
    %v2383 = vrcp.pop %v2373
    %v2384 = vrcp.pop %v2376
    %v2385 = vrcp.pop %v2379
    %v2386 = vrcp.pop %v2382
    %v2387 = vmul.f32 %v2364, %v2383
    %v2388 = vmul.f32 %v2366, %v2384
    %v2389 = vmul.f32 %v2368, %v2385
    %v2390 = vmul.f32 %v2370, %v2386
    %v2391 = vpack.c.bf16 %v2387, %v2387
    %v2392 = vpack.c.bf16 %v2388, %v2388
    %v2393 = vpack.c.bf16 %v2389, %v2389
    %v2394 = vpack.c.bf16 %v2390, %v2390
    %v2397 = vunpack.c.l.b16 %v2391
    %v2398 = vunpack.c.l.b16 %v2392
    %v2399 = vpack.c.b16 %v2398, %v2397
    %2400 = vrot.lane.b32.xlu0 %v2106, 64
    %v2401 = vpop.permute.xlu0 %2400
    %v2404 = vsel %vm528, %v2399, 0
    %2406 = vmatpush.bf16.msra.mxu0 0
    %2407 = vmatpush.bf16.msra.mxu0 0
    %2408 = vmatpush.bf16.msra.mxu0 0
    %2409 = vmatpush.bf16.msra.mxu0 0
    %2410 = vmatpush.bf16.msra.mxu0 0
    %2411 = vmatpush.bf16.msra.mxu0 0
    %2412 = vmatpush.bf16.msra.mxu0 0
    %2413 = vmatpush.bf16.msra.mxu0 %v2401
    %2414 = vmatmul.bf16.gmra.mxu0 %v2404
    %v2415 = vpop.f32.mrf.mxu0
    %v2416 = vadd.f32 0.0, %v2415
    %v2417 = vpop.f32.mrf.mxu0
    %v2418 = vadd.f32 0.0, %v2417
    %2419 = vdwg.mxu0
    %v2422 = vunpack.c.l.b16 %v2393
    %v2423 = vunpack.c.l.b16 %v2394
    %v2424 = vpack.c.b16 %v2423, %v2422
    %2425 = vrot.lane.b32.xlu0 %v2134, 64
    %v2426 = vpop.permute.xlu0 %2425
    %v2429 = vsel %vm528, %v2424, 0
    %2431 = vmatpush.bf16.msra.mxu0 0
    %2432 = vmatpush.bf16.msra.mxu0 0
    %2433 = vmatpush.bf16.msra.mxu0 0
    %2434 = vmatpush.bf16.msra.mxu0 0
    %2435 = vmatpush.bf16.msra.mxu0 0
    %2436 = vmatpush.bf16.msra.mxu0 0
    %2437 = vmatpush.bf16.msra.mxu0 0
    %2438 = vmatpush.bf16.msra.mxu0 %v2426
    %2439 = vmatmul.bf16.gmra.mxu0 %v2429
    %v2440 = vpop.f32.mrf.mxu0
    %v2441 = vadd.f32 0.0, %v2440
    %v2442 = vpop.f32.mrf.mxu0
    %v2443 = vadd.f32 0.0, %v2442
    %2444 = vdwg.mxu0
    %2445 = vrot.lane.b32.xlu0 %v1999, 32
    %v2446 = vpop.permute.xlu0 %2445
    %2447 = vrot.lane.b32.xlu0 %v2002, 32
    %v2448 = vpop.permute.xlu0 %2447
    %v2450 = vsel %vm481, %v2446, 0
    %v2453 = vsel %vm481, %v2448, 0
    %2455 = vmatpush.bf16.xpose.msra.mxu0 0
    %2456 = vmatpush.bf16.xpose.msra.mxu0 0
    %2457 = vmatpush.bf16.xpose.msra.mxu0 0
    %2458 = vmatpush.bf16.xpose.msra.mxu0 0
    %2459 = vmatpush.bf16.xpose.msra.mxu0 0
    %2460 = vmatpush.bf16.xpose.msra.mxu0 0
    %2461 = vmatpush.bf16.xpose.msra.mxu0 0
    %2462 = vmatpush.bf16.xpose.msra.mxu0 %v2453
    %2463 = vmatmul.bf16.gmra.mxu0 %v2450
    %v2464 = vpop.f32.mrf.mxu0
    %v2465 = vadd.f32 0.0, %v2464
    %v2466 = vpop.f32.mrf.mxu0
    %v2467 = vadd.f32 0.0, %v2466
    %2468 = vdwg.mxu0
    %2469 = vrot.lane.b32.xlu0 %v2025, 32
    %v2470 = vpop.permute.xlu0 %2469
    %2471 = vrot.lane.b32.xlu0 %v2028, 32
    %v2472 = vpop.permute.xlu0 %2471
    %v2474 = vsel %vm481, %v2470, 0
    %v2477 = vsel %vm481, %v2472, 0
    %2479 = vmatpush.bf16.xpose.msra.mxu0 0
    %2480 = vmatpush.bf16.xpose.msra.mxu0 0
    %2481 = vmatpush.bf16.xpose.msra.mxu0 0
    %2482 = vmatpush.bf16.xpose.msra.mxu0 0
    %2483 = vmatpush.bf16.xpose.msra.mxu0 0
    %2484 = vmatpush.bf16.xpose.msra.mxu0 0
    %2485 = vmatpush.bf16.xpose.msra.mxu0 0
    %2486 = vmatpush.bf16.xpose.msra.mxu0 %v2477
    %2487 = vmatmul.bf16.gmra.mxu0 %v2474
    %v2488 = vpop.f32.mrf.mxu0
    %v2489 = vadd.f32 0.0, %v2488
    %v2490 = vpop.f32.mrf.mxu0
    %v2491 = vadd.f32 0.0, %v2490
    %2492 = vdwg.mxu0
    %v2493 = vsel %vm528, %v2465, -inf
    %2494 = vmax.xlane.f32.xlu0 %v2493
    %v2495 = vpop.xlane.xlu0 %2494
    %v2496 = vsel %vm528, %v2467, -inf
    %2497 = vmax.xlane.f32.xlu0 %v2496
    %v2498 = vpop.xlane.xlu0 %2497
    %v2499 = vsel %vm528, %v2489, -inf
    %2500 = vmax.xlane.f32.xlu0 %v2499
    %v2501 = vpop.xlane.xlu0 %2500
    %v2502 = vsel %vm528, %v2491, -inf
    %2503 = vmax.xlane.f32.xlu0 %v2502
    %v2504 = vpop.xlane.xlu0 %2503
    %v2505 = vsub.f32 %v2465, %v2495
    %v2506 = vsub.f32 %v2467, %v2498
    %v2507 = vsub.f32 %v2489, %v2501
    %v2508 = vsub.f32 %v2491, %v2504
    %v2509 = vmul.f32 %v2505, 1.442695
    %v2510 = vpow.pop %v2509
    %v2511 = vmul.f32 %v2506, 1.442695
    %v2512 = vpow.pop %v2511
    %v2513 = vmul.f32 %v2507, 1.442695
    %v2514 = vpow.pop %v2513
    %v2515 = vmul.f32 %v2508, 1.442695
    %v2516 = vpow.pop %v2515
    %v2517 = vsel %vm528, %v2510, 0.0
    %2518 = vadd.xlane.f32.xlu0 %v2517
    %v2519 = vpop.xlane.xlu0 %2518
    %v2520 = vsel %vm528, %v2512, 0.0
    %2521 = vadd.xlane.f32.xlu0 %v2520
    %v2522 = vpop.xlane.xlu0 %2521
    %v2523 = vsel %vm528, %v2514, 0.0
    %2524 = vadd.xlane.f32.xlu0 %v2523
    %v2525 = vpop.xlane.xlu0 %2524
    %v2526 = vsel %vm528, %v2516, 0.0
    %2527 = vadd.xlane.f32.xlu0 %v2526
    %v2528 = vpop.xlane.xlu0 %2527
    %v2529 = vrcp.pop %v2519
    %v2530 = vrcp.pop %v2522
    %v2531 = vrcp.pop %v2525
    %v2532 = vrcp.pop %v2528
    %v2533 = vmul.f32 %v2510, %v2529
    %v2534 = vmul.f32 %v2512, %v2530
    %v2535 = vmul.f32 %v2514, %v2531
    %v2536 = vmul.f32 %v2516, %v2532
    %v2537 = vpack.c.bf16 %v2533, %v2533
    %v2538 = vpack.c.bf16 %v2534, %v2534
    %v2539 = vpack.c.bf16 %v2535, %v2535
    %v2540 = vpack.c.bf16 %v2536, %v2536
    %v2543 = vunpack.c.l.b16 %v2537
    %v2544 = vunpack.c.l.b16 %v2538
    %v2545 = vpack.c.b16 %v2544, %v2543
    %2546 = vrot.lane.b32.xlu0 %v2106, 32
    %v2547 = vpop.permute.xlu0 %2546
    %v2550 = vsel %vm528, %v2545, 0
    %2552 = vmatpush.bf16.msra.mxu0 0
    %2553 = vmatpush.bf16.msra.mxu0 0
    %2554 = vmatpush.bf16.msra.mxu0 0
    %2555 = vmatpush.bf16.msra.mxu0 0
    %2556 = vmatpush.bf16.msra.mxu0 0
    %2557 = vmatpush.bf16.msra.mxu0 0
    %2558 = vmatpush.bf16.msra.mxu0 0
    %2559 = vmatpush.bf16.msra.mxu0 %v2547
    %2560 = vmatmul.bf16.gmra.mxu0 %v2550
    %v2561 = vpop.f32.mrf.mxu0
    %v2562 = vadd.f32 0.0, %v2561
    %v2563 = vpop.f32.mrf.mxu0
    %v2564 = vadd.f32 0.0, %v2563
    %2565 = vdwg.mxu0
    %v2568 = vunpack.c.l.b16 %v2539
    %v2569 = vunpack.c.l.b16 %v2540
    %v2570 = vpack.c.b16 %v2569, %v2568
    %2571 = vrot.lane.b32.xlu0 %v2134, 32
    %v2572 = vpop.permute.xlu0 %2571
    %v2575 = vsel %vm528, %v2570, 0
    %2577 = vmatpush.bf16.msra.mxu0 0
    %2578 = vmatpush.bf16.msra.mxu0 0
    %2579 = vmatpush.bf16.msra.mxu0 0
    %2580 = vmatpush.bf16.msra.mxu0 0
    %2581 = vmatpush.bf16.msra.mxu0 0
    %2582 = vmatpush.bf16.msra.mxu0 0
    %2583 = vmatpush.bf16.msra.mxu0 0
    %2584 = vmatpush.bf16.msra.mxu0 %v2572
    %2585 = vmatmul.bf16.gmra.mxu0 %v2575
    %v2586 = vpop.f32.mrf.mxu0
    %v2587 = vadd.f32 0.0, %v2586
    %v2588 = vpop.f32.mrf.mxu0
    %v2589 = vadd.f32 0.0, %v2588
    %2590 = vdwg.mxu0
    %2595 = vrot.lane.b32.xlu0 %v2270, 32
    %v2596 = vpop.permute.xlu0 %2595
    %2597 = vrot.lane.b32.xlu0 %v2272, 32
    %v2598 = vpop.permute.xlu0 %2597
    %2599 = vrot.lane.b32.xlu0 %v2295, 32
    %v2600 = vpop.permute.xlu0 %2599
    %2601 = vrot.lane.b32.xlu0 %v2297, 32
    %v2602 = vpop.permute.xlu0 %2601
    %2611 = vrot.lane.b32.xlu0 %v2416, 64
    %v2612 = vpop.permute.xlu0 %2611
    %2613 = vrot.lane.b32.xlu0 %v2418, 64
    %v2614 = vpop.permute.xlu0 %2613
    %2615 = vrot.lane.b32.xlu0 %v2441, 64
    %v2616 = vpop.permute.xlu0 %2615
    %2617 = vrot.lane.b32.xlu0 %v2443, 64
    %v2618 = vpop.permute.xlu0 %2617
    %2627 = vrot.lane.b32.xlu0 %v2562, 96
    %v2628 = vpop.permute.xlu0 %2627
    %2629 = vrot.lane.b32.xlu0 %v2564, 96
    %v2630 = vpop.permute.xlu0 %2629
    %2631 = vrot.lane.b32.xlu0 %v2587, 96
    %v2632 = vpop.permute.xlu0 %2631
    %2633 = vrot.lane.b32.xlu0 %v2589, 96
    %v2634 = vpop.permute.xlu0 %2633
    %v2639 = vsel %vm481, %v2121, %v2596
    %v2640 = vsel %vm481, %v2123, %v2598
    %v2641 = vsel %vm481, %v2149, %v2600
    %v2642 = vsel %vm481, %v2151, %v2602
    %v2643 = vsel %vm179, %v2639, %v2612
    %v2644 = vsel %vm179, %v2640, %v2614
    %v2645 = vsel %vm179, %v2641, %v2616
    %v2646 = vsel %vm179, %v2642, %v2618
    %v2647 = vsel %vm1127, %v2643, %v2628
    %v2648 = vsel %vm1127, %v2644, %v2630
    %v2649 = vsel %vm1127, %v2645, %v2632
    %v2650 = vsel %vm1127, %v2646, %v2634
    %v2651 = vpack.c.bf16 %v2648, %v2647
    %v2652 = vpack.c.bf16 %v2650, %v2649
    %s2653 = scalar_lea.vmem %s6, 64
    %v2654 = vld [vmem:[%s2653] sm:$0xf]
    %v2655 = vld [vmem:[%s2653 + $0x4] sm:$0xf]
    %v2656 = vld [vmem:[%s2653 + $0x8] sm:$0xf]
    %v2657 = vld [vmem:[%s2653 + $0xc] sm:$0xf]
    %v2658 = vld [vmem:[%s2653 + $0x10] sm:$0xf]
    %v2659 = vld [vmem:[%s2653 + $0x14] sm:$0xf]
    %v2660 = vld [vmem:[%s2653 + $0x18] sm:$0xf]
    %v2661 = vld [vmem:[%s2653 + $0x1c] sm:$0xf]
    %v2662 = vld [vmem:[%s2653 + $0x20] sm:$0xf]
    %v2663 = vld [vmem:[%s2653 + $0x24] sm:$0xf]
    %v2664 = vld [vmem:[%s2653 + $0x28] sm:$0xf]
    %v2665 = vld [vmem:[%s2653 + $0x2c] sm:$0xf]
    %v2666 = vld [vmem:[%s2653 + $0x30] sm:$0xf]
    %v2667 = vld [vmem:[%s2653 + $0x34] sm:$0xf]
    %v2668 = vld [vmem:[%s2653 + $0x38] sm:$0xf]
    %v2669 = vld [vmem:[%s2653 + $0x3c] sm:$0xf]
    %s2670 = scalar_lea.vmem %s7, 1
    %v2671 = vld [vmem:[%s2670] sm:$0x1]
    %v2673 = vperm.slane %v2671, 0
    %v2691 = vunpack.c.l.b16 %v2654
    %v2692 = vunpack.c.l.b16 %v2655
    %v2693 = vunpack.c.l.b16 %v2656
    %v2694 = vunpack.c.l.b16 %v2657
    %v2695 = vunpack.c.l.b16 %v2658
    %v2696 = vunpack.c.l.b16 %v2659
    %v2697 = vunpack.c.l.b16 %v2660
    %v2698 = vunpack.c.l.b16 %v2661
    %v2699 = vunpack.c.l.b16 %v2662
    %v2700 = vunpack.c.l.b16 %v2663
    %v2701 = vunpack.c.l.b16 %v2664
    %v2702 = vunpack.c.l.b16 %v2665
    %v2703 = vunpack.c.l.b16 %v2666
    %v2704 = vunpack.c.l.b16 %v2667
    %v2705 = vunpack.c.l.b16 %v2668
    %v2706 = vunpack.c.l.b16 %v2669
    %v2707 = vpack.c.b16 %v2692, %v2691
    %v2708 = vpack.c.b16 %v2694, %v2693
    %v2709 = vpack.c.b16 %v2696, %v2695
    %v2710 = vpack.c.b16 %v2698, %v2697
    %v2711 = vpack.c.b16 %v2700, %v2699
    %v2712 = vpack.c.b16 %v2702, %v2701
    %v2713 = vpack.c.b16 %v2704, %v2703
    %v2714 = vpack.c.b16 %v2706, %v2705
    %2723 = vmatpush.bf16.msra.mxu0 %v2714
    %2724 = vmatpush.bf16.msra.mxu0 %v2713
    %2725 = vmatpush.bf16.msra.mxu0 %v2712
    %2726 = vmatpush.bf16.msra.mxu0 %v2711
    %2727 = vmatpush.bf16.msra.mxu0 %v2710
    %2728 = vmatpush.bf16.msra.mxu0 %v2709
    %2729 = vmatpush.bf16.msra.mxu0 %v2708
    %2730 = vmatpush.bf16.msra.mxu0 %v2707
    %2731 = vmatmul.bf16.gmra.mxu0 %v2651
    %v2732 = vpop.f32.mrf.mxu0
    %v2733 = vadd.f32 %v2673, %v2732
    %v2734 = vpop.f32.mrf.mxu0
    %v2735 = vadd.f32 %v2673, %v2734
    %2736 = vmatmul.bf16.gmra.mxu0 %v2652
    %v2737 = vpop.f32.mrf.mxu0
    %v2738 = vadd.f32 %v2673, %v2737
    %v2739 = vpop.f32.mrf.mxu0
    %v2740 = vadd.f32 %v2673, %v2739
    %2741 = vdwg.mxu0
    %v2742 = vadd.f32 %v1748, %v2733
    %v2743 = vadd.f32 %v1749, %v2735
    %v2744 = vadd.f32 %v1750, %v2738
    %v2745 = vadd.f32 %v1751, %v2740
    %s2746 = scalar_lea.vmem %s8, 1
    %v2747 = vld [vmem:[%s2746] sm:$0x1]
    %s2748 = scalar_lea.vmem %s9, 1
    %v2749 = vld [vmem:[%s2748] sm:$0x1]
    %2750 = vadd.xlane.f32.xlu0 %v2742
    %v2751 = vpop.xlane.xlu0 %2750
    %2752 = vadd.xlane.f32.xlu0 %v2743
    %v2753 = vpop.xlane.xlu0 %2752
    %2754 = vadd.xlane.f32.xlu0 %v2744
    %v2755 = vpop.xlane.xlu0 %2754
    %2756 = vadd.xlane.f32.xlu0 %v2745
    %v2757 = vpop.xlane.xlu0 %2756
    %v2758 = vmul.f32 %v2751, %v1241
    %v2759 = vmul.f32 %v2753, %v1241
    %v2760 = vmul.f32 %v2755, %v1241
    %v2761 = vmul.f32 %v2757, %v1241
    %v2762 = vsub.f32 %v2742, %v2758
    %v2763 = vsub.f32 %v2743, %v2759
    %v2764 = vsub.f32 %v2744, %v2760
    %v2765 = vsub.f32 %v2745, %v2761
    %v2766 = vmul.f32 %v2762, %v2762
    %v2767 = vmul.f32 %v2763, %v2763
    %v2768 = vmul.f32 %v2764, %v2764
    %v2769 = vmul.f32 %v2765, %v2765
    %2770 = vadd.xlane.f32.xlu0 %v2766
    %v2771 = vpop.xlane.xlu0 %2770
    %2772 = vadd.xlane.f32.xlu0 %v2767
    %v2773 = vpop.xlane.xlu0 %2772
    %2774 = vadd.xlane.f32.xlu0 %v2768
    %v2775 = vpop.xlane.xlu0 %2774
    %2776 = vadd.xlane.f32.xlu0 %v2769
    %v2777 = vpop.xlane.xlu0 %2776
    %v2778 = vmul.f32 %v2771, %v1241
    %v2779 = vmul.f32 %v2773, %v1241
    %v2780 = vmul.f32 %v2775, %v1241
    %v2781 = vmul.f32 %v2777, %v1241
    %v2782 = vadd.f32 %v2778, 1e-05
    %v2783 = vadd.f32 %v2779, 1e-05
    %v2784 = vadd.f32 %v2780, 1e-05
    %v2785 = vadd.f32 %v2781, 1e-05
    %v2786 = vrsqrt.pop %v2782
    %v2787 = vmul.f32 %v2786, %v2782
    %v2788 = vmul.f32 %v2787, %v2786
    %v2789 = vmul.f32 0.5, %v2788
    %v2790 = vsub.f32 1.5, %v2789
    %v2791 = vmul.f32 %v2786, %v2790
    %vm2792 = vweird.f32 %v2782
    %vm2793 = vweird.f32 %v2786
    %vm2794 = vmor %vm2792, %vm2793
    %v2795 = vsel %vm2794, %v2786, %v2791
    %v2796 = vrsqrt.pop %v2783
    %v2797 = vmul.f32 %v2796, %v2783
    %v2798 = vmul.f32 %v2797, %v2796
    %v2799 = vmul.f32 0.5, %v2798
    %v2800 = vsub.f32 1.5, %v2799
    %v2801 = vmul.f32 %v2796, %v2800
    %vm2802 = vweird.f32 %v2783
    %vm2803 = vweird.f32 %v2796
    %vm2804 = vmor %vm2802, %vm2803
    %v2805 = vsel %vm2804, %v2796, %v2801
    %v2806 = vrsqrt.pop %v2784
    %v2807 = vmul.f32 %v2806, %v2784
    %v2808 = vmul.f32 %v2807, %v2806
    %v2809 = vmul.f32 0.5, %v2808
    %v2810 = vsub.f32 1.5, %v2809
    %v2811 = vmul.f32 %v2806, %v2810
    %vm2812 = vweird.f32 %v2784
    %vm2813 = vweird.f32 %v2806
    %vm2814 = vmor %vm2812, %vm2813
    %v2815 = vsel %vm2814, %v2806, %v2811
    %v2816 = vrsqrt.pop %v2785
    %v2817 = vmul.f32 %v2816, %v2785
    %v2818 = vmul.f32 %v2817, %v2816
    %v2819 = vmul.f32 0.5, %v2818
    %v2820 = vsub.f32 1.5, %v2819
    %v2821 = vmul.f32 %v2816, %v2820
    %vm2822 = vweird.f32 %v2785
    %vm2823 = vweird.f32 %v2816
    %vm2824 = vmor %vm2822, %vm2823
    %v2825 = vsel %vm2824, %v2816, %v2821
    %v2826 = vmul.f32 %v2762, %v2795
    %v2827 = vmul.f32 %v2763, %v2805
    %v2828 = vmul.f32 %v2764, %v2815
    %v2829 = vmul.f32 %v2765, %v2825
    %v2831 = vperm.slane %v2747, 0
    %v2833 = vmul.f32 %v2826, %v2831
    %v2834 = vmul.f32 %v2827, %v2831
    %v2835 = vmul.f32 %v2828, %v2831
    %v2836 = vmul.f32 %v2829, %v2831
    %v2838 = vperm.slane %v2749, 0
    %v2840 = vadd.f32 %v2833, %v2838
    %v2841 = vadd.f32 %v2834, %v2838
    %v2842 = vadd.f32 %v2835, %v2838
    %v2843 = vadd.f32 %v2836, %v2838
    %v2844 = vpack.c.bf16 %v2841, %v2840
    %v2845 = vpack.c.bf16 %v2843, %v2842
    %s2846 = scalar_lea.vmem %s10, 128
    %v2847 = vld [vmem:[%s2846] sm:$0xff]
    %v2848 = vld [vmem:[%s2846 + $0x8] sm:$0xff]
    %v2849 = vld [vmem:[%s2846 + $0x10] sm:$0xff]
    %v2850 = vld [vmem:[%s2846 + $0x18] sm:$0xff]
    %v2851 = vld [vmem:[%s2846 + $0x20] sm:$0xff]
    %v2852 = vld [vmem:[%s2846 + $0x28] sm:$0xff]
    %v2853 = vld [vmem:[%s2846 + $0x30] sm:$0xff]
    %v2854 = vld [vmem:[%s2846 + $0x38] sm:$0xff]
    %v2855 = vld [vmem:[%s2846 + $0x40] sm:$0xff]
    %v2856 = vld [vmem:[%s2846 + $0x48] sm:$0xff]
    %v2857 = vld [vmem:[%s2846 + $0x50] sm:$0xff]
    %v2858 = vld [vmem:[%s2846 + $0x58] sm:$0xff]
    %v2859 = vld [vmem:[%s2846 + $0x60] sm:$0xff]
    %v2860 = vld [vmem:[%s2846 + $0x68] sm:$0xff]
    %v2861 = vld [vmem:[%s2846 + $0x70] sm:$0xff]
    %v2862 = vld [vmem:[%s2846 + $0x78] sm:$0xff]
    %s2863 = scalar_lea.vmem %s11, 2
    %v2864 = vld [vmem:[%s2863] sm:$0x3]
    %v2866 = vperm.slane %v2864, 0
    %v2867 = vperm.slane %v2864, 1
    %v2886 = vunpack.c.l.b16 %v2847
    %v2887 = vunpack.c.h.b16 %v2847
    %v2888 = vunpack.c.l.b16 %v2848
    %v2889 = vunpack.c.h.b16 %v2848
    %v2890 = vunpack.c.l.b16 %v2849
    %v2891 = vunpack.c.h.b16 %v2849
    %v2892 = vunpack.c.l.b16 %v2850
    %v2893 = vunpack.c.h.b16 %v2850
    %v2894 = vunpack.c.l.b16 %v2851
    %v2895 = vunpack.c.h.b16 %v2851
    %v2896 = vunpack.c.l.b16 %v2852
    %v2897 = vunpack.c.h.b16 %v2852
    %v2898 = vunpack.c.l.b16 %v2853
    %v2899 = vunpack.c.h.b16 %v2853
    %v2900 = vunpack.c.l.b16 %v2854
    %v2901 = vunpack.c.h.b16 %v2854
    %v2902 = vunpack.c.l.b16 %v2855
    %v2903 = vunpack.c.h.b16 %v2855
    %v2904 = vunpack.c.l.b16 %v2856
    %v2905 = vunpack.c.h.b16 %v2856
    %v2906 = vunpack.c.l.b16 %v2857
    %v2907 = vunpack.c.h.b16 %v2857
    %v2908 = vunpack.c.l.b16 %v2858
    %v2909 = vunpack.c.h.b16 %v2858
    %v2910 = vunpack.c.l.b16 %v2859
    %v2911 = vunpack.c.h.b16 %v2859
    %v2912 = vunpack.c.l.b16 %v2860
    %v2913 = vunpack.c.h.b16 %v2860
    %v2914 = vunpack.c.l.b16 %v2861
    %v2915 = vunpack.c.h.b16 %v2861
    %v2916 = vunpack.c.l.b16 %v2862
    %v2917 = vunpack.c.h.b16 %v2862
    %v2918 = vpack.c.b16 %v2888, %v2886
    %v2919 = vpack.c.b16 %v2889, %v2887
    %v2920 = vpack.c.b16 %v2892, %v2890
    %v2921 = vpack.c.b16 %v2893, %v2891
    %v2922 = vpack.c.b16 %v2896, %v2894
    %v2923 = vpack.c.b16 %v2897, %v2895
    %v2924 = vpack.c.b16 %v2900, %v2898
    %v2925 = vpack.c.b16 %v2901, %v2899
    %v2926 = vpack.c.b16 %v2904, %v2902
    %v2927 = vpack.c.b16 %v2905, %v2903
    %v2928 = vpack.c.b16 %v2908, %v2906
    %v2929 = vpack.c.b16 %v2909, %v2907
    %v2930 = vpack.c.b16 %v2912, %v2910
    %v2931 = vpack.c.b16 %v2913, %v2911
    %v2932 = vpack.c.b16 %v2916, %v2914
    %v2933 = vpack.c.b16 %v2917, %v2915
    %2950 = vmatpush.bf16.msra.mxu0 %v2932
    %2951 = vmatpush.bf16.msra.mxu0 %v2930
    %2952 = vmatpush.bf16.msra.mxu0 %v2928
    %2953 = vmatpush.bf16.msra.mxu0 %v2926
    %2954 = vmatpush.bf16.msra.mxu0 %v2924
    %2955 = vmatpush.bf16.msra.mxu0 %v2922
    %2956 = vmatpush.bf16.msra.mxu0 %v2920
    %2957 = vmatpush.bf16.msra.mxu0 %v2918
    %2958 = vmatmul.bf16.gmra.mxu0 %v2844
    %v2959 = vpop.f32.mrf.mxu0
    %v2960 = vadd.f32 %v2866, %v2959
    %v2961 = vpop.f32.mrf.mxu0
    %v2962 = vadd.f32 %v2866, %v2961
    %2963 = vmatmul.bf16.gmra.mxu0 %v2845
    %v2964 = vpop.f32.mrf.mxu0
    %v2965 = vadd.f32 %v2866, %v2964
    %v2966 = vpop.f32.mrf.mxu0
    %v2967 = vadd.f32 %v2866, %v2966
    %2968 = vdwg.mxu0
    %2969 = vmatpush.bf16.msra.mxu0 %v2933
    %2970 = vmatpush.bf16.msra.mxu0 %v2931
    %2971 = vmatpush.bf16.msra.mxu0 %v2929
    %2972 = vmatpush.bf16.msra.mxu0 %v2927
    %2973 = vmatpush.bf16.msra.mxu0 %v2925
    %2974 = vmatpush.bf16.msra.mxu0 %v2923
    %2975 = vmatpush.bf16.msra.mxu0 %v2921
    %2976 = vmatpush.bf16.msra.mxu0 %v2919
    %2977 = vmatmul.bf16.gmra.mxu0 %v2844
    %v2978 = vpop.f32.mrf.mxu0
    %v2979 = vadd.f32 %v2867, %v2978
    %v2980 = vpop.f32.mrf.mxu0
    %v2981 = vadd.f32 %v2867, %v2980
    %2982 = vmatmul.bf16.gmra.mxu0 %v2845
    %v2983 = vpop.f32.mrf.mxu0
    %v2984 = vadd.f32 %v2867, %v2983
    %v2985 = vpop.f32.mrf.mxu0
    %v2986 = vadd.f32 %v2867, %v2985
    %2987 = vdwg.mxu0
    %v2988 = vmax.f32 %v2960, 0.0
    %v2989 = vmax.f32 %v2979, 0.0
    %v2990 = vmax.f32 %v2962, 0.0
    %v2991 = vmax.f32 %v2981, 0.0
    %v2992 = vmax.f32 %v2965, 0.0
    %v2993 = vmax.f32 %v2984, 0.0
    %v2994 = vmax.f32 %v2967, 0.0
    %v2995 = vmax.f32 %v2986, 0.0
    %v2996 = vpack.c.bf16 %v2990, %v2988
    %v2997 = vpack.c.bf16 %v2991, %v2989
    %v2998 = vpack.c.bf16 %v2994, %v2992
    %v2999 = vpack.c.bf16 %v2995, %v2993
    %s3000 = scalar_lea.vmem %s12, 128
    %v3001 = vld [vmem:[%s3000] sm:$0xf]
    %v3002 = vld [vmem:[%s3000 + $0x4] sm:$0xf]
    %v3003 = vld [vmem:[%s3000 + $0x8] sm:$0xf]
    %v3004 = vld [vmem:[%s3000 + $0xc] sm:$0xf]
    %v3005 = vld [vmem:[%s3000 + $0x10] sm:$0xf]
    %v3006 = vld [vmem:[%s3000 + $0x14] sm:$0xf]
    %v3007 = vld [vmem:[%s3000 + $0x18] sm:$0xf]
    %v3008 = vld [vmem:[%s3000 + $0x1c] sm:$0xf]
    %v3009 = vld [vmem:[%s3000 + $0x20] sm:$0xf]
    %v3010 = vld [vmem:[%s3000 + $0x24] sm:$0xf]
    %v3011 = vld [vmem:[%s3000 + $0x28] sm:$0xf]
    %v3012 = vld [vmem:[%s3000 + $0x2c] sm:$0xf]
    %v3013 = vld [vmem:[%s3000 + $0x30] sm:$0xf]
    %v3014 = vld [vmem:[%s3000 + $0x34] sm:$0xf]
    %v3015 = vld [vmem:[%s3000 + $0x38] sm:$0xf]
    %v3016 = vld [vmem:[%s3000 + $0x3c] sm:$0xf]
    %v3017 = vld [vmem:[%s3000 + $0x40] sm:$0xf]
    %v3018 = vld [vmem:[%s3000 + $0x44] sm:$0xf]
    %v3019 = vld [vmem:[%s3000 + $0x48] sm:$0xf]
    %v3020 = vld [vmem:[%s3000 + $0x4c] sm:$0xf]
    %v3021 = vld [vmem:[%s3000 + $0x50] sm:$0xf]
    %v3022 = vld [vmem:[%s3000 + $0x54] sm:$0xf]
    %v3023 = vld [vmem:[%s3000 + $0x58] sm:$0xf]
    %v3024 = vld [vmem:[%s3000 + $0x5c] sm:$0xf]
    %v3025 = vld [vmem:[%s3000 + $0x60] sm:$0xf]
    %v3026 = vld [vmem:[%s3000 + $0x64] sm:$0xf]
    %v3027 = vld [vmem:[%s3000 + $0x68] sm:$0xf]
    %v3028 = vld [vmem:[%s3000 + $0x6c] sm:$0xf]
    %v3029 = vld [vmem:[%s3000 + $0x70] sm:$0xf]
    %v3030 = vld [vmem:[%s3000 + $0x74] sm:$0xf]
    %v3031 = vld [vmem:[%s3000 + $0x78] sm:$0xf]
    %v3032 = vld [vmem:[%s3000 + $0x7c] sm:$0xf]
    %s3033 = scalar_lea.vmem %s13, 1
    %v3034 = vld [vmem:[%s3033] sm:$0x1]
    %v3036 = vperm.slane %v3034, 0
    %v3070 = vunpack.c.l.b16 %v3001
    %v3071 = vunpack.c.l.b16 %v3002
    %v3072 = vunpack.c.l.b16 %v3003
    %v3073 = vunpack.c.l.b16 %v3004
    %v3074 = vunpack.c.l.b16 %v3005
    %v3075 = vunpack.c.l.b16 %v3006
    %v3076 = vunpack.c.l.b16 %v3007
    %v3077 = vunpack.c.l.b16 %v3008
    %v3078 = vunpack.c.l.b16 %v3009
    %v3079 = vunpack.c.l.b16 %v3010
    %v3080 = vunpack.c.l.b16 %v3011
    %v3081 = vunpack.c.l.b16 %v3012
    %v3082 = vunpack.c.l.b16 %v3013
    %v3083 = vunpack.c.l.b16 %v3014
    %v3084 = vunpack.c.l.b16 %v3015
    %v3085 = vunpack.c.l.b16 %v3016
    %v3086 = vunpack.c.l.b16 %v3017
    %v3087 = vunpack.c.l.b16 %v3018
    %v3088 = vunpack.c.l.b16 %v3019
    %v3089 = vunpack.c.l.b16 %v3020
    %v3090 = vunpack.c.l.b16 %v3021
    %v3091 = vunpack.c.l.b16 %v3022
    %v3092 = vunpack.c.l.b16 %v3023
    %v3093 = vunpack.c.l.b16 %v3024
    %v3094 = vunpack.c.l.b16 %v3025
    %v3095 = vunpack.c.l.b16 %v3026
    %v3096 = vunpack.c.l.b16 %v3027
    %v3097 = vunpack.c.l.b16 %v3028
    %v3098 = vunpack.c.l.b16 %v3029
    %v3099 = vunpack.c.l.b16 %v3030
    %v3100 = vunpack.c.l.b16 %v3031
    %v3101 = vunpack.c.l.b16 %v3032
    %v3102 = vpack.c.b16 %v3071, %v3070
    %v3103 = vpack.c.b16 %v3073, %v3072
    %v3104 = vpack.c.b16 %v3075, %v3074
    %v3105 = vpack.c.b16 %v3077, %v3076
    %v3106 = vpack.c.b16 %v3079, %v3078
    %v3107 = vpack.c.b16 %v3081, %v3080
    %v3108 = vpack.c.b16 %v3083, %v3082
    %v3109 = vpack.c.b16 %v3085, %v3084
    %v3110 = vpack.c.b16 %v3087, %v3086
    %v3111 = vpack.c.b16 %v3089, %v3088
    %v3112 = vpack.c.b16 %v3091, %v3090
    %v3113 = vpack.c.b16 %v3093, %v3092
    %v3114 = vpack.c.b16 %v3095, %v3094
    %v3115 = vpack.c.b16 %v3097, %v3096
    %v3116 = vpack.c.b16 %v3099, %v3098
    %v3117 = vpack.c.b16 %v3101, %v3100
    %3134 = vmatpush.bf16.msra.mxu0 %v3109
    %3135 = vmatpush.bf16.msra.mxu0 %v3108
    %3136 = vmatpush.bf16.msra.mxu0 %v3107
    %3137 = vmatpush.bf16.msra.mxu0 %v3106
    %3138 = vmatpush.bf16.msra.mxu0 %v3105
    %3139 = vmatpush.bf16.msra.mxu0 %v3104
    %3140 = vmatpush.bf16.msra.mxu0 %v3103
    %3141 = vmatpush.bf16.msra.mxu0 %v3102
    %3142 = vmatmul.bf16.gmra.mxu0 %v2996
    %v3143 = vpop.f32.mrf.mxu0
    %v3144 = vadd.f32 %v3036, %v3143
    %v3145 = vpop.f32.mrf.mxu0
    %v3146 = vadd.f32 %v3036, %v3145
    %3147 = vmatmul.bf16.gmra.mxu0 %v2998
    %v3148 = vpop.f32.mrf.mxu0
    %v3149 = vadd.f32 %v3036, %v3148
    %v3150 = vpop.f32.mrf.mxu0
    %v3151 = vadd.f32 %v3036, %v3150
    %3152 = vdwg.mxu0
    %3153 = vmatpush.bf16.msra.mxu0 %v3117
    %3154 = vmatpush.bf16.msra.mxu0 %v3116
    %3155 = vmatpush.bf16.msra.mxu0 %v3115
    %3156 = vmatpush.bf16.msra.mxu0 %v3114
    %3157 = vmatpush.bf16.msra.mxu0 %v3113
    %3158 = vmatpush.bf16.msra.mxu0 %v3112
    %3159 = vmatpush.bf16.msra.mxu0 %v3111
    %3160 = vmatpush.bf16.msra.mxu0 %v3110
    %3161 = vmatmul.bf16.gmra.mxu0 %v2997
    %v3162 = vpop.f32.mrf.mxu0
    %v3163 = vadd.f32 %v3144, %v3162
    %v3164 = vpop.f32.mrf.mxu0
    %v3165 = vadd.f32 %v3146, %v3164
    %3166 = vmatmul.bf16.gmra.mxu0 %v2999
    %v3167 = vpop.f32.mrf.mxu0
    %v3168 = vadd.f32 %v3149, %v3167
    %v3169 = vpop.f32.mrf.mxu0
    %v3170 = vadd.f32 %v3151, %v3169
    %3171 = vdwg.mxu0
    %v3172 = vadd.f32 %v2840, %v3163
    %v3173 = vadd.f32 %v2841, %v3165
    %v3174 = vadd.f32 %v2842, %v3168
    %v3175 = vadd.f32 %v2843, %v3170
    %s3176 = scalar_lea.vmem %s14, 1
    %v3177 = vld [vmem:[%s3176] sm:$0x1]
    %s3178 = scalar_lea.vmem %s15, 1
    %v3179 = vld [vmem:[%s3178] sm:$0x1]
    %3180 = vadd.xlane.f32.xlu0 %v3172
    %v3181 = vpop.xlane.xlu0 %3180
    %3182 = vadd.xlane.f32.xlu0 %v3173
    %v3183 = vpop.xlane.xlu0 %3182
    %3184 = vadd.xlane.f32.xlu0 %v3174
    %v3185 = vpop.xlane.xlu0 %3184
    %3186 = vadd.xlane.f32.xlu0 %v3175
    %v3187 = vpop.xlane.xlu0 %3186
    %v3188 = vmul.f32 %v3181, %v1241
    %v3189 = vmul.f32 %v3183, %v1241
    %v3190 = vmul.f32 %v3185, %v1241
    %v3191 = vmul.f32 %v3187, %v1241
    %v3192 = vsub.f32 %v3172, %v3188
    %v3193 = vsub.f32 %v3173, %v3189
    %v3194 = vsub.f32 %v3174, %v3190
    %v3195 = vsub.f32 %v3175, %v3191
    %v3196 = vmul.f32 %v3192, %v3192
    %v3197 = vmul.f32 %v3193, %v3193
    %v3198 = vmul.f32 %v3194, %v3194
    %v3199 = vmul.f32 %v3195, %v3195
    %3200 = vadd.xlane.f32.xlu0 %v3196
    %v3201 = vpop.xlane.xlu0 %3200
    %3202 = vadd.xlane.f32.xlu0 %v3197
    %v3203 = vpop.xlane.xlu0 %3202
    %3204 = vadd.xlane.f32.xlu0 %v3198
    %v3205 = vpop.xlane.xlu0 %3204
    %3206 = vadd.xlane.f32.xlu0 %v3199
    %v3207 = vpop.xlane.xlu0 %3206
    %v3208 = vmul.f32 %v3201, %v1241
    %v3209 = vmul.f32 %v3203, %v1241
    %v3210 = vmul.f32 %v3205, %v1241
    %v3211 = vmul.f32 %v3207, %v1241
    %v3212 = vadd.f32 %v3208, 1e-05
    %v3213 = vadd.f32 %v3209, 1e-05
    %v3214 = vadd.f32 %v3210, 1e-05
    %v3215 = vadd.f32 %v3211, 1e-05
    %v3216 = vrsqrt.pop %v3212
    %v3217 = vmul.f32 %v3216, %v3212
    %v3218 = vmul.f32 %v3217, %v3216
    %v3219 = vmul.f32 0.5, %v3218
    %v3220 = vsub.f32 1.5, %v3219
    %v3221 = vmul.f32 %v3216, %v3220
    %vm3222 = vweird.f32 %v3212
    %vm3223 = vweird.f32 %v3216
    %vm3224 = vmor %vm3222, %vm3223
    %v3225 = vsel %vm3224, %v3216, %v3221
    %v3226 = vrsqrt.pop %v3213
    %v3227 = vmul.f32 %v3226, %v3213
    %v3228 = vmul.f32 %v3227, %v3226
    %v3229 = vmul.f32 0.5, %v3228
    %v3230 = vsub.f32 1.5, %v3229
    %v3231 = vmul.f32 %v3226, %v3230
    %vm3232 = vweird.f32 %v3213
    %vm3233 = vweird.f32 %v3226
    %vm3234 = vmor %vm3232, %vm3233
    %v3235 = vsel %vm3234, %v3226, %v3231
    %v3236 = vrsqrt.pop %v3214
    %v3237 = vmul.f32 %v3236, %v3214
    %v3238 = vmul.f32 %v3237, %v3236
    %v3239 = vmul.f32 0.5, %v3238
    %v3240 = vsub.f32 1.5, %v3239
    %v3241 = vmul.f32 %v3236, %v3240
    %vm3242 = vweird.f32 %v3214
    %vm3243 = vweird.f32 %v3236
    %vm3244 = vmor %vm3242, %vm3243
    %v3245 = vsel %vm3244, %v3236, %v3241
    %v3246 = vrsqrt.pop %v3215
    %v3247 = vmul.f32 %v3246, %v3215
    %v3248 = vmul.f32 %v3247, %v3246
    %v3249 = vmul.f32 0.5, %v3248
    %v3250 = vsub.f32 1.5, %v3249
    %v3251 = vmul.f32 %v3246, %v3250
    %vm3252 = vweird.f32 %v3215
    %vm3253 = vweird.f32 %v3246
    %vm3254 = vmor %vm3252, %vm3253
    %v3255 = vsel %vm3254, %v3246, %v3251
    %v3256 = vmul.f32 %v3192, %v3225
    %v3257 = vmul.f32 %v3193, %v3235
    %v3258 = vmul.f32 %v3194, %v3245
    %v3259 = vmul.f32 %v3195, %v3255
    %v3261 = vperm.slane %v3177, 0
    %v3263 = vmul.f32 %v3256, %v3261
    %v3264 = vmul.f32 %v3257, %v3261
    %v3265 = vmul.f32 %v3258, %v3261
    %v3266 = vmul.f32 %v3259, %v3261
    %v3268 = vperm.slane %v3179, 0
    %v3270 = vadd.f32 %v3263, %v3268
    %v3271 = vadd.f32 %v3264, %v3268
    %v3272 = vadd.f32 %v3265, %v3268
    %v3273 = vadd.f32 %v3266, %v3268
    %v3274 = vadd.f32 %v3270, %v3271
    %v3275 = vrot.slane %v3274, 4
    %v3276 = vadd.f32 %v3274, %v3275
    %v3277 = vrot.slane %v3276, 2
    %v3278 = vadd.f32 %v3276, %v3277
    %v3279 = vrot.slane %v3278, 1
    %v3280 = vadd.f32 %v3278, %v3279
    %v3281 = vadd.f32 %v3272, %v3273
    %v3282 = vrot.slane %v3281, 4
    %v3283 = vadd.f32 %v3281, %v3282
    %v3284 = vrot.slane %v3283, 2
    %v3285 = vadd.f32 %v3283, %v3284
    %v3286 = vrot.slane %v3285, 1
    %v3287 = vadd.f32 %v3285, %v3286
    %v3288 = vrcp.pop 16.0
    %v3289 = vmul.f32 16.0, %v3288
    %v3290 = vsub.f32 1.0, %v3289
    %v3291 = vmul.f32 %v3288, %v3290
    %v3292 = vadd.f32 %v3288, %v3291
    %vm3293 = vweird.f32 %v3288
    %v3294 = vsel %vm3293, %v3288, %v3292
    %v3295 = vmul.f32 %v3280, %v3294
    %v3296 = vmul.f32 %v3287, %v3294
    %v3297 = vld [vmem:[%s16] sm:$0x1]
    %v3298 = vld [vmem:[%s17] sm:$0x1]
    %vm3301 = vcmask 1041409
    %v3302 = vsel %vm3301, %v3296, %v3295
    %vm3304 = vcmask 1041408
    %v3305 = vsel %vm3304, %v3302, 0.0
    %3306 = vadd.xlane.f32.xlu0 %v3305
    %v3307 = vpop.xlane.xlu0 %3306
    %v3308 = vmul.f32 %v3307, %v1241
    %v3310 = vrot.slane %v3308, 1
    %v3313 = vsub.f32 %v3295, %v3308
    %v3314 = vsub.f32 %v3296, %v3310
    %v3315 = vmul.f32 %v3313, %v3313
    %v3316 = vmul.f32 %v3314, %v3314
    %v3319 = vrot.slane %v3316, 7
    %v3320 = vsel %vm3301, %v3319, %v3315
    %v3322 = vsel %vm3304, %v3320, 0.0
    %3323 = vadd.xlane.f32.xlu0 %v3322
    %v3324 = vpop.xlane.xlu0 %3323
    %v3325 = vmul.f32 %v3324, %v1241
    %v3326 = vadd.f32 %v3325, 1e-05
    %v3327 = vrsqrt.pop %v3326
    %v3328 = vmul.f32 %v3327, %v3326
    %v3329 = vmul.f32 %v3328, %v3327
    %v3330 = vmul.f32 0.5, %v3329
    %v3331 = vsub.f32 1.5, %v3330
    %v3332 = vmul.f32 %v3327, %v3331
    %vm3333 = vweird.f32 %v3326
    %vm3334 = vweird.f32 %v3327
    %vm3335 = vmor %vm3333, %vm3334
    %v3336 = vsel %vm3335, %v3327, %v3332
    %v3338 = vrot.slane %v3336, 1
    %v3341 = vmul.f32 %v3313, %v3336
    %v3342 = vmul.f32 %v3314, %v3338
    %v3344 = vperm.slane %v3297, 0
    %v3346 = vmul.f32 %v3341, %v3344
    %v3347 = vmul.f32 %v3342, %v3344
    %v3349 = vperm.slane %v3298, 0
    %v3351 = vadd.f32 %v3346, %v3349
    %v3352 = vadd.f32 %v3347, %v3349
    %v3353 = vld [vmem:[%s18] sm:$0xff]
    %v3354 = vld [vmem:[%s18 + $0x8] sm:$0xff]
    %v3355 = vld [vmem:[%s18 + $0x10] sm:$0xff]
    %v3356 = vld [vmem:[%s18 + $0x18] sm:$0xff]
    %v3357 = vld [vmem:[%s18 + $0x20] sm:$0xff]
    %v3358 = vld [vmem:[%s18 + $0x28] sm:$0xff]
    %v3359 = vld [vmem:[%s18 + $0x30] sm:$0xff]
    %v3360 = vld [vmem:[%s18 + $0x38] sm:$0xff]
    %v3361 = vld [vmem:[%s18 + $0x40] sm:$0xff]
    %v3362 = vld [vmem:[%s18 + $0x48] sm:$0xff]
    %v3363 = vld [vmem:[%s18 + $0x50] sm:$0xff]
    %v3364 = vld [vmem:[%s18 + $0x58] sm:$0xff]
    %v3365 = vld [vmem:[%s18 + $0x60] sm:$0xff]
    %v3366 = vld [vmem:[%s18 + $0x68] sm:$0xff]
    %v3367 = vld [vmem:[%s18 + $0x70] sm:$0xff]
    %v3368 = vld [vmem:[%s18 + $0x78] sm:$0xff]
    %v3369 = vld [vmem:[%s19] sm:$0x1]
    %v3371 = vperm.slane %v3369, 0
    %v3375 = vrot.slane %v3352, 7
    %v3376 = vsel %vm3301, %v3375, %v3351
    %3378 = vmatpush.msra.mxu0 %v3368
    %3379 = vmatpush.msra.mxu0 %v3367
    %3380 = vmatpush.msra.mxu0 %v3366
    %3381 = vmatpush.msra.mxu0 %v3365
    %3382 = vmatpush.msra.mxu0 %v3364
    %3383 = vmatpush.msra.mxu0 %v3363
    %3384 = vmatpush.msra.mxu0 %v3362
    %3385 = vmatpush.msra.mxu0 %v3361
    %3386 = vmatpush.msra.mxu0 %v3360
    %3387 = vmatpush.msra.mxu0 %v3359
    %3388 = vmatpush.msra.mxu0 %v3358
    %3389 = vmatpush.msra.mxu0 %v3357
    %3390 = vmatpush.msra.mxu0 %v3356
    %3391 = vmatpush.msra.mxu0 %v3355
    %3392 = vmatpush.msra.mxu0 %v3354
    %3393 = vmatpush.msra.mxu0 %v3353
    %3394 = vmatmul.f32.gmra.mxu0 %v3376
    %v3395 = vpop.f32.mrf.mxu0
    %v3396 = vadd.f32 %v3371, %v3395
    %3397 = vdwg.mxu0
    %3398 = vst [vmem:[#allocation2] sm:$0x3] %v3396
    // Predicated region
    $region82: #{transformer_encoder_forward.1} parent=1 // pred_check
      _
    $region83: #{transformer_encoder_forward.1} parent=1 // pred_check_branch
      %3400 = sbr.rel (0) target = $region85
    $region84: #{transformer_encoder_forward.1} parent=1 // pred_region
      %3402 = vsyncadd [#allocation3], 0
      %s3404 = sshll.u32 [#allocation2], 4
      %s3405 = int_to_ptr.vmem [resolvable:$true] %s3404
      %s3406 = sshll.u32 %s20, 4
      %s3407 = int_to_ptr.hbm [resolvable:$true] %s3406
      %3409 = dma.vmem_to_hbm [thread:$0]  %s3405, 32, %s3407, [#allocation3]
    $region85: #{transformer_encoder_forward.1} parent=1 // pred_fallthru
      _
    // Predicated region
    $region86: #{transformer_encoder_forward.1} parent=1 // pred_check
      _
    $region87: #{transformer_encoder_forward.1} parent=1 // pred_check_branch
      %3411 = sbr.rel (0) target = $region89
    $region88: #{transformer_encoder_forward.1} parent=1 // pred_region
      %3413 = dma.done [#allocation3], 32
    $region89: #{transformer_encoder_forward.1} parent=1 // pred_fallthru
      _
    %3414 = vsyncpa [#allocation3], 1

</llo_original>
